<compile_context>
chip_gen: v5e
topology: v5e:2x2
jax: 0.10.0
libtpu: 0.0.40
codegen_flags: <defaults>
</compile_context>

<pallas_src>
import itertools

import jax
import jax.numpy as jnp
from jax import lax
from jax.experimental import pallas as pl
from jax.experimental.pallas import tpu as pltpu


def _round_up(x, m):
    return ((x + m - 1) // m) * m


def _qspline(s):
    """Quadratic B-spline N(s).  At s = local - k + 0.5 (k in {0,1,2}) this equals
    the torch per-tap weights 0.5*(1-l)^2, 0.75-(0.5-l)^2, 0.5*l^2 exactly."""
    a = jnp.abs(s)
    return jnp.where(a < 0.5, 0.75 - s * s,
           jnp.where(a < 1.5, 0.5 * (1.5 - a) * (1.5 - a), 0.0))


def make_mpm_g2p(n_grid, grid_min, dx, *, tile_p=512, mxu_dtype=jnp.bfloat16):
    """Returns g2p(grid_vals [G,G,G,3], pos [P,3]) -> [P,3]."""
    n_grid = int(n_grid)
    grid_min = float(grid_min)
    dx = float(dx)
    inv_dx = 1.0 / dx

    gg = n_grid * n_grid
    ggp = max(_round_up(gg, 128), 128)   # channel-block width, lane-tile aligned
    n1p = 3 * ggp                        # total table columns: c*ggp + y*G + z

    # Hoisted constant: per-column (y, z) node ids for ONE channel block (shared
    # by all channels).  Padded columns (index >= gg) get harmless ids — their
    # table columns are zero, so their contribution is exactly zero.
    col = jnp.arange(ggp, dtype=jnp.int32)
    yz_ids = jnp.stack([col // n_grid, col % n_grid]).astype(jnp.float32)  # [2, ggp]

    def kernel(pos_ref, table_ref, ids_ref, out_ref):
        pos = pos_ref[...].astype(jnp.float32)               # [TP, 3]
        tp = pos.shape[0]
        nh = (pos - grid_min) * inv_dx + 0.5                 # norm + 0.5

        # ---- x axis: 3-tap weights over all G nodes (distance-form B-spline),
        #      contracted against the resident grid table on the MXU. ---------
        ix = lax.broadcasted_iota(jnp.int32, (tp, n_grid), 1).astype(jnp.float32)
        wx = _qspline(nh[:, 0:1] - ix)                       # [TP, G]
        t1 = jnp.dot(wx.astype(mxu_dtype), table_ref[...],
                     preferred_element_type=jnp.float32)     # [TP, 3*ggp] f32

        # ---- y / z axes: shared per-column weights on one lane-aligned tile
        #      (one lane-broadcast per axis, no per-tap where chains). --------
        wy = _qspline(nh[:, 1:2] - ids_ref[0:1, :])          # [TP, ggp]
        wz = _qspline(nh[:, 2:3] - ids_ref[1:2, :])          # [TP, ggp]
        wyz = wy * wz                                        # [TP, ggp]

        # ---- channel reduction: lane-tile-aligned slices + XLU lane sums
        #      (replaces the old [n1, 3] MXU matmul). --------------------------
        o0 = jnp.sum(t1[:, 0 * ggp:1 * ggp] * wyz, axis=-1, keepdims=True)
        o1 = jnp.sum(t1[:, 1 * ggp:2 * ggp] * wyz, axis=-1, keepdims=True)
        o2 = jnp.sum(t1[:, 2 * ggp:3 * ggp] * wyz, axis=-1, keepdims=True)
        out_ref[:, 0:1] = o0.astype(out_ref.dtype)
        out_ref[:, 1:2] = o1.astype(out_ref.dtype)
        out_ref[:, 2:3] = o2.astype(out_ref.dtype)

    def g2p(grid_vals, pos):
        assert grid_vals.shape == (n_grid, n_grid, n_grid, 3)

        # Re-layout grid to [G, 3*ggp]: column = c*ggp + (y*G + z), zero-padded
        # so every channel block is a whole number of 128-lane tiles.
        t = jnp.transpose(grid_vals, (0, 3, 1, 2)).reshape(n_grid, 3, gg)
        if ggp != gg:
            t = jnp.pad(t, ((0, 0), (0, 0), (0, ggp - gg)))
        table = t.reshape(n_grid, n1p).astype(mxu_dtype)

        p = pos.shape[0]
        p_pad = _round_up(p, tile_p)
        if p_pad != p:
            # Pad with in-domain dummy particles; their rows are sliced off below.
            pad = jnp.full((p_pad - p, 3), grid_min, pos.dtype)
            pos_in = jnp.concatenate([pos, pad], axis=0)
        else:
            pos_in = pos

        out = pl.pallas_call(
            kernel,
            out_shape=jax.ShapeDtypeStruct((p_pad, 3), pos.dtype),
            grid_spec=pltpu.PrefetchScalarGridSpec(
                num_scalar_prefetch=0,
                grid=(p_pad // tile_p,),
                in_specs=[
                    pl.BlockSpec((tile_p, 3), lambda i: (i, 0)),    # particle positions
                    pl.BlockSpec((n_grid, n1p), lambda i: (0, 0)),  # grid table (resident)
                    pl.BlockSpec((2, ggp), lambda i: (0, 0)),       # per-column (y,z) ids
                ],
                out_specs=pl.BlockSpec((tile_p, 3), lambda i: (i, 0)),
            ),
            compiler_params=pltpu.CompilerParams(
                dimension_semantics=("parallel",),
                vmem_limit_bytes=32 * 1024 * 1024,
            ),
        )(pos_in, table, yz_ids)
        return out[:p]

    return jax.jit(g2p)


def reference_g2p(grid_vals, pos, n_grid, grid_min, dx):
    """Pure-JAX re-implementation of the torch forward, for validation."""
    norm = (pos - grid_min) / dx
    base = norm.astype(jnp.int32)
    local = norm - base.astype(pos.dtype)
    w = [0.5 * (1.0 - local) ** 2, 0.75 - (0.5 - local) ** 2, 0.5 * local ** 2]
    new_val = jnp.zeros_like(pos)
    for (i, j, k) in itertools.product(range(3), repeat=3):
        wt = w[i][:, 0:1] * w[j][:, 1:2] * w[k][:, 2:3]
        gi = base + jnp.array([i, j, k], jnp.int32)
        g_val = grid_vals[gi[:, 0], gi[:, 1], gi[:, 2]]
        new_val = new_val + g_val * wt
    return new_val


if __name__ == "__main__":
    # Module "parameters" (registered buffers) — fixed deterministically here.
    N_GRID = 8
    GRID_MIN = 0.0
    DX = 0.25

    key = jax.random.PRNGKey(0)
    kg, kp = jax.random.split(key)

    # Grid node values [G, G, G, 3].
    grid_vals = jax.random.normal(kg, (N_GRID, N_GRID, N_GRID, 3), jnp.float32)

    # Particle positions [P, 3], kept inside the domain so every 3x3x3 stencil
    # stays in-bounds, as the torch code assumes.  P=2048 with tile_p=512 gives
    # an even grid of 4 steps (both v7x TensorCores stay busy and balanced).
    P = 2048
    pos = jax.random.uniform(
        kp, (P, 3), jnp.float32,
        minval=GRID_MIN + 0.1 * DX,
        maxval=GRID_MIN + (N_GRID - 2.5) * DX,
    )

    ref = jax.block_until_ready(reference_g2p(grid_vals, pos, N_GRID, GRID_MIN, DX))

    # f32-MXU instance: tight check against the torch-equivalent reference.
    g2p_f32 = make_mpm_g2p(N_GRID, GRID_MIN, DX, tile_p=512, mxu_dtype=jnp.float32)
    out_f32 = jax.block_until_ready(g2p_f32(grid_vals, pos))
    assert out_f32.shape == (P, 3) and out_f32.dtype == jnp.float32
    err_f32 = float(jnp.max(jnp.abs(out_f32 - ref)))
    assert err_f32 < 5e-4, err_f32

    # bf16-MXU instance (default fast path per perf review): looser tolerance
    # since bf16 grid values / weights carry ~3 significant digits.
    g2p_bf16 = make_mpm_g2p(N_GRID, GRID_MIN, DX, tile_p=512)
    out_bf16 = jax.block_until_ready(g2p_bf16(grid_vals, pos))
    assert out_bf16.shape == (P, 3) and out_bf16.dtype == jnp.float32
    err_bf16 = float(jnp.max(jnp.abs(out_bf16 - ref)))
    assert err_bf16 < 3e-2, err_bf16

    print("KERNEL_OK")
</pallas_src>

<mosaic_0001>
module attributes {stable_mosaic.version = 11 : i64} {
  func.func @kernel(%arg0: i32, %arg1: memref<512x3xf32, #tpu.memory_space<vmem>>, %arg2: memref<8x384xf32, #tpu.memory_space<vmem>>, %arg3: memref<2x128xf32, #tpu.memory_space<vmem>>, %arg4: memref<512x3xf32, #tpu.memory_space<vmem>>) attributes {dimension_semantics = [#tpu.dimension_semantics<parallel>], iteration_bounds = array<i64: 4>, scalar_prefetch = 0 : i64, scratch_operands = 0 : i64, tpu.core_type = #tpu.core_type<tc>, window_params = [{transform_indices = @transform_0, window_bounds = array<i64: 512, 3>}, {pipeline_mode = #tpu.pipeline_mode<synchronous>, transform_indices = @transform_1, window_bounds = array<i64: 8, 384>}, {pipeline_mode = #tpu.pipeline_mode<synchronous>, transform_indices = @transform_2, window_bounds = array<i64: 2, 128>}, {transform_indices = @transform_3, window_bounds = array<i64: 512, 3>}]} {
    %c0 = arith.constant 0 : index
    %c0_0 = arith.constant 0 : index
    %0 = vector.load %arg1[%c0, %c0_0] : memref<512x3xf32, #tpu.memory_space<vmem>>, vector<512x3xf32>
    %cst = arith.constant 0.000000e+00 : f32
    %1 = vector.broadcast %cst : f32 to vector<512x3xf32>
    %2 = arith.subf %0, %1 : vector<512x3xf32>
    %cst_1 = arith.constant 4.000000e+00 : f32
    %3 = vector.broadcast %cst_1 : f32 to vector<512x3xf32>
    %4 = arith.mulf %2, %3 : vector<512x3xf32>
    %cst_2 = arith.constant 5.000000e-01 : f32
    %5 = vector.broadcast %cst_2 : f32 to vector<512x3xf32>
    %6 = arith.addf %4, %5 : vector<512x3xf32>
    %7 = tpu.iota {dimensions = array<i32: 1>} : vector<512x8xi32>
    %8 = arith.sitofp %7 : vector<512x8xi32> to vector<512x8xf32>
    %9 = vector.extract_strided_slice %6 {offsets = [0, 0], sizes = [512, 1], strides = [1, 1]} : vector<512x3xf32> to vector<512x1xf32>
    %10 = vector.broadcast %9 : vector<512x1xf32> to vector<512x8xf32>
    %11 = arith.subf %10, %8 : vector<512x8xf32>
    %12 = math.absf %11 : vector<512x8xf32>
    %cst_3 = arith.constant 5.000000e-01 : f32
    %13 = vector.broadcast %cst_3 : f32 to vector<512x8xf32>
    %14 = arith.cmpf olt, %12, %13 : vector<512x8xf32>
    %15 = arith.mulf %11, %11 : vector<512x8xf32>
    %cst_4 = arith.constant 7.500000e-01 : f32
    %16 = vector.broadcast %cst_4 : f32 to vector<512x8xf32>
    %17 = arith.subf %16, %15 : vector<512x8xf32>
    %cst_5 = arith.constant 1.500000e+00 : f32
    %18 = vector.broadcast %cst_5 : f32 to vector<512x8xf32>
    %19 = arith.cmpf olt, %12, %18 : vector<512x8xf32>
    %cst_6 = arith.constant 1.500000e+00 : f32
    %20 = vector.broadcast %cst_6 : f32 to vector<512x8xf32>
    %21 = arith.subf %20, %12 : vector<512x8xf32>
    %cst_7 = arith.constant 5.000000e-01 : f32
    %22 = vector.broadcast %cst_7 : f32 to vector<512x8xf32>
    %23 = arith.mulf %22, %21 : vector<512x8xf32>
    %cst_8 = arith.constant 1.500000e+00 : f32
    %24 = vector.broadcast %cst_8 : f32 to vector<512x8xf32>
    %25 = arith.subf %24, %12 : vector<512x8xf32>
    %26 = arith.mulf %23, %25 : vector<512x8xf32>
    %cst_9 = arith.constant 0.000000e+00 : f32
    %27 = vector.broadcast %cst_9 : f32 to vector<512x8xf32>
    %28 = arith.select %19, %26, %27 : vector<512x8xi1>, vector<512x8xf32>
    %29 = arith.select %14, %17, %28 : vector<512x8xi1>, vector<512x8xf32>
    %c0_10 = arith.constant 0 : index
    %c0_11 = arith.constant 0 : index
    %30 = vector.load %arg2[%c0_10, %c0_11] : memref<8x384xf32, #tpu.memory_space<vmem>>, vector<8x384xf32>
    %cst_12 = arith.constant dense<0.000000e+00> : vector<512x384xf32>
    %31 = tpu.matmul %29, %30, %cst_12 {dimension_numbers = #tpu.dot_dimension_numbers<[1], [0], [0], [1], [0, 0, 1, 1], [], []>} : vector<512x8xf32>, vector<8x384xf32>, vector<512x384xf32> -> vector<512x384xf32>
    %32 = vector.extract_strided_slice %6 {offsets = [0, 1], sizes = [512, 1], strides = [1, 1]} : vector<512x3xf32> to vector<512x1xf32>
    %c0_13 = arith.constant 0 : index
    %c0_14 = arith.constant 0 : index
    %33 = vector.load %arg3[%c0_13, %c0_14] : memref<2x128xf32, #tpu.memory_space<vmem>>, vector<1x128xf32>
    %34 = vector.broadcast %32 : vector<512x1xf32> to vector<512x128xf32>
    %35 = vector.broadcast %33 : vector<1x128xf32> to vector<512x128xf32>
    %36 = arith.subf %34, %35 : vector<512x128xf32>
    %37 = math.absf %36 : vector<512x128xf32>
    %cst_15 = arith.constant 5.000000e-01 : f32
    %38 = vector.broadcast %cst_15 : f32 to vector<512x128xf32>
    %39 = arith.cmpf olt, %37, %38 : vector<512x128xf32>
    %40 = arith.mulf %36, %36 : vector<512x128xf32>
    %cst_16 = arith.constant 7.500000e-01 : f32
    %41 = vector.broadcast %cst_16 : f32 to vector<512x128xf32>
    %42 = arith.subf %41, %40 : vector<512x128xf32>
    %cst_17 = arith.constant 1.500000e+00 : f32
    %43 = vector.broadcast %cst_17 : f32 to vector<512x128xf32>
    %44 = arith.cmpf olt, %37, %43 : vector<512x128xf32>
    %cst_18 = arith.constant 1.500000e+00 : f32
    %45 = vector.broadcast %cst_18 : f32 to vector<512x128xf32>
    %46 = arith.subf %45, %37 : vector<512x128xf32>
    %cst_19 = arith.constant 5.000000e-01 : f32
    %47 = vector.broadcast %cst_19 : f32 to vector<512x128xf32>
    %48 = arith.mulf %47, %46 : vector<512x128xf32>
    %cst_20 = arith.constant 1.500000e+00 : f32
    %49 = vector.broadcast %cst_20 : f32 to vector<512x128xf32>
    %50 = arith.subf %49, %37 : vector<512x128xf32>
    %51 = arith.mulf %48, %50 : vector<512x128xf32>
    %cst_21 = arith.constant 0.000000e+00 : f32
    %52 = vector.broadcast %cst_21 : f32 to vector<512x128xf32>
    %53 = arith.select %44, %51, %52 : vector<512x128xi1>, vector<512x128xf32>
    %54 = arith.select %39, %42, %53 : vector<512x128xi1>, vector<512x128xf32>
    %55 = vector.extract_strided_slice %6 {offsets = [0, 2], sizes = [512, 1], strides = [1, 1]} : vector<512x3xf32> to vector<512x1xf32>
    %c1 = arith.constant 1 : index
    %c0_22 = arith.constant 0 : index
    %56 = vector.load %arg3[%c1, %c0_22] : memref<2x128xf32, #tpu.memory_space<vmem>>, vector<1x128xf32>
    %57 = vector.broadcast %55 : vector<512x1xf32> to vector<512x128xf32>
    %58 = vector.broadcast %56 : vector<1x128xf32> to vector<512x128xf32>
    %59 = arith.subf %57, %58 : vector<512x128xf32>
    %60 = math.absf %59 : vector<512x128xf32>
    %cst_23 = arith.constant 5.000000e-01 : f32
    %61 = vector.broadcast %cst_23 : f32 to vector<512x128xf32>
    %62 = arith.cmpf olt, %60, %61 : vector<512x128xf32>
    %63 = arith.mulf %59, %59 : vector<512x128xf32>
    %cst_24 = arith.constant 7.500000e-01 : f32
    %64 = vector.broadcast %cst_24 : f32 to vector<512x128xf32>
    %65 = arith.subf %64, %63 : vector<512x128xf32>
    %cst_25 = arith.constant 1.500000e+00 : f32
    %66 = vector.broadcast %cst_25 : f32 to vector<512x128xf32>
    %67 = arith.cmpf olt, %60, %66 : vector<512x128xf32>
    %cst_26 = arith.constant 1.500000e+00 : f32
    %68 = vector.broadcast %cst_26 : f32 to vector<512x128xf32>
    %69 = arith.subf %68, %60 : vector<512x128xf32>
    %cst_27 = arith.constant 5.000000e-01 : f32
    %70 = vector.broadcast %cst_27 : f32 to vector<512x128xf32>
    %71 = arith.mulf %70, %69 : vector<512x128xf32>
    %cst_28 = arith.constant 1.500000e+00 : f32
    %72 = vector.broadcast %cst_28 : f32 to vector<512x128xf32>
    %73 = arith.subf %72, %60 : vector<512x128xf32>
    %74 = arith.mulf %71, %73 : vector<512x128xf32>
    %cst_29 = arith.constant 0.000000e+00 : f32
    %75 = vector.broadcast %cst_29 : f32 to vector<512x128xf32>
    %76 = arith.select %67, %74, %75 : vector<512x128xi1>, vector<512x128xf32>
    %77 = arith.select %62, %65, %76 : vector<512x128xi1>, vector<512x128xf32>
    %78 = arith.mulf %54, %77 : vector<512x128xf32>
    %79 = vector.extract_strided_slice %31 {offsets = [0, 0], sizes = [512, 128], strides = [1, 1]} : vector<512x384xf32> to vector<512x128xf32>
    %80 = arith.mulf %79, %78 : vector<512x128xf32>
    %cst_30 = arith.constant dense<0.000000e+00> : vector<512xf32>
    %81 = vector.multi_reduction <add>, %80, %cst_30 [1] : vector<512x128xf32> to vector<512xf32>
    %82 = vector.shape_cast %81 : vector<512xf32> to vector<512x1xf32>
    %83 = vector.extract_strided_slice %31 {offsets = [0, 128], sizes = [512, 128], strides = [1, 1]} : vector<512x384xf32> to vector<512x128xf32>
    %84 = arith.mulf %83, %78 : vector<512x128xf32>
    %cst_31 = arith.constant dense<0.000000e+00> : vector<512xf32>
    %85 = vector.multi_reduction <add>, %84, %cst_31 [1] : vector<512x128xf32> to vector<512xf32>
    %86 = vector.shape_cast %85 : vector<512xf32> to vector<512x1xf32>
    %87 = vector.extract_strided_slice %31 {offsets = [0, 256], sizes = [512, 128], strides = [1, 1]} : vector<512x384xf32> to vector<512x128xf32>
    %88 = arith.mulf %87, %78 : vector<512x128xf32>
    %cst_32 = arith.constant dense<0.000000e+00> : vector<512xf32>
    %89 = vector.multi_reduction <add>, %88, %cst_32 [1] : vector<512x128xf32> to vector<512xf32>
    %90 = vector.shape_cast %89 : vector<512xf32> to vector<512x1xf32>
    %c0_33 = arith.constant 0 : index
    %c0_34 = arith.constant 0 : index
    %91 = vector.load %arg4[%c0_33, %c0_34] : memref<512x3xf32, #tpu.memory_space<vmem>>, vector<512x1xf32>
    tpu.vector_store %arg4[%c0_33, %c0_34], %82 {strides = array<i32>} : memref<512x3xf32, #tpu.memory_space<vmem>>, vector<512x1xf32>,
    %c0_35 = arith.constant 0 : index
    %c1_36 = arith.constant 1 : index
    %92 = vector.load %arg4[%c0_35, %c1_36] : memref<512x3xf32, #tpu.memory_space<vmem>>, vector<512x1xf32>
    tpu.vector_store %arg4[%c0_35, %c1_36], %86 {strides = array<i32>} : memref<512x3xf32, #tpu.memory_space<vmem>>, vector<512x1xf32>,
    %c0_37 = arith.constant 0 : index
    %c2 = arith.constant 2 : index
    %93 = vector.load %arg4[%c0_37, %c2] : memref<512x3xf32, #tpu.memory_space<vmem>>, vector<512x1xf32>
    tpu.vector_store %arg4[%c0_37, %c2], %90 {strides = array<i32>} : memref<512x3xf32, #tpu.memory_space<vmem>>, vector<512x1xf32>,
    return
  }
  func.func @transform_0(%arg0: i32) -> (i32, i32) {
    %c0_i32 = arith.constant 0 : i32
    %c0_i32_0 = arith.constant 0 : i32
    return %arg0, %c0_i32 : i32, i32
  }
  func.func @transform_1(%arg0: i32) -> (i32, i32) {
    %c0_i32 = arith.constant 0 : i32
    %c0_i32_0 = arith.constant 0 : i32
    %c0_i32_1 = arith.constant 0 : i32
    return %c0_i32, %c0_i32_0 : i32, i32
  }
  func.func @transform_2(%arg0: i32) -> (i32, i32) {
    %c0_i32 = arith.constant 0 : i32
    %c0_i32_0 = arith.constant 0 : i32
    %c0_i32_1 = arith.constant 0 : i32
    return %c0_i32, %c0_i32_0 : i32, i32
  }
  func.func @transform_3(%arg0: i32) -> (i32, i32) {
    %c0_i32 = arith.constant 0 : i32
    %c0_i32_0 = arith.constant 0 : i32
    return %arg0, %c0_i32 : i32, i32
  }
}

</mosaic_0001>

<llo_original>
// kernel: g2p.1
$region0: #{g2p.1}
  #allocation0 [shape = 'u32[]', space=smem, size = 0x4, offset = 0x4, fixed_abs, tag = 'smem constant byte address 0x4 - core index']
  #allocation1 [shape = 'u32[72,128]{1,0:T(1,128)}', space=vmem, size = 0x9000, scoped, tag = 'internal scratch']
  %s0 = inlined_call_operand.vmem [shape: f32[2048,3], index: 0, kind: input, shape index: {}]
  %s1 = inlined_call_operand.vmem [shape: f32[8,384], index: 1, kind: input, shape index: {}]
  %s2 = inlined_call_operand.vmem [shape: f32[2,128], index: 2, kind: input, shape index: {}]
  %s3 = inlined_call_operand.vmem [shape: f32[2048,3], index: 3, kind: output, shape index: {}]
  %s4 = sld [smem:[#allocation0]]
  $region45: #{g2p.1} parent=0
    _
  %s6 = ssub.s32 1, %s4
  %s7 = scalar_select 0, %s6, %s4
  loop: start=0, step=1, limit=6
  $region2: #{g2p.1} parent=0 // loop_pre_header
    _
  $region3: #{g2p.1} parent=0 // loop_header
    %s9 = sphi 0, %s13
    %p10 = scmp.ge.s32.totalorder %s9, 6
    %s19 = sphi 0, %s21
    %s22 = sphi 0, %s19
    %s23 = sphi 0, %s22
    %s39 = sphi 0, %s23
    %s43 = sphi 0, %s43
    %s45 = sphi 0, %s43
    %s46 = sphi 0, %s45
    %s60 = sphi 0, %s46
    %s64 = sphi 0, %s64
    %s66 = sphi 0, %s64
    %s67 = sphi 0, %s66
    %s81 = sphi 0, %s67
    %s87 = sphi 0, %s89
    %s90 = sphi 0, %s87
    %s91 = sphi 0, %s90
    %s107 = sphi 0, %s91
  $region4: #{g2p.1} parent=0 // loop_header_branch
    %12 = sbr.rel (%p10) target = $region8
  $region5: #{g2p.1} parent=0 // loop_body
    %s14 = ssub.s32 %s9, 1
    %s15 = ssub.s32 %s9, 2
    %s16 = sadd.s32 %s9, 1
    %s17 = ssub.s32 %s9, %s16
    %p18 = scmp.eq.s32.totalorder %s17, 0
    %s20 = sadd.s32 %s19, 1
    %s21 = scalar_select %p18, %s19, %s20
    %p24 = pneg %p18
    %p25 = scmp.eq.s32.totalorder %s9, 3
    %p26 = por %p24, %p25
    %p27 = scmp.ne.s32.totalorder %s19, %s22
    %p28 = scmp.eq.s32.totalorder %s9, 0
    %p29 = por %p27, %p28
    %p30 = scmp.ne.s32.totalorder %s19, %s22
    %p31 = scmp.eq.s32.totalorder %s14, 3
    %p32 = por %p30, %p31
    %p33 = scmp.ne.s32.totalorder %s22, %s23
    %p34 = scmp.eq.s32.totalorder %s14, 0
    %p35 = por %p33, %p34
    %p36 = scmp.ne.s32.totalorder %s22, %s23
    %p37 = scmp.eq.s32.totalorder %s15, 3
    %p38 = por %p36, %p37
    %p40 = scmp.ne.s32.totalorder %s23, %s39
    %p41 = scmp.eq.s32.totalorder %s15, 0
    %p42 = por %p40, %p41
    %s44 = sadd.s32 %s43, 1
    %p47 = scmp.eq.s32.totalorder %s9, 3
    %p48 = scmp.ne.s32.totalorder %s43, %s45
    %p49 = scmp.eq.s32.totalorder %s9, 0
    %p50 = por %p48, %p49
    %p51 = scmp.ne.s32.totalorder %s43, %s45
    %p52 = scmp.eq.s32.totalorder %s14, 3
    %p53 = por %p51, %p52
    %p54 = scmp.ne.s32.totalorder %s45, %s46
    %p55 = scmp.eq.s32.totalorder %s14, 0
    %p56 = por %p54, %p55
    %p57 = scmp.ne.s32.totalorder %s45, %s46
    %p58 = scmp.eq.s32.totalorder %s15, 3
    %p59 = por %p57, %p58
    %p61 = scmp.ne.s32.totalorder %s46, %s60
    %p62 = scmp.eq.s32.totalorder %s15, 0
    %p63 = por %p61, %p62
    %s65 = sadd.s32 %s64, 1
    %p68 = scmp.eq.s32.totalorder %s9, 3
    %p69 = scmp.ne.s32.totalorder %s64, %s66
    %p70 = scmp.eq.s32.totalorder %s9, 0
    %p71 = por %p69, %p70
    %p72 = scmp.ne.s32.totalorder %s64, %s66
    %p73 = scmp.eq.s32.totalorder %s14, 3
    %p74 = por %p72, %p73
    %p75 = scmp.ne.s32.totalorder %s66, %s67
    %p76 = scmp.eq.s32.totalorder %s14, 0
    %p77 = por %p75, %p76
    %p78 = scmp.ne.s32.totalorder %s66, %s67
    %p79 = scmp.eq.s32.totalorder %s15, 3
    %p80 = por %p78, %p79
    %p82 = scmp.ne.s32.totalorder %s67, %s81
    %p83 = scmp.eq.s32.totalorder %s15, 0
    %p84 = por %p82, %p83
    %s85 = ssub.s32 %s9, %s16
    %p86 = scmp.eq.s32.totalorder %s85, 0
    %s88 = sadd.s32 %s87, 1
    %s89 = scalar_select %p86, %s87, %s88
    %p92 = pneg %p86
    %p93 = scmp.eq.s32.totalorder %s9, 3
    %p94 = por %p92, %p93
    %p95 = scmp.ne.s32.totalorder %s87, %s90
    %p96 = scmp.eq.s32.totalorder %s9, 0
    %p97 = por %p95, %p96
    %p98 = scmp.ne.s32.totalorder %s87, %s90
    %p99 = scmp.eq.s32.totalorder %s14, 3
    %p100 = por %p98, %p99
    %p101 = scmp.ne.s32.totalorder %s90, %s91
    %p102 = scmp.eq.s32.totalorder %s14, 0
    %p103 = por %p101, %p102
    %p104 = scmp.ne.s32.totalorder %s90, %s91
    %p105 = scmp.eq.s32.totalorder %s15, 3
    %p106 = por %p104, %p105
    %p108 = scmp.ne.s32.totalorder %s91, %s107
    %p109 = scmp.eq.s32.totalorder %s15, 0
    %p110 = por %p108, %p109
    %p111 = scmp.le.s32.totalorder 1, %s9
    %p112 = scmp.lt.s32.totalorder %s9, 5
    %p113 = pnand %p111, %p112
    %p114 = pneg %p113
    // Predicated region
    $region9: #{g2p.1} parent=5 // pred_check
      _
    $region10: #{g2p.1} parent=5 // pred_check_branch
      %116 = sbr.rel (%p113) target = $region12
    $region11: #{g2p.1} parent=5 // pred_region
      %s117 = ssub.s32 %s9, 1
      // Predicated region
      $region13: #{g2p.1} parent=11 // pred_check
        %p118 = pneg %p56
      $region14: #{g2p.1} parent=11 // pred_check_branch
        %120 = sbr.rel (%p118) target = $region16
      $region15: #{g2p.1} parent=11 // pred_region
        _
      $region16: #{g2p.1} parent=11 // pred_fallthru
        _
      // Predicated region
      $region17: #{g2p.1} parent=11 // pred_check
        %p121 = pneg %p77
      $region18: #{g2p.1} parent=11 // pred_check_branch
        %123 = sbr.rel (%p121) target = $region20
      $region19: #{g2p.1} parent=11 // pred_region
        _
      $region20: #{g2p.1} parent=11 // pred_fallthru
        _
    $region12: #{g2p.1} parent=5 // pred_fallthru
      _
    %p124 = scmp.lt.s32.totalorder %s9, 4
    // Predicated region
    $region21: #{g2p.1} parent=5 // pred_check
      %p125 = pneg %p124
    $region22: #{g2p.1} parent=5 // pred_check_branch
      %127 = sbr.rel (%p125) target = $region24
    $region23: #{g2p.1} parent=5 // pred_region
      // Predicated region
      $region25: #{g2p.1} parent=23 // pred_check
        %p128 = pneg %p29
      $region26: #{g2p.1} parent=23 // pred_check_branch
        %130 = sbr.rel (%p128) target = $region28
      $region27: #{g2p.1} parent=23 // pred_region
        %s131 = smul.u32 64, %s9
        %p132 = scmp.lt.s32.totalorder %s131, 255
        %s133 = scalar_select %p132, %s131, 255
        %s134 = smul.addr %s133, 8
        %s135 = scalar_lea.vmem %s0, %s134
        %s136 = smul.u32 64, %s9
      $region28: #{g2p.1} parent=23 // pred_fallthru
        _
    $region24: #{g2p.1} parent=5 // pred_fallthru
      _
    %p137 = scmp.le.s32.totalorder 1, %s9
    %p138 = scmp.lt.s32.totalorder %s9, 5
    %p139 = pnand %p137, %p138
    %p140 = pneg %p139
    // Predicated region
    $region29: #{g2p.1} parent=5 // pred_check
      _
    $region30: #{g2p.1} parent=5 // pred_check_branch
      %142 = sbr.rel (%p139) target = $region32
    $region31: #{g2p.1} parent=5 // pred_region
      %s143 = ssub.s32 %s9, 1
      %s144 = smul.u32 64, %s14
      %p145 = scmp.lt.s32.totalorder %s144, 255
      %s146 = scalar_select %p145, %s144, 255
      %s147 = smul.addr %s146, 8
      %s148 = scalar_lea.vmem %s0, %s147
      %p149 = pneg %p35
      %p150 = pneg %p32
      %p151 = pneg %p56
      %p152 = pneg %p53
      %p153 = pneg %p77
      %p154 = pneg %p74
      %p155 = pneg %p103
      %p156 = pneg %p100
      %s157 = smul.u32 64, %s14
      %p158 = scmp.lt.s32.totalorder %s157, 255
      %s159 = scalar_select %p158, %s157, 255
      %s160 = smul.addr %s159, 8
      %s161 = scalar_lea.vmem %s3, %s160
      %s162 = smul.u32 64, %s14
      %p163 = scmp.lt.s32.totalorder %s162, 255
      %s164 = scalar_select %p163, %s162, 255
      %s165 = smul.addr %s164, 8
      %s166 = scalar_lea.vmem %s0, %s165
      %s167 = smul.u32 64, %s14
      %s168 = smul.u32 64, %s14
      %p169 = scmp.lt.s32.totalorder %s168, 255
      %s170 = scalar_select %p169, %s168, 255
      %s171 = smul.addr %s170, 8
      %s172 = scalar_lea.vmem %s3, %s171
      %s173 = smul.u32 64, %s14
      %v174 = vld [vmem:[%s166] sm:$0xff]
      %v175 = vld [vmem:[%s166 + $0x8] sm:$0xff]
      %v176 = vld [vmem:[%s166 + $0x10] sm:$0xff]
      %v177 = vld [vmem:[%s166 + $0x18] sm:$0xff]
      %v178 = vld [vmem:[%s166 + $0x20] sm:$0xff]
      %v179 = vld [vmem:[%s166 + $0x28] sm:$0xff]
      %v180 = vld [vmem:[%s166 + $0x30] sm:$0xff]
      %v181 = vld [vmem:[%s166 + $0x38] sm:$0xff]
      %v182 = vld [vmem:[%s166 + $0x40] sm:$0xff]
      %v183 = vld [vmem:[%s166 + $0x48] sm:$0xff]
      %v184 = vld [vmem:[%s166 + $0x50] sm:$0xff]
      %v185 = vld [vmem:[%s166 + $0x58] sm:$0xff]
      %v186 = vld [vmem:[%s166 + $0x60] sm:$0xff]
      %v187 = vld [vmem:[%s166 + $0x68] sm:$0xff]
      %v188 = vld [vmem:[%s166 + $0x70] sm:$0xff]
      %v189 = vld [vmem:[%s166 + $0x78] sm:$0xff]
      %v190 = vld [vmem:[%s166 + $0x80] sm:$0xff]
      %v191 = vld [vmem:[%s166 + $0x88] sm:$0xff]
      %v192 = vld [vmem:[%s166 + $0x90] sm:$0xff]
      %v193 = vld [vmem:[%s166 + $0x98] sm:$0xff]
      %v194 = vld [vmem:[%s166 + $0xa0] sm:$0xff]
      %v195 = vld [vmem:[%s166 + $0xa8] sm:$0xff]
      %v196 = vld [vmem:[%s166 + $0xb0] sm:$0xff]
      %v197 = vld [vmem:[%s166 + $0xb8] sm:$0xff]
      %v198 = vld [vmem:[%s166 + $0xc0] sm:$0xff]
      %v199 = vld [vmem:[%s166 + $0xc8] sm:$0xff]
      %v200 = vld [vmem:[%s166 + $0xd0] sm:$0xff]
      %v201 = vld [vmem:[%s166 + $0xd8] sm:$0xff]
      %v202 = vld [vmem:[%s166 + $0xe0] sm:$0xff]
      %v203 = vld [vmem:[%s166 + $0xe8] sm:$0xff]
      %v204 = vld [vmem:[%s166 + $0xf0] sm:$0xff]
      %v205 = vld [vmem:[%s166 + $0xf8] sm:$0xff]
      %v206 = vld [vmem:[%s166 + $0x100] sm:$0xff]
      %v207 = vld [vmem:[%s166 + $0x108] sm:$0xff]
      %v208 = vld [vmem:[%s166 + $0x110] sm:$0xff]
      %v209 = vld [vmem:[%s166 + $0x118] sm:$0xff]
      %v210 = vld [vmem:[%s166 + $0x120] sm:$0xff]
      %v211 = vld [vmem:[%s166 + $0x128] sm:$0xff]
      %v212 = vld [vmem:[%s166 + $0x130] sm:$0xff]
      %v213 = vld [vmem:[%s166 + $0x138] sm:$0xff]
      %v214 = vld [vmem:[%s166 + $0x140] sm:$0xff]
      %v215 = vld [vmem:[%s166 + $0x148] sm:$0xff]
      %v216 = vld [vmem:[%s166 + $0x150] sm:$0xff]
      %v217 = vld [vmem:[%s166 + $0x158] sm:$0xff]
      %v218 = vld [vmem:[%s166 + $0x160] sm:$0xff]
      %v219 = vld [vmem:[%s166 + $0x168] sm:$0xff]
      %v220 = vld [vmem:[%s166 + $0x170] sm:$0xff]
      %v221 = vld [vmem:[%s166 + $0x178] sm:$0xff]
      %v222 = vld [vmem:[%s166 + $0x180] sm:$0xff]
      %v223 = vld [vmem:[%s166 + $0x188] sm:$0xff]
      %v224 = vld [vmem:[%s166 + $0x190] sm:$0xff]
      %v225 = vld [vmem:[%s166 + $0x198] sm:$0xff]
      %v226 = vld [vmem:[%s166 + $0x1a0] sm:$0xff]
      %v227 = vld [vmem:[%s166 + $0x1a8] sm:$0xff]
      %v228 = vld [vmem:[%s166 + $0x1b0] sm:$0xff]
      %v229 = vld [vmem:[%s166 + $0x1b8] sm:$0xff]
      %v230 = vld [vmem:[%s166 + $0x1c0] sm:$0xff]
      %v231 = vld [vmem:[%s166 + $0x1c8] sm:$0xff]
      %v232 = vld [vmem:[%s166 + $0x1d0] sm:$0xff]
      %v233 = vld [vmem:[%s166 + $0x1d8] sm:$0xff]
      %v234 = vld [vmem:[%s166 + $0x1e0] sm:$0xff]
      %v235 = vld [vmem:[%s166 + $0x1e8] sm:$0xff]
      %v236 = vld [vmem:[%s166 + $0x1f0] sm:$0xff]
      %v237 = vld [vmem:[%s166 + $0x1f8] sm:$0xff]
      %v238 = vmul.f32 %v174, 4.0
      %v239 = vmul.f32 %v175, 4.0
      %v240 = vmul.f32 %v176, 4.0
      %v241 = vmul.f32 %v177, 4.0
      %v242 = vmul.f32 %v178, 4.0
      %v243 = vmul.f32 %v179, 4.0
      %v244 = vmul.f32 %v180, 4.0
      %v245 = vmul.f32 %v181, 4.0
      %v246 = vmul.f32 %v182, 4.0
      %v247 = vmul.f32 %v183, 4.0
      %v248 = vmul.f32 %v184, 4.0
      %v249 = vmul.f32 %v185, 4.0
      %v250 = vmul.f32 %v186, 4.0
      %v251 = vmul.f32 %v187, 4.0
      %v252 = vmul.f32 %v188, 4.0
      %v253 = vmul.f32 %v189, 4.0
      %v254 = vmul.f32 %v190, 4.0
      %v255 = vmul.f32 %v191, 4.0
      %v256 = vmul.f32 %v192, 4.0
      %v257 = vmul.f32 %v193, 4.0
      %v258 = vmul.f32 %v194, 4.0
      %v259 = vmul.f32 %v195, 4.0
      %v260 = vmul.f32 %v196, 4.0
      %v261 = vmul.f32 %v197, 4.0
      %v262 = vmul.f32 %v198, 4.0
      %v263 = vmul.f32 %v199, 4.0
      %v264 = vmul.f32 %v200, 4.0
      %v265 = vmul.f32 %v201, 4.0
      %v266 = vmul.f32 %v202, 4.0
      %v267 = vmul.f32 %v203, 4.0
      %v268 = vmul.f32 %v204, 4.0
      %v269 = vmul.f32 %v205, 4.0
      %v270 = vmul.f32 %v206, 4.0
      %v271 = vmul.f32 %v207, 4.0
      %v272 = vmul.f32 %v208, 4.0
      %v273 = vmul.f32 %v209, 4.0
      %v274 = vmul.f32 %v210, 4.0
      %v275 = vmul.f32 %v211, 4.0
      %v276 = vmul.f32 %v212, 4.0
      %v277 = vmul.f32 %v213, 4.0
      %v278 = vmul.f32 %v214, 4.0
      %v279 = vmul.f32 %v215, 4.0
      %v280 = vmul.f32 %v216, 4.0
      %v281 = vmul.f32 %v217, 4.0
      %v282 = vmul.f32 %v218, 4.0
      %v283 = vmul.f32 %v219, 4.0
      %v284 = vmul.f32 %v220, 4.0
      %v285 = vmul.f32 %v221, 4.0
      %v286 = vmul.f32 %v222, 4.0
      %v287 = vmul.f32 %v223, 4.0
      %v288 = vmul.f32 %v224, 4.0
      %v289 = vmul.f32 %v225, 4.0
      %v290 = vmul.f32 %v226, 4.0
      %v291 = vmul.f32 %v227, 4.0
      %v292 = vmul.f32 %v228, 4.0
      %v293 = vmul.f32 %v229, 4.0
      %v294 = vmul.f32 %v230, 4.0
      %v295 = vmul.f32 %v231, 4.0
      %v296 = vmul.f32 %v232, 4.0
      %v297 = vmul.f32 %v233, 4.0
      %v298 = vmul.f32 %v234, 4.0
      %v299 = vmul.f32 %v235, 4.0
      %v300 = vmul.f32 %v236, 4.0
      %v301 = vmul.f32 %v237, 4.0
      %v302 = vadd.f32 %v238, 0.5
      %v303 = vadd.f32 %v239, 0.5
      %v304 = vadd.f32 %v240, 0.5
      %v305 = vadd.f32 %v241, 0.5
      %v306 = vadd.f32 %v242, 0.5
      %v307 = vadd.f32 %v243, 0.5
      %v308 = vadd.f32 %v244, 0.5
      %v309 = vadd.f32 %v245, 0.5
      %v310 = vadd.f32 %v246, 0.5
      %v311 = vadd.f32 %v247, 0.5
      %v312 = vadd.f32 %v248, 0.5
      %v313 = vadd.f32 %v249, 0.5
      %v314 = vadd.f32 %v250, 0.5
      %v315 = vadd.f32 %v251, 0.5
      %v316 = vadd.f32 %v252, 0.5
      %v317 = vadd.f32 %v253, 0.5
      %v318 = vadd.f32 %v254, 0.5
      %v319 = vadd.f32 %v255, 0.5
      %v320 = vadd.f32 %v256, 0.5
      %v321 = vadd.f32 %v257, 0.5
      %v322 = vadd.f32 %v258, 0.5
      %v323 = vadd.f32 %v259, 0.5
      %v324 = vadd.f32 %v260, 0.5
      %v325 = vadd.f32 %v261, 0.5
      %v326 = vadd.f32 %v262, 0.5
      %v327 = vadd.f32 %v263, 0.5
      %v328 = vadd.f32 %v264, 0.5
      %v329 = vadd.f32 %v265, 0.5
      %v330 = vadd.f32 %v266, 0.5
      %v331 = vadd.f32 %v267, 0.5
      %v332 = vadd.f32 %v268, 0.5
      %v333 = vadd.f32 %v269, 0.5
      %v334 = vadd.f32 %v270, 0.5
      %v335 = vadd.f32 %v271, 0.5
      %v336 = vadd.f32 %v272, 0.5
      %v337 = vadd.f32 %v273, 0.5
      %v338 = vadd.f32 %v274, 0.5
      %v339 = vadd.f32 %v275, 0.5
      %v340 = vadd.f32 %v276, 0.5
      %v341 = vadd.f32 %v277, 0.5
      %v342 = vadd.f32 %v278, 0.5
      %v343 = vadd.f32 %v279, 0.5
      %v344 = vadd.f32 %v280, 0.5
      %v345 = vadd.f32 %v281, 0.5
      %v346 = vadd.f32 %v282, 0.5
      %v347 = vadd.f32 %v283, 0.5
      %v348 = vadd.f32 %v284, 0.5
      %v349 = vadd.f32 %v285, 0.5
      %v350 = vadd.f32 %v286, 0.5
      %v351 = vadd.f32 %v287, 0.5
      %v352 = vadd.f32 %v288, 0.5
      %v353 = vadd.f32 %v289, 0.5
      %v354 = vadd.f32 %v290, 0.5
      %v355 = vadd.f32 %v291, 0.5
      %v356 = vadd.f32 %v292, 0.5
      %v357 = vadd.f32 %v293, 0.5
      %v358 = vadd.f32 %v294, 0.5
      %v359 = vadd.f32 %v295, 0.5
      %v360 = vadd.f32 %v296, 0.5
      %v361 = vadd.f32 %v297, 0.5
      %v362 = vadd.f32 %v298, 0.5
      %v363 = vadd.f32 %v299, 0.5
      %v364 = vadd.f32 %v300, 0.5
      %v365 = vadd.f32 %v301, 0.5
      %v366 = vlaneseq
      %v367 = vand.u32 %v366, 127
      %v368 = vcvt.s32.f32 %v367
      %370 = vset.pattern.permute.xlu0 0
      %371 = vperm.xlu0 %370, %v302
      %v372 = vpop.permute.xlu0 %371
      %375 = vset.pattern.permute.xlu0 0
      %376 = vperm.xlu0 %375, %v303
      %v377 = vpop.permute.xlu0 %376
      %380 = vset.pattern.permute.xlu0 0
      %381 = vperm.xlu0 %380, %v304
      %v382 = vpop.permute.xlu0 %381
      %385 = vset.pattern.permute.xlu0 0
      %386 = vperm.xlu0 %385, %v305
      %v387 = vpop.permute.xlu0 %386
      %390 = vset.pattern.permute.xlu0 0
      %391 = vperm.xlu0 %390, %v306
      %v392 = vpop.permute.xlu0 %391
      %395 = vset.pattern.permute.xlu0 0
      %396 = vperm.xlu0 %395, %v307
      %v397 = vpop.permute.xlu0 %396
      %400 = vset.pattern.permute.xlu0 0
      %401 = vperm.xlu0 %400, %v308
      %v402 = vpop.permute.xlu0 %401
      %405 = vset.pattern.permute.xlu0 0
      %406 = vperm.xlu0 %405, %v309
      %v407 = vpop.permute.xlu0 %406
      %410 = vset.pattern.permute.xlu0 0
      %411 = vperm.xlu0 %410, %v310
      %v412 = vpop.permute.xlu0 %411
      %415 = vset.pattern.permute.xlu0 0
      %416 = vperm.xlu0 %415, %v311
      %v417 = vpop.permute.xlu0 %416
      %420 = vset.pattern.permute.xlu0 0
      %421 = vperm.xlu0 %420, %v312
      %v422 = vpop.permute.xlu0 %421
      %425 = vset.pattern.permute.xlu0 0
      %426 = vperm.xlu0 %425, %v313
      %v427 = vpop.permute.xlu0 %426
      %430 = vset.pattern.permute.xlu0 0
      %431 = vperm.xlu0 %430, %v314
      %v432 = vpop.permute.xlu0 %431
      %435 = vset.pattern.permute.xlu0 0
      %436 = vperm.xlu0 %435, %v315
      %v437 = vpop.permute.xlu0 %436
      %440 = vset.pattern.permute.xlu0 0
      %441 = vperm.xlu0 %440, %v316
      %v442 = vpop.permute.xlu0 %441
      %445 = vset.pattern.permute.xlu0 0
      %446 = vperm.xlu0 %445, %v317
      %v447 = vpop.permute.xlu0 %446
      %450 = vset.pattern.permute.xlu0 0
      %451 = vperm.xlu0 %450, %v318
      %v452 = vpop.permute.xlu0 %451
      %455 = vset.pattern.permute.xlu0 0
      %456 = vperm.xlu0 %455, %v319
      %v457 = vpop.permute.xlu0 %456
      %460 = vset.pattern.permute.xlu0 0
      %461 = vperm.xlu0 %460, %v320
      %v462 = vpop.permute.xlu0 %461
      %465 = vset.pattern.permute.xlu0 0
      %466 = vperm.xlu0 %465, %v321
      %v467 = vpop.permute.xlu0 %466
      %470 = vset.pattern.permute.xlu0 0
      %471 = vperm.xlu0 %470, %v322
      %v472 = vpop.permute.xlu0 %471
      %475 = vset.pattern.permute.xlu0 0
      %476 = vperm.xlu0 %475, %v323
      %v477 = vpop.permute.xlu0 %476
      %480 = vset.pattern.permute.xlu0 0
      %481 = vperm.xlu0 %480, %v324
      %v482 = vpop.permute.xlu0 %481
      %485 = vset.pattern.permute.xlu0 0
      %486 = vperm.xlu0 %485, %v325
      %v487 = vpop.permute.xlu0 %486
      %490 = vset.pattern.permute.xlu0 0
      %491 = vperm.xlu0 %490, %v326
      %v492 = vpop.permute.xlu0 %491
      %495 = vset.pattern.permute.xlu0 0
      %496 = vperm.xlu0 %495, %v327
      %v497 = vpop.permute.xlu0 %496
      %500 = vset.pattern.permute.xlu0 0
      %501 = vperm.xlu0 %500, %v328
      %v502 = vpop.permute.xlu0 %501
      %505 = vset.pattern.permute.xlu0 0
      %506 = vperm.xlu0 %505, %v329
      %v507 = vpop.permute.xlu0 %506
      %510 = vset.pattern.permute.xlu0 0
      %511 = vperm.xlu0 %510, %v330
      %v512 = vpop.permute.xlu0 %511
      %515 = vset.pattern.permute.xlu0 0
      %516 = vperm.xlu0 %515, %v331
      %v517 = vpop.permute.xlu0 %516
      %520 = vset.pattern.permute.xlu0 0
      %521 = vperm.xlu0 %520, %v332
      %v522 = vpop.permute.xlu0 %521
      %525 = vset.pattern.permute.xlu0 0
      %526 = vperm.xlu0 %525, %v333
      %v527 = vpop.permute.xlu0 %526
      %530 = vset.pattern.permute.xlu0 0
      %531 = vperm.xlu0 %530, %v334
      %v532 = vpop.permute.xlu0 %531
      %535 = vset.pattern.permute.xlu0 0
      %536 = vperm.xlu0 %535, %v335
      %v537 = vpop.permute.xlu0 %536
      %540 = vset.pattern.permute.xlu0 0
      %541 = vperm.xlu0 %540, %v336
      %v542 = vpop.permute.xlu0 %541
      %545 = vset.pattern.permute.xlu0 0
      %546 = vperm.xlu0 %545, %v337
      %v547 = vpop.permute.xlu0 %546
      %550 = vset.pattern.permute.xlu0 0
      %551 = vperm.xlu0 %550, %v338
      %v552 = vpop.permute.xlu0 %551
      %555 = vset.pattern.permute.xlu0 0
      %556 = vperm.xlu0 %555, %v339
      %v557 = vpop.permute.xlu0 %556
      %560 = vset.pattern.permute.xlu0 0
      %561 = vperm.xlu0 %560, %v340
      %v562 = vpop.permute.xlu0 %561
      %565 = vset.pattern.permute.xlu0 0
      %566 = vperm.xlu0 %565, %v341
      %v567 = vpop.permute.xlu0 %566
      %570 = vset.pattern.permute.xlu0 0
      %571 = vperm.xlu0 %570, %v342
      %v572 = vpop.permute.xlu0 %571
      %575 = vset.pattern.permute.xlu0 0
      %576 = vperm.xlu0 %575, %v343
      %v577 = vpop.permute.xlu0 %576
      %580 = vset.pattern.permute.xlu0 0
      %581 = vperm.xlu0 %580, %v344
      %v582 = vpop.permute.xlu0 %581
      %585 = vset.pattern.permute.xlu0 0
      %586 = vperm.xlu0 %585, %v345
      %v587 = vpop.permute.xlu0 %586
      %590 = vset.pattern.permute.xlu0 0
      %591 = vperm.xlu0 %590, %v346
      %v592 = vpop.permute.xlu0 %591
      %595 = vset.pattern.permute.xlu0 0
      %596 = vperm.xlu0 %595, %v347
      %v597 = vpop.permute.xlu0 %596
      %600 = vset.pattern.permute.xlu0 0
      %601 = vperm.xlu0 %600, %v348
      %v602 = vpop.permute.xlu0 %601
      %605 = vset.pattern.permute.xlu0 0
      %606 = vperm.xlu0 %605, %v349
      %v607 = vpop.permute.xlu0 %606
      %610 = vset.pattern.permute.xlu0 0
      %611 = vperm.xlu0 %610, %v350
      %v612 = vpop.permute.xlu0 %611
      %615 = vset.pattern.permute.xlu0 0
      %616 = vperm.xlu0 %615, %v351
      %v617 = vpop.permute.xlu0 %616
      %620 = vset.pattern.permute.xlu0 0
      %621 = vperm.xlu0 %620, %v352
      %v622 = vpop.permute.xlu0 %621
      %625 = vset.pattern.permute.xlu0 0
      %626 = vperm.xlu0 %625, %v353
      %v627 = vpop.permute.xlu0 %626
      %630 = vset.pattern.permute.xlu0 0
      %631 = vperm.xlu0 %630, %v354
      %v632 = vpop.permute.xlu0 %631
      %635 = vset.pattern.permute.xlu0 0
      %636 = vperm.xlu0 %635, %v355
      %v637 = vpop.permute.xlu0 %636
      %640 = vset.pattern.permute.xlu0 0
      %641 = vperm.xlu0 %640, %v356
      %v642 = vpop.permute.xlu0 %641
      %645 = vset.pattern.permute.xlu0 0
      %646 = vperm.xlu0 %645, %v357
      %v647 = vpop.permute.xlu0 %646
      %650 = vset.pattern.permute.xlu0 0
      %651 = vperm.xlu0 %650, %v358
      %v652 = vpop.permute.xlu0 %651
      %655 = vset.pattern.permute.xlu0 0
      %656 = vperm.xlu0 %655, %v359
      %v657 = vpop.permute.xlu0 %656
      %660 = vset.pattern.permute.xlu0 0
      %661 = vperm.xlu0 %660, %v360
      %v662 = vpop.permute.xlu0 %661
      %665 = vset.pattern.permute.xlu0 0
      %666 = vperm.xlu0 %665, %v361
      %v667 = vpop.permute.xlu0 %666
      %670 = vset.pattern.permute.xlu0 0
      %671 = vperm.xlu0 %670, %v362
      %v672 = vpop.permute.xlu0 %671
      %675 = vset.pattern.permute.xlu0 0
      %676 = vperm.xlu0 %675, %v363
      %v677 = vpop.permute.xlu0 %676
      %680 = vset.pattern.permute.xlu0 0
      %681 = vperm.xlu0 %680, %v364
      %v682 = vpop.permute.xlu0 %681
      %685 = vset.pattern.permute.xlu0 0
      %686 = vperm.xlu0 %685, %v365
      %v687 = vpop.permute.xlu0 %686
      %v689 = vsub.f32 %v372, %v368
      %v690 = vsub.f32 %v377, %v368
      %v691 = vsub.f32 %v382, %v368
      %v692 = vsub.f32 %v387, %v368
      %v693 = vsub.f32 %v392, %v368
      %v694 = vsub.f32 %v397, %v368
      %v695 = vsub.f32 %v402, %v368
      %v696 = vsub.f32 %v407, %v368
      %v697 = vsub.f32 %v412, %v368
      %v698 = vsub.f32 %v417, %v368
      %v699 = vsub.f32 %v422, %v368
      %v700 = vsub.f32 %v427, %v368
      %v701 = vsub.f32 %v432, %v368
      %v702 = vsub.f32 %v437, %v368
      %v703 = vsub.f32 %v442, %v368
      %v704 = vsub.f32 %v447, %v368
      %v705 = vsub.f32 %v452, %v368
      %v706 = vsub.f32 %v457, %v368
      %v707 = vsub.f32 %v462, %v368
      %v708 = vsub.f32 %v467, %v368
      %v709 = vsub.f32 %v472, %v368
      %v710 = vsub.f32 %v477, %v368
      %v711 = vsub.f32 %v482, %v368
      %v712 = vsub.f32 %v487, %v368
      %v713 = vsub.f32 %v492, %v368
      %v714 = vsub.f32 %v497, %v368
      %v715 = vsub.f32 %v502, %v368
      %v716 = vsub.f32 %v507, %v368
      %v717 = vsub.f32 %v512, %v368
      %v718 = vsub.f32 %v517, %v368
      %v719 = vsub.f32 %v522, %v368
      %v720 = vsub.f32 %v527, %v368
      %v721 = vsub.f32 %v532, %v368
      %v722 = vsub.f32 %v537, %v368
      %v723 = vsub.f32 %v542, %v368
      %v724 = vsub.f32 %v547, %v368
      %v725 = vsub.f32 %v552, %v368
      %v726 = vsub.f32 %v557, %v368
      %v727 = vsub.f32 %v562, %v368
      %v728 = vsub.f32 %v567, %v368
      %v729 = vsub.f32 %v572, %v368
      %v730 = vsub.f32 %v577, %v368
      %v731 = vsub.f32 %v582, %v368
      %v732 = vsub.f32 %v587, %v368
      %v733 = vsub.f32 %v592, %v368
      %v734 = vsub.f32 %v597, %v368
      %v735 = vsub.f32 %v602, %v368
      %v736 = vsub.f32 %v607, %v368
      %v737 = vsub.f32 %v612, %v368
      %v738 = vsub.f32 %v617, %v368
      %v739 = vsub.f32 %v622, %v368
      %v740 = vsub.f32 %v627, %v368
      %v741 = vsub.f32 %v632, %v368
      %v742 = vsub.f32 %v637, %v368
      %v743 = vsub.f32 %v642, %v368
      %v744 = vsub.f32 %v647, %v368
      %v745 = vsub.f32 %v652, %v368
      %v746 = vsub.f32 %v657, %v368
      %v747 = vsub.f32 %v662, %v368
      %v748 = vsub.f32 %v667, %v368
      %v749 = vsub.f32 %v672, %v368
      %v750 = vsub.f32 %v677, %v368
      %v751 = vsub.f32 %v682, %v368
      %v752 = vsub.f32 %v687, %v368
      %v753 = vand.u32 2147483647, %v689
      %v754 = vand.u32 2147483647, %v690
      %v755 = vand.u32 2147483647, %v691
      %v756 = vand.u32 2147483647, %v692
      %v757 = vand.u32 2147483647, %v693
      %v758 = vand.u32 2147483647, %v694
      %v759 = vand.u32 2147483647, %v695
      %v760 = vand.u32 2147483647, %v696
      %v761 = vand.u32 2147483647, %v697
      %v762 = vand.u32 2147483647, %v698
      %v763 = vand.u32 2147483647, %v699
      %v764 = vand.u32 2147483647, %v700
      %v765 = vand.u32 2147483647, %v701
      %v766 = vand.u32 2147483647, %v702
      %v767 = vand.u32 2147483647, %v703
      %v768 = vand.u32 2147483647, %v704
      %v769 = vand.u32 2147483647, %v705
      %v770 = vand.u32 2147483647, %v706
      %v771 = vand.u32 2147483647, %v707
      %v772 = vand.u32 2147483647, %v708
      %v773 = vand.u32 2147483647, %v709
      %v774 = vand.u32 2147483647, %v710
      %v775 = vand.u32 2147483647, %v711
      %v776 = vand.u32 2147483647, %v712
      %v777 = vand.u32 2147483647, %v713
      %v778 = vand.u32 2147483647, %v714
      %v779 = vand.u32 2147483647, %v715
      %v780 = vand.u32 2147483647, %v716
      %v781 = vand.u32 2147483647, %v717
      %v782 = vand.u32 2147483647, %v718
      %v783 = vand.u32 2147483647, %v719
      %v784 = vand.u32 2147483647, %v720
      %v785 = vand.u32 2147483647, %v721
      %v786 = vand.u32 2147483647, %v722
      %v787 = vand.u32 2147483647, %v723
      %v788 = vand.u32 2147483647, %v724
      %v789 = vand.u32 2147483647, %v725
      %v790 = vand.u32 2147483647, %v726
      %v791 = vand.u32 2147483647, %v727
      %v792 = vand.u32 2147483647, %v728
      %v793 = vand.u32 2147483647, %v729
      %v794 = vand.u32 2147483647, %v730
      %v795 = vand.u32 2147483647, %v731
      %v796 = vand.u32 2147483647, %v732
      %v797 = vand.u32 2147483647, %v733
      %v798 = vand.u32 2147483647, %v734
      %v799 = vand.u32 2147483647, %v735
      %v800 = vand.u32 2147483647, %v736
      %v801 = vand.u32 2147483647, %v737
      %v802 = vand.u32 2147483647, %v738
      %v803 = vand.u32 2147483647, %v739
      %v804 = vand.u32 2147483647, %v740
      %v805 = vand.u32 2147483647, %v741
      %v806 = vand.u32 2147483647, %v742
      %v807 = vand.u32 2147483647, %v743
      %v808 = vand.u32 2147483647, %v744
      %v809 = vand.u32 2147483647, %v745
      %v810 = vand.u32 2147483647, %v746
      %v811 = vand.u32 2147483647, %v747
      %v812 = vand.u32 2147483647, %v748
      %v813 = vand.u32 2147483647, %v749
      %v814 = vand.u32 2147483647, %v750
      %v815 = vand.u32 2147483647, %v751
      %v816 = vand.u32 2147483647, %v752
      %vm817 = vcmp.lt.f32.partialorder %v753, 0.5
      %vm818 = vcmp.lt.f32.partialorder %v754, 0.5
      %vm819 = vcmp.lt.f32.partialorder %v755, 0.5
      %vm820 = vcmp.lt.f32.partialorder %v756, 0.5
      %vm821 = vcmp.lt.f32.partialorder %v757, 0.5
      %vm822 = vcmp.lt.f32.partialorder %v758, 0.5
      %vm823 = vcmp.lt.f32.partialorder %v759, 0.5
      %vm824 = vcmp.lt.f32.partialorder %v760, 0.5
      %vm825 = vcmp.lt.f32.partialorder %v761, 0.5
      %vm826 = vcmp.lt.f32.partialorder %v762, 0.5
      %vm827 = vcmp.lt.f32.partialorder %v763, 0.5
      %vm828 = vcmp.lt.f32.partialorder %v764, 0.5
      %vm829 = vcmp.lt.f32.partialorder %v765, 0.5
      %vm830 = vcmp.lt.f32.partialorder %v766, 0.5
      %vm831 = vcmp.lt.f32.partialorder %v767, 0.5
      %vm832 = vcmp.lt.f32.partialorder %v768, 0.5
      %vm833 = vcmp.lt.f32.partialorder %v769, 0.5
      %vm834 = vcmp.lt.f32.partialorder %v770, 0.5
      %vm835 = vcmp.lt.f32.partialorder %v771, 0.5
      %vm836 = vcmp.lt.f32.partialorder %v772, 0.5
      %vm837 = vcmp.lt.f32.partialorder %v773, 0.5
      %vm838 = vcmp.lt.f32.partialorder %v774, 0.5
      %vm839 = vcmp.lt.f32.partialorder %v775, 0.5
      %vm840 = vcmp.lt.f32.partialorder %v776, 0.5
      %vm841 = vcmp.lt.f32.partialorder %v777, 0.5
      %vm842 = vcmp.lt.f32.partialorder %v778, 0.5
      %vm843 = vcmp.lt.f32.partialorder %v779, 0.5
      %vm844 = vcmp.lt.f32.partialorder %v780, 0.5
      %vm845 = vcmp.lt.f32.partialorder %v781, 0.5
      %vm846 = vcmp.lt.f32.partialorder %v782, 0.5
      %vm847 = vcmp.lt.f32.partialorder %v783, 0.5
      %vm848 = vcmp.lt.f32.partialorder %v784, 0.5
      %vm849 = vcmp.lt.f32.partialorder %v785, 0.5
      %vm850 = vcmp.lt.f32.partialorder %v786, 0.5
      %vm851 = vcmp.lt.f32.partialorder %v787, 0.5
      %vm852 = vcmp.lt.f32.partialorder %v788, 0.5
      %vm853 = vcmp.lt.f32.partialorder %v789, 0.5
      %vm854 = vcmp.lt.f32.partialorder %v790, 0.5
      %vm855 = vcmp.lt.f32.partialorder %v791, 0.5
      %vm856 = vcmp.lt.f32.partialorder %v792, 0.5
      %vm857 = vcmp.lt.f32.partialorder %v793, 0.5
      %vm858 = vcmp.lt.f32.partialorder %v794, 0.5
      %vm859 = vcmp.lt.f32.partialorder %v795, 0.5
      %vm860 = vcmp.lt.f32.partialorder %v796, 0.5
      %vm861 = vcmp.lt.f32.partialorder %v797, 0.5
      %vm862 = vcmp.lt.f32.partialorder %v798, 0.5
      %vm863 = vcmp.lt.f32.partialorder %v799, 0.5
      %vm864 = vcmp.lt.f32.partialorder %v800, 0.5
      %vm865 = vcmp.lt.f32.partialorder %v801, 0.5
      %vm866 = vcmp.lt.f32.partialorder %v802, 0.5
      %vm867 = vcmp.lt.f32.partialorder %v803, 0.5
      %vm868 = vcmp.lt.f32.partialorder %v804, 0.5
      %vm869 = vcmp.lt.f32.partialorder %v805, 0.5
      %vm870 = vcmp.lt.f32.partialorder %v806, 0.5
      %vm871 = vcmp.lt.f32.partialorder %v807, 0.5
      %vm872 = vcmp.lt.f32.partialorder %v808, 0.5
      %vm873 = vcmp.lt.f32.partialorder %v809, 0.5
      %vm874 = vcmp.lt.f32.partialorder %v810, 0.5
      %vm875 = vcmp.lt.f32.partialorder %v811, 0.5
      %vm876 = vcmp.lt.f32.partialorder %v812, 0.5
      %vm877 = vcmp.lt.f32.partialorder %v813, 0.5
      %vm878 = vcmp.lt.f32.partialorder %v814, 0.5
      %vm879 = vcmp.lt.f32.partialorder %v815, 0.5
      %vm880 = vcmp.lt.f32.partialorder %v816, 0.5
      %v881 = vmul.f32 %v689, %v689
      %v882 = vmul.f32 %v690, %v690
      %v883 = vmul.f32 %v691, %v691
      %v884 = vmul.f32 %v692, %v692
      %v885 = vmul.f32 %v693, %v693
      %v886 = vmul.f32 %v694, %v694
      %v887 = vmul.f32 %v695, %v695
      %v888 = vmul.f32 %v696, %v696
      %v889 = vmul.f32 %v697, %v697
      %v890 = vmul.f32 %v698, %v698
      %v891 = vmul.f32 %v699, %v699
      %v892 = vmul.f32 %v700, %v700
      %v893 = vmul.f32 %v701, %v701
      %v894 = vmul.f32 %v702, %v702
      %v895 = vmul.f32 %v703, %v703
      %v896 = vmul.f32 %v704, %v704
      %v897 = vmul.f32 %v705, %v705
      %v898 = vmul.f32 %v706, %v706
      %v899 = vmul.f32 %v707, %v707
      %v900 = vmul.f32 %v708, %v708
      %v901 = vmul.f32 %v709, %v709
      %v902 = vmul.f32 %v710, %v710
      %v903 = vmul.f32 %v711, %v711
      %v904 = vmul.f32 %v712, %v712
      %v905 = vmul.f32 %v713, %v713
      %v906 = vmul.f32 %v714, %v714
      %v907 = vmul.f32 %v715, %v715
      %v908 = vmul.f32 %v716, %v716
      %v909 = vmul.f32 %v717, %v717
      %v910 = vmul.f32 %v718, %v718
      %v911 = vmul.f32 %v719, %v719
      %v912 = vmul.f32 %v720, %v720
      %v913 = vmul.f32 %v721, %v721
      %v914 = vmul.f32 %v722, %v722
      %v915 = vmul.f32 %v723, %v723
      %v916 = vmul.f32 %v724, %v724
      %v917 = vmul.f32 %v725, %v725
      %v918 = vmul.f32 %v726, %v726
      %v919 = vmul.f32 %v727, %v727
      %v920 = vmul.f32 %v728, %v728
      %v921 = vmul.f32 %v729, %v729
      %v922 = vmul.f32 %v730, %v730
      %v923 = vmul.f32 %v731, %v731
      %v924 = vmul.f32 %v732, %v732
      %v925 = vmul.f32 %v733, %v733
      %v926 = vmul.f32 %v734, %v734
      %v927 = vmul.f32 %v735, %v735
      %v928 = vmul.f32 %v736, %v736
      %v929 = vmul.f32 %v737, %v737
      %v930 = vmul.f32 %v738, %v738
      %v931 = vmul.f32 %v739, %v739
      %v932 = vmul.f32 %v740, %v740
      %v933 = vmul.f32 %v741, %v741
      %v934 = vmul.f32 %v742, %v742
      %v935 = vmul.f32 %v743, %v743
      %v936 = vmul.f32 %v744, %v744
      %v937 = vmul.f32 %v745, %v745
      %v938 = vmul.f32 %v746, %v746
      %v939 = vmul.f32 %v747, %v747
      %v940 = vmul.f32 %v748, %v748
      %v941 = vmul.f32 %v749, %v749
      %v942 = vmul.f32 %v750, %v750
      %v943 = vmul.f32 %v751, %v751
      %v944 = vmul.f32 %v752, %v752
      %v945 = vsub.f32 0.75, %v881
      %v946 = vsub.f32 0.75, %v882
      %v947 = vsub.f32 0.75, %v883
      %v948 = vsub.f32 0.75, %v884
      %v949 = vsub.f32 0.75, %v885
      %v950 = vsub.f32 0.75, %v886
      %v951 = vsub.f32 0.75, %v887
      %v952 = vsub.f32 0.75, %v888
      %v953 = vsub.f32 0.75, %v889
      %v954 = vsub.f32 0.75, %v890
      %v955 = vsub.f32 0.75, %v891
      %v956 = vsub.f32 0.75, %v892
      %v957 = vsub.f32 0.75, %v893
      %v958 = vsub.f32 0.75, %v894
      %v959 = vsub.f32 0.75, %v895
      %v960 = vsub.f32 0.75, %v896
      %v961 = vsub.f32 0.75, %v897
      %v962 = vsub.f32 0.75, %v898
      %v963 = vsub.f32 0.75, %v899
      %v964 = vsub.f32 0.75, %v900
      %v965 = vsub.f32 0.75, %v901
      %v966 = vsub.f32 0.75, %v902
      %v967 = vsub.f32 0.75, %v903
      %v968 = vsub.f32 0.75, %v904
      %v969 = vsub.f32 0.75, %v905
      %v970 = vsub.f32 0.75, %v906
      %v971 = vsub.f32 0.75, %v907
      %v972 = vsub.f32 0.75, %v908
      %v973 = vsub.f32 0.75, %v909
      %v974 = vsub.f32 0.75, %v910
      %v975 = vsub.f32 0.75, %v911
      %v976 = vsub.f32 0.75, %v912
      %v977 = vsub.f32 0.75, %v913
      %v978 = vsub.f32 0.75, %v914
      %v979 = vsub.f32 0.75, %v915
      %v980 = vsub.f32 0.75, %v916
      %v981 = vsub.f32 0.75, %v917
      %v982 = vsub.f32 0.75, %v918
      %v983 = vsub.f32 0.75, %v919
      %v984 = vsub.f32 0.75, %v920
      %v985 = vsub.f32 0.75, %v921
      %v986 = vsub.f32 0.75, %v922
      %v987 = vsub.f32 0.75, %v923
      %v988 = vsub.f32 0.75, %v924
      %v989 = vsub.f32 0.75, %v925
      %v990 = vsub.f32 0.75, %v926
      %v991 = vsub.f32 0.75, %v927
      %v992 = vsub.f32 0.75, %v928
      %v993 = vsub.f32 0.75, %v929
      %v994 = vsub.f32 0.75, %v930
      %v995 = vsub.f32 0.75, %v931
      %v996 = vsub.f32 0.75, %v932
      %v997 = vsub.f32 0.75, %v933
      %v998 = vsub.f32 0.75, %v934
      %v999 = vsub.f32 0.75, %v935
      %v1000 = vsub.f32 0.75, %v936
      %v1001 = vsub.f32 0.75, %v937
      %v1002 = vsub.f32 0.75, %v938
      %v1003 = vsub.f32 0.75, %v939
      %v1004 = vsub.f32 0.75, %v940
      %v1005 = vsub.f32 0.75, %v941
      %v1006 = vsub.f32 0.75, %v942
      %v1007 = vsub.f32 0.75, %v943
      %v1008 = vsub.f32 0.75, %v944
      %vm1009 = vcmp.lt.f32.partialorder %v753, 1.5
      %vm1010 = vcmp.lt.f32.partialorder %v754, 1.5
      %vm1011 = vcmp.lt.f32.partialorder %v755, 1.5
      %vm1012 = vcmp.lt.f32.partialorder %v756, 1.5
      %vm1013 = vcmp.lt.f32.partialorder %v757, 1.5
      %vm1014 = vcmp.lt.f32.partialorder %v758, 1.5
      %vm1015 = vcmp.lt.f32.partialorder %v759, 1.5
      %vm1016 = vcmp.lt.f32.partialorder %v760, 1.5
      %vm1017 = vcmp.lt.f32.partialorder %v761, 1.5
      %vm1018 = vcmp.lt.f32.partialorder %v762, 1.5
      %vm1019 = vcmp.lt.f32.partialorder %v763, 1.5
      %vm1020 = vcmp.lt.f32.partialorder %v764, 1.5
      %vm1021 = vcmp.lt.f32.partialorder %v765, 1.5
      %vm1022 = vcmp.lt.f32.partialorder %v766, 1.5
      %vm1023 = vcmp.lt.f32.partialorder %v767, 1.5
      %vm1024 = vcmp.lt.f32.partialorder %v768, 1.5
      %vm1025 = vcmp.lt.f32.partialorder %v769, 1.5
      %vm1026 = vcmp.lt.f32.partialorder %v770, 1.5
      %vm1027 = vcmp.lt.f32.partialorder %v771, 1.5
      %vm1028 = vcmp.lt.f32.partialorder %v772, 1.5
      %vm1029 = vcmp.lt.f32.partialorder %v773, 1.5
      %vm1030 = vcmp.lt.f32.partialorder %v774, 1.5
      %vm1031 = vcmp.lt.f32.partialorder %v775, 1.5
      %vm1032 = vcmp.lt.f32.partialorder %v776, 1.5
      %vm1033 = vcmp.lt.f32.partialorder %v777, 1.5
      %vm1034 = vcmp.lt.f32.partialorder %v778, 1.5
      %vm1035 = vcmp.lt.f32.partialorder %v779, 1.5
      %vm1036 = vcmp.lt.f32.partialorder %v780, 1.5
      %vm1037 = vcmp.lt.f32.partialorder %v781, 1.5
      %vm1038 = vcmp.lt.f32.partialorder %v782, 1.5
      %vm1039 = vcmp.lt.f32.partialorder %v783, 1.5
      %vm1040 = vcmp.lt.f32.partialorder %v784, 1.5
      %vm1041 = vcmp.lt.f32.partialorder %v785, 1.5
      %vm1042 = vcmp.lt.f32.partialorder %v786, 1.5
      %vm1043 = vcmp.lt.f32.partialorder %v787, 1.5
      %vm1044 = vcmp.lt.f32.partialorder %v788, 1.5
      %vm1045 = vcmp.lt.f32.partialorder %v789, 1.5
      %vm1046 = vcmp.lt.f32.partialorder %v790, 1.5
      %vm1047 = vcmp.lt.f32.partialorder %v791, 1.5
      %vm1048 = vcmp.lt.f32.partialorder %v792, 1.5
      %vm1049 = vcmp.lt.f32.partialorder %v793, 1.5
      %vm1050 = vcmp.lt.f32.partialorder %v794, 1.5
      %vm1051 = vcmp.lt.f32.partialorder %v795, 1.5
      %vm1052 = vcmp.lt.f32.partialorder %v796, 1.5
      %vm1053 = vcmp.lt.f32.partialorder %v797, 1.5
      %vm1054 = vcmp.lt.f32.partialorder %v798, 1.5
      %vm1055 = vcmp.lt.f32.partialorder %v799, 1.5
      %vm1056 = vcmp.lt.f32.partialorder %v800, 1.5
      %vm1057 = vcmp.lt.f32.partialorder %v801, 1.5
      %vm1058 = vcmp.lt.f32.partialorder %v802, 1.5
      %vm1059 = vcmp.lt.f32.partialorder %v803, 1.5
      %vm1060 = vcmp.lt.f32.partialorder %v804, 1.5
      %vm1061 = vcmp.lt.f32.partialorder %v805, 1.5
      %vm1062 = vcmp.lt.f32.partialorder %v806, 1.5
      %vm1063 = vcmp.lt.f32.partialorder %v807, 1.5
      %vm1064 = vcmp.lt.f32.partialorder %v808, 1.5
      %vm1065 = vcmp.lt.f32.partialorder %v809, 1.5
      %vm1066 = vcmp.lt.f32.partialorder %v810, 1.5
      %vm1067 = vcmp.lt.f32.partialorder %v811, 1.5
      %vm1068 = vcmp.lt.f32.partialorder %v812, 1.5
      %vm1069 = vcmp.lt.f32.partialorder %v813, 1.5
      %vm1070 = vcmp.lt.f32.partialorder %v814, 1.5
      %vm1071 = vcmp.lt.f32.partialorder %v815, 1.5
      %vm1072 = vcmp.lt.f32.partialorder %v816, 1.5
      %v1073 = vsub.f32 1.5, %v753
      %v1074 = vsub.f32 1.5, %v754
      %v1075 = vsub.f32 1.5, %v755
      %v1076 = vsub.f32 1.5, %v756
      %v1077 = vsub.f32 1.5, %v757
      %v1078 = vsub.f32 1.5, %v758
      %v1079 = vsub.f32 1.5, %v759
      %v1080 = vsub.f32 1.5, %v760
      %v1081 = vsub.f32 1.5, %v761
      %v1082 = vsub.f32 1.5, %v762
      %v1083 = vsub.f32 1.5, %v763
      %v1084 = vsub.f32 1.5, %v764
      %v1085 = vsub.f32 1.5, %v765
      %v1086 = vsub.f32 1.5, %v766
      %v1087 = vsub.f32 1.5, %v767
      %v1088 = vsub.f32 1.5, %v768
      %v1089 = vsub.f32 1.5, %v769
      %v1090 = vsub.f32 1.5, %v770
      %v1091 = vsub.f32 1.5, %v771
      %v1092 = vsub.f32 1.5, %v772
      %v1093 = vsub.f32 1.5, %v773
      %v1094 = vsub.f32 1.5, %v774
      %v1095 = vsub.f32 1.5, %v775
      %v1096 = vsub.f32 1.5, %v776
      %v1097 = vsub.f32 1.5, %v777
      %v1098 = vsub.f32 1.5, %v778
      %v1099 = vsub.f32 1.5, %v779
      %v1100 = vsub.f32 1.5, %v780
      %v1101 = vsub.f32 1.5, %v781
      %v1102 = vsub.f32 1.5, %v782
      %v1103 = vsub.f32 1.5, %v783
      %v1104 = vsub.f32 1.5, %v784
      %v1105 = vsub.f32 1.5, %v785
      %v1106 = vsub.f32 1.5, %v786
      %v1107 = vsub.f32 1.5, %v787
      %v1108 = vsub.f32 1.5, %v788
      %v1109 = vsub.f32 1.5, %v789
      %v1110 = vsub.f32 1.5, %v790
      %v1111 = vsub.f32 1.5, %v791
      %v1112 = vsub.f32 1.5, %v792
      %v1113 = vsub.f32 1.5, %v793
      %v1114 = vsub.f32 1.5, %v794
      %v1115 = vsub.f32 1.5, %v795
      %v1116 = vsub.f32 1.5, %v796
      %v1117 = vsub.f32 1.5, %v797
      %v1118 = vsub.f32 1.5, %v798
      %v1119 = vsub.f32 1.5, %v799
      %v1120 = vsub.f32 1.5, %v800
      %v1121 = vsub.f32 1.5, %v801
      %v1122 = vsub.f32 1.5, %v802
      %v1123 = vsub.f32 1.5, %v803
      %v1124 = vsub.f32 1.5, %v804
      %v1125 = vsub.f32 1.5, %v805
      %v1126 = vsub.f32 1.5, %v806
      %v1127 = vsub.f32 1.5, %v807
      %v1128 = vsub.f32 1.5, %v808
      %v1129 = vsub.f32 1.5, %v809
      %v1130 = vsub.f32 1.5, %v810
      %v1131 = vsub.f32 1.5, %v811
      %v1132 = vsub.f32 1.5, %v812
      %v1133 = vsub.f32 1.5, %v813
      %v1134 = vsub.f32 1.5, %v814
      %v1135 = vsub.f32 1.5, %v815
      %v1136 = vsub.f32 1.5, %v816
      %v1137 = vmul.f32 %v1073, 0.5
      %v1138 = vmul.f32 %v1074, 0.5
      %v1139 = vmul.f32 %v1075, 0.5
      %v1140 = vmul.f32 %v1076, 0.5
      %v1141 = vmul.f32 %v1077, 0.5
      %v1142 = vmul.f32 %v1078, 0.5
      %v1143 = vmul.f32 %v1079, 0.5
      %v1144 = vmul.f32 %v1080, 0.5
      %v1145 = vmul.f32 %v1081, 0.5
      %v1146 = vmul.f32 %v1082, 0.5
      %v1147 = vmul.f32 %v1083, 0.5
      %v1148 = vmul.f32 %v1084, 0.5
      %v1149 = vmul.f32 %v1085, 0.5
      %v1150 = vmul.f32 %v1086, 0.5
      %v1151 = vmul.f32 %v1087, 0.5
      %v1152 = vmul.f32 %v1088, 0.5
      %v1153 = vmul.f32 %v1089, 0.5
      %v1154 = vmul.f32 %v1090, 0.5
      %v1155 = vmul.f32 %v1091, 0.5
      %v1156 = vmul.f32 %v1092, 0.5
      %v1157 = vmul.f32 %v1093, 0.5
      %v1158 = vmul.f32 %v1094, 0.5
      %v1159 = vmul.f32 %v1095, 0.5
      %v1160 = vmul.f32 %v1096, 0.5
      %v1161 = vmul.f32 %v1097, 0.5
      %v1162 = vmul.f32 %v1098, 0.5
      %v1163 = vmul.f32 %v1099, 0.5
      %v1164 = vmul.f32 %v1100, 0.5
      %v1165 = vmul.f32 %v1101, 0.5
      %v1166 = vmul.f32 %v1102, 0.5
      %v1167 = vmul.f32 %v1103, 0.5
      %v1168 = vmul.f32 %v1104, 0.5
      %v1169 = vmul.f32 %v1105, 0.5
      %v1170 = vmul.f32 %v1106, 0.5
      %v1171 = vmul.f32 %v1107, 0.5
      %v1172 = vmul.f32 %v1108, 0.5
      %v1173 = vmul.f32 %v1109, 0.5
      %v1174 = vmul.f32 %v1110, 0.5
      %v1175 = vmul.f32 %v1111, 0.5
      %v1176 = vmul.f32 %v1112, 0.5
      %v1177 = vmul.f32 %v1113, 0.5
      %v1178 = vmul.f32 %v1114, 0.5
      %v1179 = vmul.f32 %v1115, 0.5
      %v1180 = vmul.f32 %v1116, 0.5
      %v1181 = vmul.f32 %v1117, 0.5
      %v1182 = vmul.f32 %v1118, 0.5
      %v1183 = vmul.f32 %v1119, 0.5
      %v1184 = vmul.f32 %v1120, 0.5
      %v1185 = vmul.f32 %v1121, 0.5
      %v1186 = vmul.f32 %v1122, 0.5
      %v1187 = vmul.f32 %v1123, 0.5
      %v1188 = vmul.f32 %v1124, 0.5
      %v1189 = vmul.f32 %v1125, 0.5
      %v1190 = vmul.f32 %v1126, 0.5
      %v1191 = vmul.f32 %v1127, 0.5
      %v1192 = vmul.f32 %v1128, 0.5
      %v1193 = vmul.f32 %v1129, 0.5
      %v1194 = vmul.f32 %v1130, 0.5
      %v1195 = vmul.f32 %v1131, 0.5
      %v1196 = vmul.f32 %v1132, 0.5
      %v1197 = vmul.f32 %v1133, 0.5
      %v1198 = vmul.f32 %v1134, 0.5
      %v1199 = vmul.f32 %v1135, 0.5
      %v1200 = vmul.f32 %v1136, 0.5
      %v1201 = vmul.f32 %v1137, %v1073
      %v1202 = vmul.f32 %v1138, %v1074
      %v1203 = vmul.f32 %v1139, %v1075
      %v1204 = vmul.f32 %v1140, %v1076
      %v1205 = vmul.f32 %v1141, %v1077
      %v1206 = vmul.f32 %v1142, %v1078
      %v1207 = vmul.f32 %v1143, %v1079
      %v1208 = vmul.f32 %v1144, %v1080
      %v1209 = vmul.f32 %v1145, %v1081
      %v1210 = vmul.f32 %v1146, %v1082
      %v1211 = vmul.f32 %v1147, %v1083
      %v1212 = vmul.f32 %v1148, %v1084
      %v1213 = vmul.f32 %v1149, %v1085
      %v1214 = vmul.f32 %v1150, %v1086
      %v1215 = vmul.f32 %v1151, %v1087
      %v1216 = vmul.f32 %v1152, %v1088
      %v1217 = vmul.f32 %v1153, %v1089
      %v1218 = vmul.f32 %v1154, %v1090
      %v1219 = vmul.f32 %v1155, %v1091
      %v1220 = vmul.f32 %v1156, %v1092
      %v1221 = vmul.f32 %v1157, %v1093
      %v1222 = vmul.f32 %v1158, %v1094
      %v1223 = vmul.f32 %v1159, %v1095
      %v1224 = vmul.f32 %v1160, %v1096
      %v1225 = vmul.f32 %v1161, %v1097
      %v1226 = vmul.f32 %v1162, %v1098
      %v1227 = vmul.f32 %v1163, %v1099
      %v1228 = vmul.f32 %v1164, %v1100
      %v1229 = vmul.f32 %v1165, %v1101
      %v1230 = vmul.f32 %v1166, %v1102
      %v1231 = vmul.f32 %v1167, %v1103
      %v1232 = vmul.f32 %v1168, %v1104
      %v1233 = vmul.f32 %v1169, %v1105
      %v1234 = vmul.f32 %v1170, %v1106
      %v1235 = vmul.f32 %v1171, %v1107
      %v1236 = vmul.f32 %v1172, %v1108
      %v1237 = vmul.f32 %v1173, %v1109
      %v1238 = vmul.f32 %v1174, %v1110
      %v1239 = vmul.f32 %v1175, %v1111
      %v1240 = vmul.f32 %v1176, %v1112
      %v1241 = vmul.f32 %v1177, %v1113
      %v1242 = vmul.f32 %v1178, %v1114
      %v1243 = vmul.f32 %v1179, %v1115
      %v1244 = vmul.f32 %v1180, %v1116
      %v1245 = vmul.f32 %v1181, %v1117
      %v1246 = vmul.f32 %v1182, %v1118
      %v1247 = vmul.f32 %v1183, %v1119
      %v1248 = vmul.f32 %v1184, %v1120
      %v1249 = vmul.f32 %v1185, %v1121
      %v1250 = vmul.f32 %v1186, %v1122
      %v1251 = vmul.f32 %v1187, %v1123
      %v1252 = vmul.f32 %v1188, %v1124
      %v1253 = vmul.f32 %v1189, %v1125
      %v1254 = vmul.f32 %v1190, %v1126
      %v1255 = vmul.f32 %v1191, %v1127
      %v1256 = vmul.f32 %v1192, %v1128
      %v1257 = vmul.f32 %v1193, %v1129
      %v1258 = vmul.f32 %v1194, %v1130
      %v1259 = vmul.f32 %v1195, %v1131
      %v1260 = vmul.f32 %v1196, %v1132
      %v1261 = vmul.f32 %v1197, %v1133
      %v1262 = vmul.f32 %v1198, %v1134
      %v1263 = vmul.f32 %v1199, %v1135
      %v1264 = vmul.f32 %v1200, %v1136
      %v1265 = vsel %vm1009, %v1201, 0.0
      %v1266 = vsel %vm1010, %v1202, 0.0
      %v1267 = vsel %vm1011, %v1203, 0.0
      %v1268 = vsel %vm1012, %v1204, 0.0
      %v1269 = vsel %vm1013, %v1205, 0.0
      %v1270 = vsel %vm1014, %v1206, 0.0
      %v1271 = vsel %vm1015, %v1207, 0.0
      %v1272 = vsel %vm1016, %v1208, 0.0
      %v1273 = vsel %vm1017, %v1209, 0.0
      %v1274 = vsel %vm1018, %v1210, 0.0
      %v1275 = vsel %vm1019, %v1211, 0.0
      %v1276 = vsel %vm1020, %v1212, 0.0
      %v1277 = vsel %vm1021, %v1213, 0.0
      %v1278 = vsel %vm1022, %v1214, 0.0
      %v1279 = vsel %vm1023, %v1215, 0.0
      %v1280 = vsel %vm1024, %v1216, 0.0
      %v1281 = vsel %vm1025, %v1217, 0.0
      %v1282 = vsel %vm1026, %v1218, 0.0
      %v1283 = vsel %vm1027, %v1219, 0.0
      %v1284 = vsel %vm1028, %v1220, 0.0
      %v1285 = vsel %vm1029, %v1221, 0.0
      %v1286 = vsel %vm1030, %v1222, 0.0
      %v1287 = vsel %vm1031, %v1223, 0.0
      %v1288 = vsel %vm1032, %v1224, 0.0
      %v1289 = vsel %vm1033, %v1225, 0.0
      %v1290 = vsel %vm1034, %v1226, 0.0
      %v1291 = vsel %vm1035, %v1227, 0.0
      %v1292 = vsel %vm1036, %v1228, 0.0
      %v1293 = vsel %vm1037, %v1229, 0.0
      %v1294 = vsel %vm1038, %v1230, 0.0
      %v1295 = vsel %vm1039, %v1231, 0.0
      %v1296 = vsel %vm1040, %v1232, 0.0
      %v1297 = vsel %vm1041, %v1233, 0.0
      %v1298 = vsel %vm1042, %v1234, 0.0
      %v1299 = vsel %vm1043, %v1235, 0.0
      %v1300 = vsel %vm1044, %v1236, 0.0
      %v1301 = vsel %vm1045, %v1237, 0.0
      %v1302 = vsel %vm1046, %v1238, 0.0
      %v1303 = vsel %vm1047, %v1239, 0.0
      %v1304 = vsel %vm1048, %v1240, 0.0
      %v1305 = vsel %vm1049, %v1241, 0.0
      %v1306 = vsel %vm1050, %v1242, 0.0
      %v1307 = vsel %vm1051, %v1243, 0.0
      %v1308 = vsel %vm1052, %v1244, 0.0
      %v1309 = vsel %vm1053, %v1245, 0.0
      %v1310 = vsel %vm1054, %v1246, 0.0
      %v1311 = vsel %vm1055, %v1247, 0.0
      %v1312 = vsel %vm1056, %v1248, 0.0
      %v1313 = vsel %vm1057, %v1249, 0.0
      %v1314 = vsel %vm1058, %v1250, 0.0
      %v1315 = vsel %vm1059, %v1251, 0.0
      %v1316 = vsel %vm1060, %v1252, 0.0
      %v1317 = vsel %vm1061, %v1253, 0.0
      %v1318 = vsel %vm1062, %v1254, 0.0
      %v1319 = vsel %vm1063, %v1255, 0.0
      %v1320 = vsel %vm1064, %v1256, 0.0
      %v1321 = vsel %vm1065, %v1257, 0.0
      %v1322 = vsel %vm1066, %v1258, 0.0
      %v1323 = vsel %vm1067, %v1259, 0.0
      %v1324 = vsel %vm1068, %v1260, 0.0
      %v1325 = vsel %vm1069, %v1261, 0.0
      %v1326 = vsel %vm1070, %v1262, 0.0
      %v1327 = vsel %vm1071, %v1263, 0.0
      %v1328 = vsel %vm1072, %v1264, 0.0
      %v1329 = vsel %vm817, %v945, %v1265
      %v1330 = vsel %vm818, %v946, %v1266
      %v1331 = vsel %vm819, %v947, %v1267
      %v1332 = vsel %vm820, %v948, %v1268
      %v1333 = vsel %vm821, %v949, %v1269
      %v1334 = vsel %vm822, %v950, %v1270
      %v1335 = vsel %vm823, %v951, %v1271
      %v1336 = vsel %vm824, %v952, %v1272
      %v1337 = vsel %vm825, %v953, %v1273
      %v1338 = vsel %vm826, %v954, %v1274
      %v1339 = vsel %vm827, %v955, %v1275
      %v1340 = vsel %vm828, %v956, %v1276
      %v1341 = vsel %vm829, %v957, %v1277
      %v1342 = vsel %vm830, %v958, %v1278
      %v1343 = vsel %vm831, %v959, %v1279
      %v1344 = vsel %vm832, %v960, %v1280
      %v1345 = vsel %vm833, %v961, %v1281
      %v1346 = vsel %vm834, %v962, %v1282
      %v1347 = vsel %vm835, %v963, %v1283
      %v1348 = vsel %vm836, %v964, %v1284
      %v1349 = vsel %vm837, %v965, %v1285
      %v1350 = vsel %vm838, %v966, %v1286
      %v1351 = vsel %vm839, %v967, %v1287
      %v1352 = vsel %vm840, %v968, %v1288
      %v1353 = vsel %vm841, %v969, %v1289
      %v1354 = vsel %vm842, %v970, %v1290
      %v1355 = vsel %vm843, %v971, %v1291
      %v1356 = vsel %vm844, %v972, %v1292
      %v1357 = vsel %vm845, %v973, %v1293
      %v1358 = vsel %vm846, %v974, %v1294
      %v1359 = vsel %vm847, %v975, %v1295
      %v1360 = vsel %vm848, %v976, %v1296
      %v1361 = vsel %vm849, %v977, %v1297
      %v1362 = vsel %vm850, %v978, %v1298
      %v1363 = vsel %vm851, %v979, %v1299
      %v1364 = vsel %vm852, %v980, %v1300
      %v1365 = vsel %vm853, %v981, %v1301
      %v1366 = vsel %vm854, %v982, %v1302
      %v1367 = vsel %vm855, %v983, %v1303
      %v1368 = vsel %vm856, %v984, %v1304
      %v1369 = vsel %vm857, %v985, %v1305
      %v1370 = vsel %vm858, %v986, %v1306
      %v1371 = vsel %vm859, %v987, %v1307
      %v1372 = vsel %vm860, %v988, %v1308
      %v1373 = vsel %vm861, %v989, %v1309
      %v1374 = vsel %vm862, %v990, %v1310
      %v1375 = vsel %vm863, %v991, %v1311
      %v1376 = vsel %vm864, %v992, %v1312
      %v1377 = vsel %vm865, %v993, %v1313
      %v1378 = vsel %vm866, %v994, %v1314
      %v1379 = vsel %vm867, %v995, %v1315
      %v1380 = vsel %vm868, %v996, %v1316
      %v1381 = vsel %vm869, %v997, %v1317
      %v1382 = vsel %vm870, %v998, %v1318
      %v1383 = vsel %vm871, %v999, %v1319
      %v1384 = vsel %vm872, %v1000, %v1320
      %v1385 = vsel %vm873, %v1001, %v1321
      %v1386 = vsel %vm874, %v1002, %v1322
      %v1387 = vsel %vm875, %v1003, %v1323
      %v1388 = vsel %vm876, %v1004, %v1324
      %v1389 = vsel %vm877, %v1005, %v1325
      %v1390 = vsel %vm878, %v1006, %v1326
      %v1391 = vsel %vm879, %v1007, %v1327
      %v1392 = vsel %vm880, %v1008, %v1328
      %v1393 = vld [vmem:[%s1] sm:$0xff]
      %v1394 = vld [vmem:[%s1 + $0x8] sm:$0xff]
      %v1395 = vld [vmem:[%s1 + $0x10] sm:$0xff]
      %vm1396 = vcmask 64512
      %v1398 = vsel %vm1396, %v1329, 0
      %v1401 = vsel %vm1396, %v1330, 0
      %v1404 = vsel %vm1396, %v1331, 0
      %v1407 = vsel %vm1396, %v1332, 0
      %v1410 = vsel %vm1396, %v1333, 0
      %v1413 = vsel %vm1396, %v1334, 0
      %v1416 = vsel %vm1396, %v1335, 0
      %v1419 = vsel %vm1396, %v1336, 0
      %v1422 = vsel %vm1396, %v1337, 0
      %v1425 = vsel %vm1396, %v1338, 0
      %v1428 = vsel %vm1396, %v1339, 0
      %v1431 = vsel %vm1396, %v1340, 0
      %v1434 = vsel %vm1396, %v1341, 0
      %v1437 = vsel %vm1396, %v1342, 0
      %v1440 = vsel %vm1396, %v1343, 0
      %v1443 = vsel %vm1396, %v1344, 0
      %v1446 = vsel %vm1396, %v1345, 0
      %v1449 = vsel %vm1396, %v1346, 0
      %v1452 = vsel %vm1396, %v1347, 0
      %v1455 = vsel %vm1396, %v1348, 0
      %v1458 = vsel %vm1396, %v1349, 0
      %v1461 = vsel %vm1396, %v1350, 0
      %v1464 = vsel %vm1396, %v1351, 0
      %v1467 = vsel %vm1396, %v1352, 0
      %v1470 = vsel %vm1396, %v1353, 0
      %v1473 = vsel %vm1396, %v1354, 0
      %v1476 = vsel %vm1396, %v1355, 0
      %v1479 = vsel %vm1396, %v1356, 0
      %v1482 = vsel %vm1396, %v1357, 0
      %v1485 = vsel %vm1396, %v1358, 0
      %v1488 = vsel %vm1396, %v1359, 0
      %v1491 = vsel %vm1396, %v1360, 0
      %v1494 = vsel %vm1396, %v1361, 0
      %v1497 = vsel %vm1396, %v1362, 0
      %v1500 = vsel %vm1396, %v1363, 0
      %v1503 = vsel %vm1396, %v1364, 0
      %v1506 = vsel %vm1396, %v1365, 0
      %v1509 = vsel %vm1396, %v1366, 0
      %v1512 = vsel %vm1396, %v1367, 0
      %v1515 = vsel %vm1396, %v1368, 0
      %v1518 = vsel %vm1396, %v1369, 0
      %v1521 = vsel %vm1396, %v1370, 0
      %v1524 = vsel %vm1396, %v1371, 0
      %v1527 = vsel %vm1396, %v1372, 0
      %v1530 = vsel %vm1396, %v1373, 0
      %v1533 = vsel %vm1396, %v1374, 0
      %v1536 = vsel %vm1396, %v1375, 0
      %v1539 = vsel %vm1396, %v1376, 0
      %v1542 = vsel %vm1396, %v1377, 0
      %v1545 = vsel %vm1396, %v1378, 0
      %v1548 = vsel %vm1396, %v1379, 0
      %v1551 = vsel %vm1396, %v1380, 0
      %v1554 = vsel %vm1396, %v1381, 0
      %v1557 = vsel %vm1396, %v1382, 0
      %v1560 = vsel %vm1396, %v1383, 0
      %v1563 = vsel %vm1396, %v1384, 0
      %v1566 = vsel %vm1396, %v1385, 0
      %v1569 = vsel %vm1396, %v1386, 0
      %v1572 = vsel %vm1396, %v1387, 0
      %v1575 = vsel %vm1396, %v1388, 0
      %v1578 = vsel %vm1396, %v1389, 0
      %v1581 = vsel %vm1396, %v1390, 0
      %v1584 = vsel %vm1396, %v1391, 0
      %v1587 = vsel %vm1396, %v1392, 0
      %1589 = vmatpush.msra.mxu0 0.0
      %1590 = vmatpush.msra.mxu0 0.0
      %1591 = vmatpush.msra.mxu0 0.0
      %1592 = vmatpush.msra.mxu0 0.0
      %1593 = vmatpush.msra.mxu0 0.0
      %1594 = vmatpush.msra.mxu0 0.0
      %1595 = vmatpush.msra.mxu0 0.0
      %1596 = vmatpush.msra.mxu0 0.0
      %1597 = vmatpush.msra.mxu0 0.0
      %1598 = vmatpush.msra.mxu0 0.0
      %1599 = vmatpush.msra.mxu0 0.0
      %1600 = vmatpush.msra.mxu0 0.0
      %1601 = vmatpush.msra.mxu0 0.0
      %1602 = vmatpush.msra.mxu0 0.0
      %1603 = vmatpush.msra.mxu0 0.0
      %1604 = vmatpush.msra.mxu0 %v1393
      %1605 = vmatmul.f32.gmra.mxu0 %v1398
      %v1606 = vpop.f32.mrf.mxu0
      %v1607 = vadd.f32 0.0, %v1606
      %1608 = vmatmul.f32.gmra.mxu0 %v1401
      %v1609 = vpop.f32.mrf.mxu0
      %v1610 = vadd.f32 0.0, %v1609
      %1611 = vmatmul.f32.gmra.mxu0 %v1404
      %v1612 = vpop.f32.mrf.mxu0
      %v1613 = vadd.f32 0.0, %v1612
      %1614 = vmatmul.f32.gmra.mxu0 %v1407
      %v1615 = vpop.f32.mrf.mxu0
      %v1616 = vadd.f32 0.0, %v1615
      %1617 = vmatmul.f32.gmra.mxu0 %v1410
      %v1618 = vpop.f32.mrf.mxu0
      %v1619 = vadd.f32 0.0, %v1618
      %1620 = vmatmul.f32.gmra.mxu0 %v1413
      %v1621 = vpop.f32.mrf.mxu0
      %v1622 = vadd.f32 0.0, %v1621
      %1623 = vmatmul.f32.gmra.mxu0 %v1416
      %v1624 = vpop.f32.mrf.mxu0
      %v1625 = vadd.f32 0.0, %v1624
      %1626 = vmatmul.f32.gmra.mxu0 %v1419
      %v1627 = vpop.f32.mrf.mxu0
      %v1628 = vadd.f32 0.0, %v1627
      %1629 = vmatmul.f32.gmra.mxu0 %v1422
      %v1630 = vpop.f32.mrf.mxu0
      %v1631 = vadd.f32 0.0, %v1630
      %1632 = vmatmul.f32.gmra.mxu0 %v1425
      %v1633 = vpop.f32.mrf.mxu0
      %v1634 = vadd.f32 0.0, %v1633
      %1635 = vmatmul.f32.gmra.mxu0 %v1428
      %v1636 = vpop.f32.mrf.mxu0
      %v1637 = vadd.f32 0.0, %v1636
      %1638 = vmatmul.f32.gmra.mxu0 %v1431
      %v1639 = vpop.f32.mrf.mxu0
      %v1640 = vadd.f32 0.0, %v1639
      %1641 = vmatmul.f32.gmra.mxu0 %v1434
      %v1642 = vpop.f32.mrf.mxu0
      %v1643 = vadd.f32 0.0, %v1642
      %1644 = vmatmul.f32.gmra.mxu0 %v1437
      %v1645 = vpop.f32.mrf.mxu0
      %v1646 = vadd.f32 0.0, %v1645
      %1647 = vmatmul.f32.gmra.mxu0 %v1440
      %v1648 = vpop.f32.mrf.mxu0
      %v1649 = vadd.f32 0.0, %v1648
      %1650 = vmatmul.f32.gmra.mxu0 %v1443
      %v1651 = vpop.f32.mrf.mxu0
      %v1652 = vadd.f32 0.0, %v1651
      %1653 = vmatmul.f32.gmra.mxu0 %v1446
      %v1654 = vpop.f32.mrf.mxu0
      %v1655 = vadd.f32 0.0, %v1654
      %1656 = vmatmul.f32.gmra.mxu0 %v1449
      %v1657 = vpop.f32.mrf.mxu0
      %v1658 = vadd.f32 0.0, %v1657
      %1659 = vmatmul.f32.gmra.mxu0 %v1452
      %v1660 = vpop.f32.mrf.mxu0
      %v1661 = vadd.f32 0.0, %v1660
      %1662 = vmatmul.f32.gmra.mxu0 %v1455
      %v1663 = vpop.f32.mrf.mxu0
      %v1664 = vadd.f32 0.0, %v1663
      %1665 = vmatmul.f32.gmra.mxu0 %v1458
      %v1666 = vpop.f32.mrf.mxu0
      %v1667 = vadd.f32 0.0, %v1666
      %1668 = vmatmul.f32.gmra.mxu0 %v1461
      %v1669 = vpop.f32.mrf.mxu0
      %v1670 = vadd.f32 0.0, %v1669
      %1671 = vmatmul.f32.gmra.mxu0 %v1464
      %v1672 = vpop.f32.mrf.mxu0
      %v1673 = vadd.f32 0.0, %v1672
      %1674 = vmatmul.f32.gmra.mxu0 %v1467
      %v1675 = vpop.f32.mrf.mxu0
      %v1676 = vadd.f32 0.0, %v1675
      %1677 = vmatmul.f32.gmra.mxu0 %v1470
      %v1678 = vpop.f32.mrf.mxu0
      %v1679 = vadd.f32 0.0, %v1678
      %1680 = vmatmul.f32.gmra.mxu0 %v1473
      %v1681 = vpop.f32.mrf.mxu0
      %v1682 = vadd.f32 0.0, %v1681
      %1683 = vmatmul.f32.gmra.mxu0 %v1476
      %v1684 = vpop.f32.mrf.mxu0
      %v1685 = vadd.f32 0.0, %v1684
      %1686 = vmatmul.f32.gmra.mxu0 %v1479
      %v1687 = vpop.f32.mrf.mxu0
      %v1688 = vadd.f32 0.0, %v1687
      %1689 = vmatmul.f32.gmra.mxu0 %v1482
      %v1690 = vpop.f32.mrf.mxu0
      %v1691 = vadd.f32 0.0, %v1690
      %1692 = vmatmul.f32.gmra.mxu0 %v1485
      %v1693 = vpop.f32.mrf.mxu0
      %v1694 = vadd.f32 0.0, %v1693
      %1695 = vmatmul.f32.gmra.mxu0 %v1488
      %v1696 = vpop.f32.mrf.mxu0
      %v1697 = vadd.f32 0.0, %v1696
      %1698 = vmatmul.f32.gmra.mxu0 %v1491
      %v1699 = vpop.f32.mrf.mxu0
      %v1700 = vadd.f32 0.0, %v1699
      %1701 = vmatmul.f32.gmra.mxu0 %v1494
      %v1702 = vpop.f32.mrf.mxu0
      %v1703 = vadd.f32 0.0, %v1702
      %1704 = vmatmul.f32.gmra.mxu0 %v1497
      %v1705 = vpop.f32.mrf.mxu0
      %v1706 = vadd.f32 0.0, %v1705
      %1707 = vmatmul.f32.gmra.mxu0 %v1500
      %v1708 = vpop.f32.mrf.mxu0
      %v1709 = vadd.f32 0.0, %v1708
      %1710 = vmatmul.f32.gmra.mxu0 %v1503
      %v1711 = vpop.f32.mrf.mxu0
      %v1712 = vadd.f32 0.0, %v1711
      %1713 = vmatmul.f32.gmra.mxu0 %v1506
      %v1714 = vpop.f32.mrf.mxu0
      %v1715 = vadd.f32 0.0, %v1714
      %1716 = vmatmul.f32.gmra.mxu0 %v1509
      %v1717 = vpop.f32.mrf.mxu0
      %v1718 = vadd.f32 0.0, %v1717
      %1719 = vmatmul.f32.gmra.mxu0 %v1512
      %v1720 = vpop.f32.mrf.mxu0
      %v1721 = vadd.f32 0.0, %v1720
      %1722 = vmatmul.f32.gmra.mxu0 %v1515
      %v1723 = vpop.f32.mrf.mxu0
      %v1724 = vadd.f32 0.0, %v1723
      %1725 = vmatmul.f32.gmra.mxu0 %v1518
      %v1726 = vpop.f32.mrf.mxu0
      %v1727 = vadd.f32 0.0, %v1726
      %1728 = vmatmul.f32.gmra.mxu0 %v1521
      %v1729 = vpop.f32.mrf.mxu0
      %v1730 = vadd.f32 0.0, %v1729
      %1731 = vmatmul.f32.gmra.mxu0 %v1524
      %v1732 = vpop.f32.mrf.mxu0
      %v1733 = vadd.f32 0.0, %v1732
      %1734 = vmatmul.f32.gmra.mxu0 %v1527
      %v1735 = vpop.f32.mrf.mxu0
      %v1736 = vadd.f32 0.0, %v1735
      %1737 = vmatmul.f32.gmra.mxu0 %v1530
      %v1738 = vpop.f32.mrf.mxu0
      %v1739 = vadd.f32 0.0, %v1738
      %1740 = vmatmul.f32.gmra.mxu0 %v1533
      %v1741 = vpop.f32.mrf.mxu0
      %v1742 = vadd.f32 0.0, %v1741
      %1743 = vmatmul.f32.gmra.mxu0 %v1536
      %v1744 = vpop.f32.mrf.mxu0
      %v1745 = vadd.f32 0.0, %v1744
      %1746 = vmatmul.f32.gmra.mxu0 %v1539
      %v1747 = vpop.f32.mrf.mxu0
      %v1748 = vadd.f32 0.0, %v1747
      %1749 = vmatmul.f32.gmra.mxu0 %v1542
      %v1750 = vpop.f32.mrf.mxu0
      %v1751 = vadd.f32 0.0, %v1750
      %1752 = vmatmul.f32.gmra.mxu0 %v1545
      %v1753 = vpop.f32.mrf.mxu0
      %v1754 = vadd.f32 0.0, %v1753
      %1755 = vmatmul.f32.gmra.mxu0 %v1548
      %v1756 = vpop.f32.mrf.mxu0
      %v1757 = vadd.f32 0.0, %v1756
      %1758 = vmatmul.f32.gmra.mxu0 %v1551
      %v1759 = vpop.f32.mrf.mxu0
      %v1760 = vadd.f32 0.0, %v1759
      %1761 = vmatmul.f32.gmra.mxu0 %v1554
      %v1762 = vpop.f32.mrf.mxu0
      %v1763 = vadd.f32 0.0, %v1762
      %1764 = vmatmul.f32.gmra.mxu0 %v1557
      %v1765 = vpop.f32.mrf.mxu0
      %v1766 = vadd.f32 0.0, %v1765
      %1767 = vmatmul.f32.gmra.mxu0 %v1560
      %v1768 = vpop.f32.mrf.mxu0
      %v1769 = vadd.f32 0.0, %v1768
      %1770 = vmatmul.f32.gmra.mxu0 %v1563
      %v1771 = vpop.f32.mrf.mxu0
      %v1772 = vadd.f32 0.0, %v1771
      %1773 = vmatmul.f32.gmra.mxu0 %v1566
      %v1774 = vpop.f32.mrf.mxu0
      %v1775 = vadd.f32 0.0, %v1774
      %1776 = vmatmul.f32.gmra.mxu0 %v1569
      %v1777 = vpop.f32.mrf.mxu0
      %v1778 = vadd.f32 0.0, %v1777
      %1779 = vmatmul.f32.gmra.mxu0 %v1572
      %v1780 = vpop.f32.mrf.mxu0
      %v1781 = vadd.f32 0.0, %v1780
      %1782 = vmatmul.f32.gmra.mxu0 %v1575
      %v1783 = vpop.f32.mrf.mxu0
      %v1784 = vadd.f32 0.0, %v1783
      %1785 = vmatmul.f32.gmra.mxu0 %v1578
      %v1786 = vpop.f32.mrf.mxu0
      %v1787 = vadd.f32 0.0, %v1786
      %1788 = vmatmul.f32.gmra.mxu0 %v1581
      %v1789 = vpop.f32.mrf.mxu0
      %v1790 = vadd.f32 0.0, %v1789
      %1791 = vmatmul.f32.gmra.mxu0 %v1584
      %v1792 = vpop.f32.mrf.mxu0
      %v1793 = vadd.f32 0.0, %v1792
      %1794 = vmatmul.f32.gmra.mxu0 %v1587
      %v1795 = vpop.f32.mrf.mxu0
      %v1796 = vadd.f32 0.0, %v1795
      %1797 = vdwg.mxu0
      %1798 = vmatpush.msra.mxu0 0.0
      %1799 = vmatpush.msra.mxu0 0.0
      %1800 = vmatpush.msra.mxu0 0.0
      %1801 = vmatpush.msra.mxu0 0.0
      %1802 = vmatpush.msra.mxu0 0.0
      %1803 = vmatpush.msra.mxu0 0.0
      %1804 = vmatpush.msra.mxu0 0.0
      %1805 = vmatpush.msra.mxu0 0.0
      %1806 = vmatpush.msra.mxu0 0.0
      %1807 = vmatpush.msra.mxu0 0.0
      %1808 = vmatpush.msra.mxu0 0.0
      %1809 = vmatpush.msra.mxu0 0.0
      %1810 = vmatpush.msra.mxu0 0.0
      %1811 = vmatpush.msra.mxu0 0.0
      %1812 = vmatpush.msra.mxu0 0.0
      %1813 = vmatpush.msra.mxu0 %v1394
      %1814 = vmatmul.f32.gmra.mxu0 %v1398
      %v1815 = vpop.f32.mrf.mxu0
      %v1816 = vadd.f32 0.0, %v1815
      %1817 = vmatmul.f32.gmra.mxu0 %v1401
      %v1818 = vpop.f32.mrf.mxu0
      %v1819 = vadd.f32 0.0, %v1818
      %1820 = vmatmul.f32.gmra.mxu0 %v1404
      %v1821 = vpop.f32.mrf.mxu0
      %v1822 = vadd.f32 0.0, %v1821
      %1823 = vmatmul.f32.gmra.mxu0 %v1407
      %v1824 = vpop.f32.mrf.mxu0
      %v1825 = vadd.f32 0.0, %v1824
      %1826 = vmatmul.f32.gmra.mxu0 %v1410
      %v1827 = vpop.f32.mrf.mxu0
      %v1828 = vadd.f32 0.0, %v1827
      %1829 = vmatmul.f32.gmra.mxu0 %v1413
      %v1830 = vpop.f32.mrf.mxu0
      %v1831 = vadd.f32 0.0, %v1830
      %1832 = vmatmul.f32.gmra.mxu0 %v1416
      %v1833 = vpop.f32.mrf.mxu0
      %v1834 = vadd.f32 0.0, %v1833
      %1835 = vmatmul.f32.gmra.mxu0 %v1419
      %v1836 = vpop.f32.mrf.mxu0
      %v1837 = vadd.f32 0.0, %v1836
      %1838 = vmatmul.f32.gmra.mxu0 %v1422
      %v1839 = vpop.f32.mrf.mxu0
      %v1840 = vadd.f32 0.0, %v1839
      %1841 = vmatmul.f32.gmra.mxu0 %v1425
      %v1842 = vpop.f32.mrf.mxu0
      %v1843 = vadd.f32 0.0, %v1842
      %1844 = vmatmul.f32.gmra.mxu0 %v1428
      %v1845 = vpop.f32.mrf.mxu0
      %v1846 = vadd.f32 0.0, %v1845
      %1847 = vmatmul.f32.gmra.mxu0 %v1431
      %v1848 = vpop.f32.mrf.mxu0
      %v1849 = vadd.f32 0.0, %v1848
      %1850 = vmatmul.f32.gmra.mxu0 %v1434
      %v1851 = vpop.f32.mrf.mxu0
      %v1852 = vadd.f32 0.0, %v1851
      %1853 = vmatmul.f32.gmra.mxu0 %v1437
      %v1854 = vpop.f32.mrf.mxu0
      %v1855 = vadd.f32 0.0, %v1854
      %1856 = vmatmul.f32.gmra.mxu0 %v1440
      %v1857 = vpop.f32.mrf.mxu0
      %v1858 = vadd.f32 0.0, %v1857
      %1859 = vmatmul.f32.gmra.mxu0 %v1443
      %v1860 = vpop.f32.mrf.mxu0
      %v1861 = vadd.f32 0.0, %v1860
      %1862 = vmatmul.f32.gmra.mxu0 %v1446
      %v1863 = vpop.f32.mrf.mxu0
      %v1864 = vadd.f32 0.0, %v1863
      %1865 = vmatmul.f32.gmra.mxu0 %v1449
      %v1866 = vpop.f32.mrf.mxu0
      %v1867 = vadd.f32 0.0, %v1866
      %1868 = vmatmul.f32.gmra.mxu0 %v1452
      %v1869 = vpop.f32.mrf.mxu0
      %v1870 = vadd.f32 0.0, %v1869
      %1871 = vmatmul.f32.gmra.mxu0 %v1455
      %v1872 = vpop.f32.mrf.mxu0
      %v1873 = vadd.f32 0.0, %v1872
      %1874 = vmatmul.f32.gmra.mxu0 %v1458
      %v1875 = vpop.f32.mrf.mxu0
      %v1876 = vadd.f32 0.0, %v1875
      %1877 = vmatmul.f32.gmra.mxu0 %v1461
      %v1878 = vpop.f32.mrf.mxu0
      %v1879 = vadd.f32 0.0, %v1878
      %1880 = vmatmul.f32.gmra.mxu0 %v1464
      %v1881 = vpop.f32.mrf.mxu0
      %v1882 = vadd.f32 0.0, %v1881
      %1883 = vmatmul.f32.gmra.mxu0 %v1467
      %v1884 = vpop.f32.mrf.mxu0
      %v1885 = vadd.f32 0.0, %v1884
      %1886 = vmatmul.f32.gmra.mxu0 %v1470
      %v1887 = vpop.f32.mrf.mxu0
      %v1888 = vadd.f32 0.0, %v1887
      %1889 = vmatmul.f32.gmra.mxu0 %v1473
      %v1890 = vpop.f32.mrf.mxu0
      %v1891 = vadd.f32 0.0, %v1890
      %1892 = vmatmul.f32.gmra.mxu0 %v1476
      %v1893 = vpop.f32.mrf.mxu0
      %v1894 = vadd.f32 0.0, %v1893
      %1895 = vmatmul.f32.gmra.mxu0 %v1479
      %v1896 = vpop.f32.mrf.mxu0
      %v1897 = vadd.f32 0.0, %v1896
      %1898 = vmatmul.f32.gmra.mxu0 %v1482
      %v1899 = vpop.f32.mrf.mxu0
      %v1900 = vadd.f32 0.0, %v1899
      %1901 = vmatmul.f32.gmra.mxu0 %v1485
      %v1902 = vpop.f32.mrf.mxu0
      %v1903 = vadd.f32 0.0, %v1902
      %1904 = vmatmul.f32.gmra.mxu0 %v1488
      %v1905 = vpop.f32.mrf.mxu0
      %v1906 = vadd.f32 0.0, %v1905
      %1907 = vmatmul.f32.gmra.mxu0 %v1491
      %v1908 = vpop.f32.mrf.mxu0
      %v1909 = vadd.f32 0.0, %v1908
      %1910 = vmatmul.f32.gmra.mxu0 %v1494
      %v1911 = vpop.f32.mrf.mxu0
      %v1912 = vadd.f32 0.0, %v1911
      %1913 = vmatmul.f32.gmra.mxu0 %v1497
      %v1914 = vpop.f32.mrf.mxu0
      %v1915 = vadd.f32 0.0, %v1914
      %1916 = vmatmul.f32.gmra.mxu0 %v1500
      %v1917 = vpop.f32.mrf.mxu0
      %v1918 = vadd.f32 0.0, %v1917
      %1919 = vmatmul.f32.gmra.mxu0 %v1503
      %v1920 = vpop.f32.mrf.mxu0
      %v1921 = vadd.f32 0.0, %v1920
      %1922 = vmatmul.f32.gmra.mxu0 %v1506
      %v1923 = vpop.f32.mrf.mxu0
      %v1924 = vadd.f32 0.0, %v1923
      %1925 = vmatmul.f32.gmra.mxu0 %v1509
      %v1926 = vpop.f32.mrf.mxu0
      %v1927 = vadd.f32 0.0, %v1926
      %1928 = vmatmul.f32.gmra.mxu0 %v1512
      %v1929 = vpop.f32.mrf.mxu0
      %v1930 = vadd.f32 0.0, %v1929
      %1931 = vmatmul.f32.gmra.mxu0 %v1515
      %v1932 = vpop.f32.mrf.mxu0
      %v1933 = vadd.f32 0.0, %v1932
      %1934 = vmatmul.f32.gmra.mxu0 %v1518
      %v1935 = vpop.f32.mrf.mxu0
      %v1936 = vadd.f32 0.0, %v1935
      %1937 = vmatmul.f32.gmra.mxu0 %v1521
      %v1938 = vpop.f32.mrf.mxu0
      %v1939 = vadd.f32 0.0, %v1938
      %1940 = vmatmul.f32.gmra.mxu0 %v1524
      %v1941 = vpop.f32.mrf.mxu0
      %v1942 = vadd.f32 0.0, %v1941
      %1943 = vmatmul.f32.gmra.mxu0 %v1527
      %v1944 = vpop.f32.mrf.mxu0
      %v1945 = vadd.f32 0.0, %v1944
      %1946 = vmatmul.f32.gmra.mxu0 %v1530
      %v1947 = vpop.f32.mrf.mxu0
      %v1948 = vadd.f32 0.0, %v1947
      %1949 = vmatmul.f32.gmra.mxu0 %v1533
      %v1950 = vpop.f32.mrf.mxu0
      %v1951 = vadd.f32 0.0, %v1950
      %1952 = vmatmul.f32.gmra.mxu0 %v1536
      %v1953 = vpop.f32.mrf.mxu0
      %v1954 = vadd.f32 0.0, %v1953
      %1955 = vmatmul.f32.gmra.mxu0 %v1539
      %v1956 = vpop.f32.mrf.mxu0
      %v1957 = vadd.f32 0.0, %v1956
      %1958 = vmatmul.f32.gmra.mxu0 %v1542
      %v1959 = vpop.f32.mrf.mxu0
      %v1960 = vadd.f32 0.0, %v1959
      %1961 = vmatmul.f32.gmra.mxu0 %v1545
      %v1962 = vpop.f32.mrf.mxu0
      %v1963 = vadd.f32 0.0, %v1962
      %1964 = vmatmul.f32.gmra.mxu0 %v1548
      %v1965 = vpop.f32.mrf.mxu0
      %v1966 = vadd.f32 0.0, %v1965
      %1967 = vmatmul.f32.gmra.mxu0 %v1551
      %v1968 = vpop.f32.mrf.mxu0
      %v1969 = vadd.f32 0.0, %v1968
      %1970 = vmatmul.f32.gmra.mxu0 %v1554
      %v1971 = vpop.f32.mrf.mxu0
      %v1972 = vadd.f32 0.0, %v1971
      %1973 = vmatmul.f32.gmra.mxu0 %v1557
      %v1974 = vpop.f32.mrf.mxu0
      %v1975 = vadd.f32 0.0, %v1974
      %1976 = vmatmul.f32.gmra.mxu0 %v1560
      %v1977 = vpop.f32.mrf.mxu0
      %v1978 = vadd.f32 0.0, %v1977
      %1979 = vmatmul.f32.gmra.mxu0 %v1563
      %v1980 = vpop.f32.mrf.mxu0
      %v1981 = vadd.f32 0.0, %v1980
      %1982 = vmatmul.f32.gmra.mxu0 %v1566
      %v1983 = vpop.f32.mrf.mxu0
      %v1984 = vadd.f32 0.0, %v1983
      %1985 = vmatmul.f32.gmra.mxu0 %v1569
      %v1986 = vpop.f32.mrf.mxu0
      %v1987 = vadd.f32 0.0, %v1986
      %1988 = vmatmul.f32.gmra.mxu0 %v1572
      %v1989 = vpop.f32.mrf.mxu0
      %v1990 = vadd.f32 0.0, %v1989
      %1991 = vmatmul.f32.gmra.mxu0 %v1575
      %v1992 = vpop.f32.mrf.mxu0
      %v1993 = vadd.f32 0.0, %v1992
      %1994 = vmatmul.f32.gmra.mxu0 %v1578
      %v1995 = vpop.f32.mrf.mxu0
      %v1996 = vadd.f32 0.0, %v1995
      %1997 = vmatmul.f32.gmra.mxu0 %v1581
      %v1998 = vpop.f32.mrf.mxu0
      %v1999 = vadd.f32 0.0, %v1998
      %2000 = vmatmul.f32.gmra.mxu0 %v1584
      %v2001 = vpop.f32.mrf.mxu0
      %v2002 = vadd.f32 0.0, %v2001
      %2003 = vmatmul.f32.gmra.mxu0 %v1587
      %v2004 = vpop.f32.mrf.mxu0
      %v2005 = vadd.f32 0.0, %v2004
      %2006 = vdwg.mxu0
      %2007 = vmatpush.msra.mxu0 0.0
      %2008 = vmatpush.msra.mxu0 0.0
      %2009 = vmatpush.msra.mxu0 0.0
      %2010 = vmatpush.msra.mxu0 0.0
      %2011 = vmatpush.msra.mxu0 0.0
      %2012 = vmatpush.msra.mxu0 0.0
      %2013 = vmatpush.msra.mxu0 0.0
      %2014 = vmatpush.msra.mxu0 0.0
      %2015 = vmatpush.msra.mxu0 0.0
      %2016 = vmatpush.msra.mxu0 0.0
      %2017 = vmatpush.msra.mxu0 0.0
      %2018 = vmatpush.msra.mxu0 0.0
      %2019 = vmatpush.msra.mxu0 0.0
      %2020 = vmatpush.msra.mxu0 0.0
      %2021 = vmatpush.msra.mxu0 0.0
      %2022 = vmatpush.msra.mxu0 %v1395
      %2023 = vmatmul.f32.gmra.mxu0 %v1398
      %v2024 = vpop.f32.mrf.mxu0
      %v2025 = vadd.f32 0.0, %v2024
      %2026 = vmatmul.f32.gmra.mxu0 %v1401
      %v2027 = vpop.f32.mrf.mxu0
      %v2028 = vadd.f32 0.0, %v2027
      %2029 = vmatmul.f32.gmra.mxu0 %v1404
      %v2030 = vpop.f32.mrf.mxu0
      %v2031 = vadd.f32 0.0, %v2030
      %2032 = vmatmul.f32.gmra.mxu0 %v1407
      %v2033 = vpop.f32.mrf.mxu0
      %v2034 = vadd.f32 0.0, %v2033
      %2035 = vmatmul.f32.gmra.mxu0 %v1410
      %v2036 = vpop.f32.mrf.mxu0
      %v2037 = vadd.f32 0.0, %v2036
      %2038 = vmatmul.f32.gmra.mxu0 %v1413
      %v2039 = vpop.f32.mrf.mxu0
      %v2040 = vadd.f32 0.0, %v2039
      %2041 = vmatmul.f32.gmra.mxu0 %v1416
      %v2042 = vpop.f32.mrf.mxu0
      %v2043 = vadd.f32 0.0, %v2042
      %2044 = vmatmul.f32.gmra.mxu0 %v1419
      %v2045 = vpop.f32.mrf.mxu0
      %v2046 = vadd.f32 0.0, %v2045
      %2047 = vmatmul.f32.gmra.mxu0 %v1422
      %v2048 = vpop.f32.mrf.mxu0
      %v2049 = vadd.f32 0.0, %v2048
      %2050 = vmatmul.f32.gmra.mxu0 %v1425
      %v2051 = vpop.f32.mrf.mxu0
      %v2052 = vadd.f32 0.0, %v2051
      %2053 = vmatmul.f32.gmra.mxu0 %v1428
      %v2054 = vpop.f32.mrf.mxu0
      %v2055 = vadd.f32 0.0, %v2054
      %2056 = vmatmul.f32.gmra.mxu0 %v1431
      %v2057 = vpop.f32.mrf.mxu0
      %v2058 = vadd.f32 0.0, %v2057
      %2059 = vmatmul.f32.gmra.mxu0 %v1434
      %v2060 = vpop.f32.mrf.mxu0
      %v2061 = vadd.f32 0.0, %v2060
      %2062 = vmatmul.f32.gmra.mxu0 %v1437
      %v2063 = vpop.f32.mrf.mxu0
      %v2064 = vadd.f32 0.0, %v2063
      %2065 = vmatmul.f32.gmra.mxu0 %v1440
      %v2066 = vpop.f32.mrf.mxu0
      %v2067 = vadd.f32 0.0, %v2066
      %2068 = vmatmul.f32.gmra.mxu0 %v1443
      %v2069 = vpop.f32.mrf.mxu0
      %v2070 = vadd.f32 0.0, %v2069
      %2071 = vmatmul.f32.gmra.mxu0 %v1446
      %v2072 = vpop.f32.mrf.mxu0
      %v2073 = vadd.f32 0.0, %v2072
      %2074 = vmatmul.f32.gmra.mxu0 %v1449
      %v2075 = vpop.f32.mrf.mxu0
      %v2076 = vadd.f32 0.0, %v2075
      %2077 = vmatmul.f32.gmra.mxu0 %v1452
      %v2078 = vpop.f32.mrf.mxu0
      %v2079 = vadd.f32 0.0, %v2078
      %2080 = vmatmul.f32.gmra.mxu0 %v1455
      %v2081 = vpop.f32.mrf.mxu0
      %v2082 = vadd.f32 0.0, %v2081
      %2083 = vmatmul.f32.gmra.mxu0 %v1458
      %v2084 = vpop.f32.mrf.mxu0
      %v2085 = vadd.f32 0.0, %v2084
      %2086 = vmatmul.f32.gmra.mxu0 %v1461
      %v2087 = vpop.f32.mrf.mxu0
      %v2088 = vadd.f32 0.0, %v2087
      %2089 = vmatmul.f32.gmra.mxu0 %v1464
      %v2090 = vpop.f32.mrf.mxu0
      %v2091 = vadd.f32 0.0, %v2090
      %2092 = vmatmul.f32.gmra.mxu0 %v1467
      %v2093 = vpop.f32.mrf.mxu0
      %v2094 = vadd.f32 0.0, %v2093
      %2095 = vmatmul.f32.gmra.mxu0 %v1470
      %v2096 = vpop.f32.mrf.mxu0
      %v2097 = vadd.f32 0.0, %v2096
      %2098 = vmatmul.f32.gmra.mxu0 %v1473
      %v2099 = vpop.f32.mrf.mxu0
      %v2100 = vadd.f32 0.0, %v2099
      %2101 = vmatmul.f32.gmra.mxu0 %v1476
      %v2102 = vpop.f32.mrf.mxu0
      %v2103 = vadd.f32 0.0, %v2102
      %2104 = vmatmul.f32.gmra.mxu0 %v1479
      %v2105 = vpop.f32.mrf.mxu0
      %v2106 = vadd.f32 0.0, %v2105
      %2107 = vmatmul.f32.gmra.mxu0 %v1482
      %v2108 = vpop.f32.mrf.mxu0
      %v2109 = vadd.f32 0.0, %v2108
      %2110 = vmatmul.f32.gmra.mxu0 %v1485
      %v2111 = vpop.f32.mrf.mxu0
      %v2112 = vadd.f32 0.0, %v2111
      %2113 = vmatmul.f32.gmra.mxu0 %v1488
      %v2114 = vpop.f32.mrf.mxu0
      %v2115 = vadd.f32 0.0, %v2114
      %2116 = vmatmul.f32.gmra.mxu0 %v1491
      %v2117 = vpop.f32.mrf.mxu0
      %v2118 = vadd.f32 0.0, %v2117
      %2119 = vmatmul.f32.gmra.mxu0 %v1494
      %v2120 = vpop.f32.mrf.mxu0
      %v2121 = vadd.f32 0.0, %v2120
      %2122 = vmatmul.f32.gmra.mxu0 %v1497
      %v2123 = vpop.f32.mrf.mxu0
      %v2124 = vadd.f32 0.0, %v2123
      %2125 = vmatmul.f32.gmra.mxu0 %v1500
      %v2126 = vpop.f32.mrf.mxu0
      %v2127 = vadd.f32 0.0, %v2126
      %2128 = vmatmul.f32.gmra.mxu0 %v1503
      %v2129 = vpop.f32.mrf.mxu0
      %v2130 = vadd.f32 0.0, %v2129
      %2131 = vmatmul.f32.gmra.mxu0 %v1506
      %v2132 = vpop.f32.mrf.mxu0
      %v2133 = vadd.f32 0.0, %v2132
      %2134 = vmatmul.f32.gmra.mxu0 %v1509
      %v2135 = vpop.f32.mrf.mxu0
      %v2136 = vadd.f32 0.0, %v2135
      %2137 = vmatmul.f32.gmra.mxu0 %v1512
      %v2138 = vpop.f32.mrf.mxu0
      %v2139 = vadd.f32 0.0, %v2138
      %2140 = vmatmul.f32.gmra.mxu0 %v1515
      %v2141 = vpop.f32.mrf.mxu0
      %v2142 = vadd.f32 0.0, %v2141
      %2143 = vmatmul.f32.gmra.mxu0 %v1518
      %v2144 = vpop.f32.mrf.mxu0
      %v2145 = vadd.f32 0.0, %v2144
      %2146 = vmatmul.f32.gmra.mxu0 %v1521
      %v2147 = vpop.f32.mrf.mxu0
      %v2148 = vadd.f32 0.0, %v2147
      %2149 = vmatmul.f32.gmra.mxu0 %v1524
      %v2150 = vpop.f32.mrf.mxu0
      %v2151 = vadd.f32 0.0, %v2150
      %2152 = vmatmul.f32.gmra.mxu0 %v1527
      %v2153 = vpop.f32.mrf.mxu0
      %v2154 = vadd.f32 0.0, %v2153
      %2155 = vmatmul.f32.gmra.mxu0 %v1530
      %v2156 = vpop.f32.mrf.mxu0
      %v2157 = vadd.f32 0.0, %v2156
      %2158 = vmatmul.f32.gmra.mxu0 %v1533
      %v2159 = vpop.f32.mrf.mxu0
      %v2160 = vadd.f32 0.0, %v2159
      %2161 = vmatmul.f32.gmra.mxu0 %v1536
      %v2162 = vpop.f32.mrf.mxu0
      %v2163 = vadd.f32 0.0, %v2162
      %2164 = vmatmul.f32.gmra.mxu0 %v1539
      %v2165 = vpop.f32.mrf.mxu0
      %v2166 = vadd.f32 0.0, %v2165
      %2167 = vmatmul.f32.gmra.mxu0 %v1542
      %v2168 = vpop.f32.mrf.mxu0
      %v2169 = vadd.f32 0.0, %v2168
      %2170 = vmatmul.f32.gmra.mxu0 %v1545
      %v2171 = vpop.f32.mrf.mxu0
      %v2172 = vadd.f32 0.0, %v2171
      %2173 = vmatmul.f32.gmra.mxu0 %v1548
      %v2174 = vpop.f32.mrf.mxu0
      %v2175 = vadd.f32 0.0, %v2174
      %2176 = vmatmul.f32.gmra.mxu0 %v1551
      %v2177 = vpop.f32.mrf.mxu0
      %v2178 = vadd.f32 0.0, %v2177
      %2179 = vmatmul.f32.gmra.mxu0 %v1554
      %v2180 = vpop.f32.mrf.mxu0
      %v2181 = vadd.f32 0.0, %v2180
      %2182 = vmatmul.f32.gmra.mxu0 %v1557
      %v2183 = vpop.f32.mrf.mxu0
      %v2184 = vadd.f32 0.0, %v2183
      %2185 = vmatmul.f32.gmra.mxu0 %v1560
      %v2186 = vpop.f32.mrf.mxu0
      %v2187 = vadd.f32 0.0, %v2186
      %2188 = vmatmul.f32.gmra.mxu0 %v1563
      %v2189 = vpop.f32.mrf.mxu0
      %v2190 = vadd.f32 0.0, %v2189
      %2191 = vmatmul.f32.gmra.mxu0 %v1566
      %v2192 = vpop.f32.mrf.mxu0
      %v2193 = vadd.f32 0.0, %v2192
      %2194 = vmatmul.f32.gmra.mxu0 %v1569
      %v2195 = vpop.f32.mrf.mxu0
      %v2196 = vadd.f32 0.0, %v2195
      %2197 = vmatmul.f32.gmra.mxu0 %v1572
      %v2198 = vpop.f32.mrf.mxu0
      %v2199 = vadd.f32 0.0, %v2198
      %2200 = vmatmul.f32.gmra.mxu0 %v1575
      %v2201 = vpop.f32.mrf.mxu0
      %v2202 = vadd.f32 0.0, %v2201
      %2203 = vmatmul.f32.gmra.mxu0 %v1578
      %v2204 = vpop.f32.mrf.mxu0
      %v2205 = vadd.f32 0.0, %v2204
      %2206 = vmatmul.f32.gmra.mxu0 %v1581
      %v2207 = vpop.f32.mrf.mxu0
      %v2208 = vadd.f32 0.0, %v2207
      %2209 = vmatmul.f32.gmra.mxu0 %v1584
      %v2210 = vpop.f32.mrf.mxu0
      %v2211 = vadd.f32 0.0, %v2210
      %2212 = vmatmul.f32.gmra.mxu0 %v1587
      %v2213 = vpop.f32.mrf.mxu0
      %v2214 = vadd.f32 0.0, %v2213
      %2215 = vdwg.mxu0
      %v2216 = vld [vmem:[%s2] sm:$0x1]
      %2217 = vset.pattern.permute.xlu0 1
      %2218 = vperm.xlu0 %2217, %v302
      %v2219 = vpop.permute.xlu0 %2218
      %2221 = vset.pattern.permute.xlu0 1
      %2222 = vperm.xlu0 %2221, %v303
      %v2223 = vpop.permute.xlu0 %2222
      %2225 = vset.pattern.permute.xlu0 1
      %2226 = vperm.xlu0 %2225, %v304
      %v2227 = vpop.permute.xlu0 %2226
      %2229 = vset.pattern.permute.xlu0 1
      %2230 = vperm.xlu0 %2229, %v305
      %v2231 = vpop.permute.xlu0 %2230
      %2233 = vset.pattern.permute.xlu0 1
      %2234 = vperm.xlu0 %2233, %v306
      %v2235 = vpop.permute.xlu0 %2234
      %2237 = vset.pattern.permute.xlu0 1
      %2238 = vperm.xlu0 %2237, %v307
      %v2239 = vpop.permute.xlu0 %2238
      %2241 = vset.pattern.permute.xlu0 1
      %2242 = vperm.xlu0 %2241, %v308
      %v2243 = vpop.permute.xlu0 %2242
      %2245 = vset.pattern.permute.xlu0 1
      %2246 = vperm.xlu0 %2245, %v309
      %v2247 = vpop.permute.xlu0 %2246
      %2249 = vset.pattern.permute.xlu0 1
      %2250 = vperm.xlu0 %2249, %v310
      %v2251 = vpop.permute.xlu0 %2250
      %2253 = vset.pattern.permute.xlu0 1
      %2254 = vperm.xlu0 %2253, %v311
      %v2255 = vpop.permute.xlu0 %2254
      %2257 = vset.pattern.permute.xlu0 1
      %2258 = vperm.xlu0 %2257, %v312
      %v2259 = vpop.permute.xlu0 %2258
      %2261 = vset.pattern.permute.xlu0 1
      %2262 = vperm.xlu0 %2261, %v313
      %v2263 = vpop.permute.xlu0 %2262
      %2265 = vset.pattern.permute.xlu0 1
      %2266 = vperm.xlu0 %2265, %v314
      %v2267 = vpop.permute.xlu0 %2266
      %2269 = vset.pattern.permute.xlu0 1
      %2270 = vperm.xlu0 %2269, %v315
      %v2271 = vpop.permute.xlu0 %2270
      %2273 = vset.pattern.permute.xlu0 1
      %2274 = vperm.xlu0 %2273, %v316
      %v2275 = vpop.permute.xlu0 %2274
      %2277 = vset.pattern.permute.xlu0 1
      %2278 = vperm.xlu0 %2277, %v317
      %v2279 = vpop.permute.xlu0 %2278
      %2281 = vset.pattern.permute.xlu0 1
      %2282 = vperm.xlu0 %2281, %v318
      %v2283 = vpop.permute.xlu0 %2282
      %2285 = vset.pattern.permute.xlu0 1
      %2286 = vperm.xlu0 %2285, %v319
      %v2287 = vpop.permute.xlu0 %2286
      %2289 = vset.pattern.permute.xlu0 1
      %2290 = vperm.xlu0 %2289, %v320
      %v2291 = vpop.permute.xlu0 %2290
      %2293 = vset.pattern.permute.xlu0 1
      %2294 = vperm.xlu0 %2293, %v321
      %v2295 = vpop.permute.xlu0 %2294
      %2297 = vset.pattern.permute.xlu0 1
      %2298 = vperm.xlu0 %2297, %v322
      %v2299 = vpop.permute.xlu0 %2298
      %2301 = vset.pattern.permute.xlu0 1
      %2302 = vperm.xlu0 %2301, %v323
      %v2303 = vpop.permute.xlu0 %2302
      %2305 = vset.pattern.permute.xlu0 1
      %2306 = vperm.xlu0 %2305, %v324
      %v2307 = vpop.permute.xlu0 %2306
      %2309 = vset.pattern.permute.xlu0 1
      %2310 = vperm.xlu0 %2309, %v325
      %v2311 = vpop.permute.xlu0 %2310
      %2313 = vset.pattern.permute.xlu0 1
      %2314 = vperm.xlu0 %2313, %v326
      %v2315 = vpop.permute.xlu0 %2314
      %2317 = vset.pattern.permute.xlu0 1
      %2318 = vperm.xlu0 %2317, %v327
      %v2319 = vpop.permute.xlu0 %2318
      %2321 = vset.pattern.permute.xlu0 1
      %2322 = vperm.xlu0 %2321, %v328
      %v2323 = vpop.permute.xlu0 %2322
      %2325 = vset.pattern.permute.xlu0 1
      %2326 = vperm.xlu0 %2325, %v329
      %v2327 = vpop.permute.xlu0 %2326
      %2329 = vset.pattern.permute.xlu0 1
      %2330 = vperm.xlu0 %2329, %v330
      %v2331 = vpop.permute.xlu0 %2330
      %2333 = vset.pattern.permute.xlu0 1
      %2334 = vperm.xlu0 %2333, %v331
      %v2335 = vpop.permute.xlu0 %2334
      %2337 = vset.pattern.permute.xlu0 1
      %2338 = vperm.xlu0 %2337, %v332
      %v2339 = vpop.permute.xlu0 %2338
      %2341 = vset.pattern.permute.xlu0 1
      %2342 = vperm.xlu0 %2341, %v333
      %v2343 = vpop.permute.xlu0 %2342
      %2345 = vset.pattern.permute.xlu0 1
      %2346 = vperm.xlu0 %2345, %v334
      %v2347 = vpop.permute.xlu0 %2346
      %2349 = vset.pattern.permute.xlu0 1
      %2350 = vperm.xlu0 %2349, %v335
      %v2351 = vpop.permute.xlu0 %2350
      %2353 = vset.pattern.permute.xlu0 1
      %2354 = vperm.xlu0 %2353, %v336
      %v2355 = vpop.permute.xlu0 %2354
      %2357 = vset.pattern.permute.xlu0 1
      %2358 = vperm.xlu0 %2357, %v337
      %v2359 = vpop.permute.xlu0 %2358
      %2361 = vset.pattern.permute.xlu0 1
      %2362 = vperm.xlu0 %2361, %v338
      %v2363 = vpop.permute.xlu0 %2362
      %2365 = vset.pattern.permute.xlu0 1
      %2366 = vperm.xlu0 %2365, %v339
      %v2367 = vpop.permute.xlu0 %2366
      %2369 = vset.pattern.permute.xlu0 1
      %2370 = vperm.xlu0 %2369, %v340
      %v2371 = vpop.permute.xlu0 %2370
      %2373 = vset.pattern.permute.xlu0 1
      %2374 = vperm.xlu0 %2373, %v341
      %v2375 = vpop.permute.xlu0 %2374
      %2377 = vset.pattern.permute.xlu0 1
      %2378 = vperm.xlu0 %2377, %v342
      %v2379 = vpop.permute.xlu0 %2378
      %2381 = vset.pattern.permute.xlu0 1
      %2382 = vperm.xlu0 %2381, %v343
      %v2383 = vpop.permute.xlu0 %2382
      %2385 = vset.pattern.permute.xlu0 1
      %2386 = vperm.xlu0 %2385, %v344
      %v2387 = vpop.permute.xlu0 %2386
      %2389 = vset.pattern.permute.xlu0 1
      %2390 = vperm.xlu0 %2389, %v345
      %v2391 = vpop.permute.xlu0 %2390
      %2393 = vset.pattern.permute.xlu0 1
      %2394 = vperm.xlu0 %2393, %v346
      %v2395 = vpop.permute.xlu0 %2394
      %2397 = vset.pattern.permute.xlu0 1
      %2398 = vperm.xlu0 %2397, %v347
      %v2399 = vpop.permute.xlu0 %2398
      %2401 = vset.pattern.permute.xlu0 1
      %2402 = vperm.xlu0 %2401, %v348
      %v2403 = vpop.permute.xlu0 %2402
      %2405 = vset.pattern.permute.xlu0 1
      %2406 = vperm.xlu0 %2405, %v349
      %v2407 = vpop.permute.xlu0 %2406
      %2409 = vset.pattern.permute.xlu0 1
      %2410 = vperm.xlu0 %2409, %v350
      %v2411 = vpop.permute.xlu0 %2410
      %2413 = vset.pattern.permute.xlu0 1
      %2414 = vperm.xlu0 %2413, %v351
      %v2415 = vpop.permute.xlu0 %2414
      %2417 = vset.pattern.permute.xlu0 1
      %2418 = vperm.xlu0 %2417, %v352
      %v2419 = vpop.permute.xlu0 %2418
      %2421 = vset.pattern.permute.xlu0 1
      %2422 = vperm.xlu0 %2421, %v353
      %v2423 = vpop.permute.xlu0 %2422
      %2425 = vset.pattern.permute.xlu0 1
      %2426 = vperm.xlu0 %2425, %v354
      %v2427 = vpop.permute.xlu0 %2426
      %2429 = vset.pattern.permute.xlu0 1
      %2430 = vperm.xlu0 %2429, %v355
      %v2431 = vpop.permute.xlu0 %2430
      %2433 = vset.pattern.permute.xlu0 1
      %2434 = vperm.xlu0 %2433, %v356
      %v2435 = vpop.permute.xlu0 %2434
      %2437 = vset.pattern.permute.xlu0 1
      %2438 = vperm.xlu0 %2437, %v357
      %v2439 = vpop.permute.xlu0 %2438
      %2441 = vset.pattern.permute.xlu0 1
      %2442 = vperm.xlu0 %2441, %v358
      %v2443 = vpop.permute.xlu0 %2442
      %2445 = vset.pattern.permute.xlu0 1
      %2446 = vperm.xlu0 %2445, %v359
      %v2447 = vpop.permute.xlu0 %2446
      %2449 = vset.pattern.permute.xlu0 1
      %2450 = vperm.xlu0 %2449, %v360
      %v2451 = vpop.permute.xlu0 %2450
      %2453 = vset.pattern.permute.xlu0 1
      %2454 = vperm.xlu0 %2453, %v361
      %v2455 = vpop.permute.xlu0 %2454
      %2457 = vset.pattern.permute.xlu0 1
      %2458 = vperm.xlu0 %2457, %v362
      %v2459 = vpop.permute.xlu0 %2458
      %2461 = vset.pattern.permute.xlu0 1
      %2462 = vperm.xlu0 %2461, %v363
      %v2463 = vpop.permute.xlu0 %2462
      %2465 = vset.pattern.permute.xlu0 1
      %2466 = vperm.xlu0 %2465, %v364
      %v2467 = vpop.permute.xlu0 %2466
      %2469 = vset.pattern.permute.xlu0 1
      %2470 = vperm.xlu0 %2469, %v365
      %v2471 = vpop.permute.xlu0 %2470
      %v2473 = vperm.slane %v2216, 0
      %v2474 = vsub.f32 %v2219, %v2473
      %v2475 = vsub.f32 %v2223, %v2473
      %v2476 = vsub.f32 %v2227, %v2473
      %v2477 = vsub.f32 %v2231, %v2473
      %v2478 = vsub.f32 %v2235, %v2473
      %v2479 = vsub.f32 %v2239, %v2473
      %v2480 = vsub.f32 %v2243, %v2473
      %v2481 = vsub.f32 %v2247, %v2473
      %v2482 = vsub.f32 %v2251, %v2473
      %v2483 = vsub.f32 %v2255, %v2473
      %v2484 = vsub.f32 %v2259, %v2473
      %v2485 = vsub.f32 %v2263, %v2473
      %v2486 = vsub.f32 %v2267, %v2473
      %v2487 = vsub.f32 %v2271, %v2473
      %v2488 = vsub.f32 %v2275, %v2473
      %v2489 = vsub.f32 %v2279, %v2473
      %v2490 = vsub.f32 %v2283, %v2473
      %v2491 = vsub.f32 %v2287, %v2473
      %v2492 = vsub.f32 %v2291, %v2473
      %v2493 = vsub.f32 %v2295, %v2473
      %v2494 = vsub.f32 %v2299, %v2473
      %v2495 = vsub.f32 %v2303, %v2473
      %v2496 = vsub.f32 %v2307, %v2473
      %v2497 = vsub.f32 %v2311, %v2473
      %v2498 = vsub.f32 %v2315, %v2473
      %v2499 = vsub.f32 %v2319, %v2473
      %v2500 = vsub.f32 %v2323, %v2473
      %v2501 = vsub.f32 %v2327, %v2473
      %v2502 = vsub.f32 %v2331, %v2473
      %v2503 = vsub.f32 %v2335, %v2473
      %v2504 = vsub.f32 %v2339, %v2473
      %v2505 = vsub.f32 %v2343, %v2473
      %v2506 = vsub.f32 %v2347, %v2473
      %v2507 = vsub.f32 %v2351, %v2473
      %v2508 = vsub.f32 %v2355, %v2473
      %v2509 = vsub.f32 %v2359, %v2473
      %v2510 = vsub.f32 %v2363, %v2473
      %v2511 = vsub.f32 %v2367, %v2473
      %v2512 = vsub.f32 %v2371, %v2473
      %v2513 = vsub.f32 %v2375, %v2473
      %v2514 = vsub.f32 %v2379, %v2473
      %v2515 = vsub.f32 %v2383, %v2473
      %v2516 = vsub.f32 %v2387, %v2473
      %v2517 = vsub.f32 %v2391, %v2473
      %v2518 = vsub.f32 %v2395, %v2473
      %v2519 = vsub.f32 %v2399, %v2473
      %v2520 = vsub.f32 %v2403, %v2473
      %v2521 = vsub.f32 %v2407, %v2473
      %v2522 = vsub.f32 %v2411, %v2473
      %v2523 = vsub.f32 %v2415, %v2473
      %v2524 = vsub.f32 %v2419, %v2473
      %v2525 = vsub.f32 %v2423, %v2473
      %v2526 = vsub.f32 %v2427, %v2473
      %v2527 = vsub.f32 %v2431, %v2473
      %v2528 = vsub.f32 %v2435, %v2473
      %v2529 = vsub.f32 %v2439, %v2473
      %v2530 = vsub.f32 %v2443, %v2473
      %v2531 = vsub.f32 %v2447, %v2473
      %v2532 = vsub.f32 %v2451, %v2473
      %v2533 = vsub.f32 %v2455, %v2473
      %v2534 = vsub.f32 %v2459, %v2473
      %v2535 = vsub.f32 %v2463, %v2473
      %v2536 = vsub.f32 %v2467, %v2473
      %v2537 = vsub.f32 %v2471, %v2473
      %v2538 = vand.u32 2147483647, %v2474
      %v2539 = vand.u32 2147483647, %v2475
      %v2540 = vand.u32 2147483647, %v2476
      %v2541 = vand.u32 2147483647, %v2477
      %v2542 = vand.u32 2147483647, %v2478
      %v2543 = vand.u32 2147483647, %v2479
      %v2544 = vand.u32 2147483647, %v2480
      %v2545 = vand.u32 2147483647, %v2481
      %v2546 = vand.u32 2147483647, %v2482
      %v2547 = vand.u32 2147483647, %v2483
      %v2548 = vand.u32 2147483647, %v2484
      %v2549 = vand.u32 2147483647, %v2485
      %v2550 = vand.u32 2147483647, %v2486
      %v2551 = vand.u32 2147483647, %v2487
      %v2552 = vand.u32 2147483647, %v2488
      %v2553 = vand.u32 2147483647, %v2489
      %v2554 = vand.u32 2147483647, %v2490
      %v2555 = vand.u32 2147483647, %v2491
      %v2556 = vand.u32 2147483647, %v2492
      %v2557 = vand.u32 2147483647, %v2493
      %v2558 = vand.u32 2147483647, %v2494
      %v2559 = vand.u32 2147483647, %v2495
      %v2560 = vand.u32 2147483647, %v2496
      %v2561 = vand.u32 2147483647, %v2497
      %v2562 = vand.u32 2147483647, %v2498
      %v2563 = vand.u32 2147483647, %v2499
      %v2564 = vand.u32 2147483647, %v2500
      %v2565 = vand.u32 2147483647, %v2501
      %v2566 = vand.u32 2147483647, %v2502
      %v2567 = vand.u32 2147483647, %v2503
      %v2568 = vand.u32 2147483647, %v2504
      %v2569 = vand.u32 2147483647, %v2505
      %v2570 = vand.u32 2147483647, %v2506
      %v2571 = vand.u32 2147483647, %v2507
      %v2572 = vand.u32 2147483647, %v2508
      %v2573 = vand.u32 2147483647, %v2509
      %v2574 = vand.u32 2147483647, %v2510
      %v2575 = vand.u32 2147483647, %v2511
      %v2576 = vand.u32 2147483647, %v2512
      %v2577 = vand.u32 2147483647, %v2513
      %v2578 = vand.u32 2147483647, %v2514
      %v2579 = vand.u32 2147483647, %v2515
      %v2580 = vand.u32 2147483647, %v2516
      %v2581 = vand.u32 2147483647, %v2517
      %v2582 = vand.u32 2147483647, %v2518
      %v2583 = vand.u32 2147483647, %v2519
      %v2584 = vand.u32 2147483647, %v2520
      %v2585 = vand.u32 2147483647, %v2521
      %v2586 = vand.u32 2147483647, %v2522
      %v2587 = vand.u32 2147483647, %v2523
      %v2588 = vand.u32 2147483647, %v2524
      %v2589 = vand.u32 2147483647, %v2525
      %v2590 = vand.u32 2147483647, %v2526
      %v2591 = vand.u32 2147483647, %v2527
      %v2592 = vand.u32 2147483647, %v2528
      %v2593 = vand.u32 2147483647, %v2529
      %v2594 = vand.u32 2147483647, %v2530
      %v2595 = vand.u32 2147483647, %v2531
      %v2596 = vand.u32 2147483647, %v2532
      %v2597 = vand.u32 2147483647, %v2533
      %v2598 = vand.u32 2147483647, %v2534
      %v2599 = vand.u32 2147483647, %v2535
      %v2600 = vand.u32 2147483647, %v2536
      %v2601 = vand.u32 2147483647, %v2537
      %vm2602 = vcmp.lt.f32.partialorder %v2538, 0.5
      %vm2603 = vcmp.lt.f32.partialorder %v2539, 0.5
      %vm2604 = vcmp.lt.f32.partialorder %v2540, 0.5
      %vm2605 = vcmp.lt.f32.partialorder %v2541, 0.5
      %vm2606 = vcmp.lt.f32.partialorder %v2542, 0.5
      %vm2607 = vcmp.lt.f32.partialorder %v2543, 0.5
      %vm2608 = vcmp.lt.f32.partialorder %v2544, 0.5
      %vm2609 = vcmp.lt.f32.partialorder %v2545, 0.5
      %vm2610 = vcmp.lt.f32.partialorder %v2546, 0.5
      %vm2611 = vcmp.lt.f32.partialorder %v2547, 0.5
      %vm2612 = vcmp.lt.f32.partialorder %v2548, 0.5
      %vm2613 = vcmp.lt.f32.partialorder %v2549, 0.5
      %vm2614 = vcmp.lt.f32.partialorder %v2550, 0.5
      %vm2615 = vcmp.lt.f32.partialorder %v2551, 0.5
      %vm2616 = vcmp.lt.f32.partialorder %v2552, 0.5
      %vm2617 = vcmp.lt.f32.partialorder %v2553, 0.5
      %vm2618 = vcmp.lt.f32.partialorder %v2554, 0.5
      %vm2619 = vcmp.lt.f32.partialorder %v2555, 0.5
      %vm2620 = vcmp.lt.f32.partialorder %v2556, 0.5
      %vm2621 = vcmp.lt.f32.partialorder %v2557, 0.5
      %vm2622 = vcmp.lt.f32.partialorder %v2558, 0.5
      %vm2623 = vcmp.lt.f32.partialorder %v2559, 0.5
      %vm2624 = vcmp.lt.f32.partialorder %v2560, 0.5
      %vm2625 = vcmp.lt.f32.partialorder %v2561, 0.5
      %vm2626 = vcmp.lt.f32.partialorder %v2562, 0.5
      %vm2627 = vcmp.lt.f32.partialorder %v2563, 0.5
      %vm2628 = vcmp.lt.f32.partialorder %v2564, 0.5
      %vm2629 = vcmp.lt.f32.partialorder %v2565, 0.5
      %vm2630 = vcmp.lt.f32.partialorder %v2566, 0.5
      %vm2631 = vcmp.lt.f32.partialorder %v2567, 0.5
      %vm2632 = vcmp.lt.f32.partialorder %v2568, 0.5
      %vm2633 = vcmp.lt.f32.partialorder %v2569, 0.5
      %vm2634 = vcmp.lt.f32.partialorder %v2570, 0.5
      %vm2635 = vcmp.lt.f32.partialorder %v2571, 0.5
      %vm2636 = vcmp.lt.f32.partialorder %v2572, 0.5
      %vm2637 = vcmp.lt.f32.partialorder %v2573, 0.5
      %vm2638 = vcmp.lt.f32.partialorder %v2574, 0.5
      %vm2639 = vcmp.lt.f32.partialorder %v2575, 0.5
      %vm2640 = vcmp.lt.f32.partialorder %v2576, 0.5
      %vm2641 = vcmp.lt.f32.partialorder %v2577, 0.5
      %vm2642 = vcmp.lt.f32.partialorder %v2578, 0.5
      %vm2643 = vcmp.lt.f32.partialorder %v2579, 0.5
      %vm2644 = vcmp.lt.f32.partialorder %v2580, 0.5
      %vm2645 = vcmp.lt.f32.partialorder %v2581, 0.5
      %vm2646 = vcmp.lt.f32.partialorder %v2582, 0.5
      %vm2647 = vcmp.lt.f32.partialorder %v2583, 0.5
      %vm2648 = vcmp.lt.f32.partialorder %v2584, 0.5
      %vm2649 = vcmp.lt.f32.partialorder %v2585, 0.5
      %vm2650 = vcmp.lt.f32.partialorder %v2586, 0.5
      %vm2651 = vcmp.lt.f32.partialorder %v2587, 0.5
      %vm2652 = vcmp.lt.f32.partialorder %v2588, 0.5
      %vm2653 = vcmp.lt.f32.partialorder %v2589, 0.5
      %vm2654 = vcmp.lt.f32.partialorder %v2590, 0.5
      %vm2655 = vcmp.lt.f32.partialorder %v2591, 0.5
      %vm2656 = vcmp.lt.f32.partialorder %v2592, 0.5
      %vm2657 = vcmp.lt.f32.partialorder %v2593, 0.5
      %vm2658 = vcmp.lt.f32.partialorder %v2594, 0.5
      %vm2659 = vcmp.lt.f32.partialorder %v2595, 0.5
      %vm2660 = vcmp.lt.f32.partialorder %v2596, 0.5
      %vm2661 = vcmp.lt.f32.partialorder %v2597, 0.5
      %vm2662 = vcmp.lt.f32.partialorder %v2598, 0.5
      %vm2663 = vcmp.lt.f32.partialorder %v2599, 0.5
      %vm2664 = vcmp.lt.f32.partialorder %v2600, 0.5
      %vm2665 = vcmp.lt.f32.partialorder %v2601, 0.5
      %v2666 = vmul.f32 %v2474, %v2474
      %v2667 = vmul.f32 %v2475, %v2475
      %v2668 = vmul.f32 %v2476, %v2476
      %v2669 = vmul.f32 %v2477, %v2477
      %v2670 = vmul.f32 %v2478, %v2478
      %v2671 = vmul.f32 %v2479, %v2479
      %v2672 = vmul.f32 %v2480, %v2480
      %v2673 = vmul.f32 %v2481, %v2481
      %v2674 = vmul.f32 %v2482, %v2482
      %v2675 = vmul.f32 %v2483, %v2483
      %v2676 = vmul.f32 %v2484, %v2484
      %v2677 = vmul.f32 %v2485, %v2485
      %v2678 = vmul.f32 %v2486, %v2486
      %v2679 = vmul.f32 %v2487, %v2487
      %v2680 = vmul.f32 %v2488, %v2488
      %v2681 = vmul.f32 %v2489, %v2489
      %v2682 = vmul.f32 %v2490, %v2490
      %v2683 = vmul.f32 %v2491, %v2491
      %v2684 = vmul.f32 %v2492, %v2492
      %v2685 = vmul.f32 %v2493, %v2493
      %v2686 = vmul.f32 %v2494, %v2494
      %v2687 = vmul.f32 %v2495, %v2495
      %v2688 = vmul.f32 %v2496, %v2496
      %v2689 = vmul.f32 %v2497, %v2497
      %v2690 = vmul.f32 %v2498, %v2498
      %v2691 = vmul.f32 %v2499, %v2499
      %v2692 = vmul.f32 %v2500, %v2500
      %v2693 = vmul.f32 %v2501, %v2501
      %v2694 = vmul.f32 %v2502, %v2502
      %v2695 = vmul.f32 %v2503, %v2503
      %v2696 = vmul.f32 %v2504, %v2504
      %v2697 = vmul.f32 %v2505, %v2505
      %v2698 = vmul.f32 %v2506, %v2506
      %v2699 = vmul.f32 %v2507, %v2507
      %v2700 = vmul.f32 %v2508, %v2508
      %v2701 = vmul.f32 %v2509, %v2509
      %v2702 = vmul.f32 %v2510, %v2510
      %v2703 = vmul.f32 %v2511, %v2511
      %v2704 = vmul.f32 %v2512, %v2512
      %v2705 = vmul.f32 %v2513, %v2513
      %v2706 = vmul.f32 %v2514, %v2514
      %v2707 = vmul.f32 %v2515, %v2515
      %v2708 = vmul.f32 %v2516, %v2516
      %v2709 = vmul.f32 %v2517, %v2517
      %v2710 = vmul.f32 %v2518, %v2518
      %v2711 = vmul.f32 %v2519, %v2519
      %v2712 = vmul.f32 %v2520, %v2520
      %v2713 = vmul.f32 %v2521, %v2521
      %v2714 = vmul.f32 %v2522, %v2522
      %v2715 = vmul.f32 %v2523, %v2523
      %v2716 = vmul.f32 %v2524, %v2524
      %v2717 = vmul.f32 %v2525, %v2525
      %v2718 = vmul.f32 %v2526, %v2526
      %v2719 = vmul.f32 %v2527, %v2527
      %v2720 = vmul.f32 %v2528, %v2528
      %v2721 = vmul.f32 %v2529, %v2529
      %v2722 = vmul.f32 %v2530, %v2530
      %v2723 = vmul.f32 %v2531, %v2531
      %v2724 = vmul.f32 %v2532, %v2532
      %v2725 = vmul.f32 %v2533, %v2533
      %v2726 = vmul.f32 %v2534, %v2534
      %v2727 = vmul.f32 %v2535, %v2535
      %v2728 = vmul.f32 %v2536, %v2536
      %v2729 = vmul.f32 %v2537, %v2537
      %v2730 = vsub.f32 0.75, %v2666
      %v2731 = vsub.f32 0.75, %v2667
      %v2732 = vsub.f32 0.75, %v2668
      %v2733 = vsub.f32 0.75, %v2669
      %v2734 = vsub.f32 0.75, %v2670
      %v2735 = vsub.f32 0.75, %v2671
      %v2736 = vsub.f32 0.75, %v2672
      %v2737 = vsub.f32 0.75, %v2673
      %v2738 = vsub.f32 0.75, %v2674
      %v2739 = vsub.f32 0.75, %v2675
      %v2740 = vsub.f32 0.75, %v2676
      %v2741 = vsub.f32 0.75, %v2677
      %v2742 = vsub.f32 0.75, %v2678
      %v2743 = vsub.f32 0.75, %v2679
      %v2744 = vsub.f32 0.75, %v2680
      %v2745 = vsub.f32 0.75, %v2681
      %v2746 = vsub.f32 0.75, %v2682
      %v2747 = vsub.f32 0.75, %v2683
      %v2748 = vsub.f32 0.75, %v2684
      %v2749 = vsub.f32 0.75, %v2685
      %v2750 = vsub.f32 0.75, %v2686
      %v2751 = vsub.f32 0.75, %v2687
      %v2752 = vsub.f32 0.75, %v2688
      %v2753 = vsub.f32 0.75, %v2689
      %v2754 = vsub.f32 0.75, %v2690
      %v2755 = vsub.f32 0.75, %v2691
      %v2756 = vsub.f32 0.75, %v2692
      %v2757 = vsub.f32 0.75, %v2693
      %v2758 = vsub.f32 0.75, %v2694
      %v2759 = vsub.f32 0.75, %v2695
      %v2760 = vsub.f32 0.75, %v2696
      %v2761 = vsub.f32 0.75, %v2697
      %v2762 = vsub.f32 0.75, %v2698
      %v2763 = vsub.f32 0.75, %v2699
      %v2764 = vsub.f32 0.75, %v2700
      %v2765 = vsub.f32 0.75, %v2701
      %v2766 = vsub.f32 0.75, %v2702
      %v2767 = vsub.f32 0.75, %v2703
      %v2768 = vsub.f32 0.75, %v2704
      %v2769 = vsub.f32 0.75, %v2705
      %v2770 = vsub.f32 0.75, %v2706
      %v2771 = vsub.f32 0.75, %v2707
      %v2772 = vsub.f32 0.75, %v2708
      %v2773 = vsub.f32 0.75, %v2709
      %v2774 = vsub.f32 0.75, %v2710
      %v2775 = vsub.f32 0.75, %v2711
      %v2776 = vsub.f32 0.75, %v2712
      %v2777 = vsub.f32 0.75, %v2713
      %v2778 = vsub.f32 0.75, %v2714
      %v2779 = vsub.f32 0.75, %v2715
      %v2780 = vsub.f32 0.75, %v2716
      %v2781 = vsub.f32 0.75, %v2717
      %v2782 = vsub.f32 0.75, %v2718
      %v2783 = vsub.f32 0.75, %v2719
      %v2784 = vsub.f32 0.75, %v2720
      %v2785 = vsub.f32 0.75, %v2721
      %v2786 = vsub.f32 0.75, %v2722
      %v2787 = vsub.f32 0.75, %v2723
      %v2788 = vsub.f32 0.75, %v2724
      %v2789 = vsub.f32 0.75, %v2725
      %v2790 = vsub.f32 0.75, %v2726
      %v2791 = vsub.f32 0.75, %v2727
      %v2792 = vsub.f32 0.75, %v2728
      %v2793 = vsub.f32 0.75, %v2729
      %vm2794 = vcmp.lt.f32.partialorder %v2538, 1.5
      %vm2795 = vcmp.lt.f32.partialorder %v2539, 1.5
      %vm2796 = vcmp.lt.f32.partialorder %v2540, 1.5
      %vm2797 = vcmp.lt.f32.partialorder %v2541, 1.5
      %vm2798 = vcmp.lt.f32.partialorder %v2542, 1.5
      %vm2799 = vcmp.lt.f32.partialorder %v2543, 1.5
      %vm2800 = vcmp.lt.f32.partialorder %v2544, 1.5
      %vm2801 = vcmp.lt.f32.partialorder %v2545, 1.5
      %vm2802 = vcmp.lt.f32.partialorder %v2546, 1.5
      %vm2803 = vcmp.lt.f32.partialorder %v2547, 1.5
      %vm2804 = vcmp.lt.f32.partialorder %v2548, 1.5
      %vm2805 = vcmp.lt.f32.partialorder %v2549, 1.5
      %vm2806 = vcmp.lt.f32.partialorder %v2550, 1.5
      %vm2807 = vcmp.lt.f32.partialorder %v2551, 1.5
      %vm2808 = vcmp.lt.f32.partialorder %v2552, 1.5
      %vm2809 = vcmp.lt.f32.partialorder %v2553, 1.5
      %vm2810 = vcmp.lt.f32.partialorder %v2554, 1.5
      %vm2811 = vcmp.lt.f32.partialorder %v2555, 1.5
      %vm2812 = vcmp.lt.f32.partialorder %v2556, 1.5
      %vm2813 = vcmp.lt.f32.partialorder %v2557, 1.5
      %vm2814 = vcmp.lt.f32.partialorder %v2558, 1.5
      %vm2815 = vcmp.lt.f32.partialorder %v2559, 1.5
      %vm2816 = vcmp.lt.f32.partialorder %v2560, 1.5
      %vm2817 = vcmp.lt.f32.partialorder %v2561, 1.5
      %vm2818 = vcmp.lt.f32.partialorder %v2562, 1.5
      %vm2819 = vcmp.lt.f32.partialorder %v2563, 1.5
      %vm2820 = vcmp.lt.f32.partialorder %v2564, 1.5
      %vm2821 = vcmp.lt.f32.partialorder %v2565, 1.5
      %vm2822 = vcmp.lt.f32.partialorder %v2566, 1.5
      %vm2823 = vcmp.lt.f32.partialorder %v2567, 1.5
      %vm2824 = vcmp.lt.f32.partialorder %v2568, 1.5
      %vm2825 = vcmp.lt.f32.partialorder %v2569, 1.5
      %vm2826 = vcmp.lt.f32.partialorder %v2570, 1.5
      %vm2827 = vcmp.lt.f32.partialorder %v2571, 1.5
      %vm2828 = vcmp.lt.f32.partialorder %v2572, 1.5
      %vm2829 = vcmp.lt.f32.partialorder %v2573, 1.5
      %vm2830 = vcmp.lt.f32.partialorder %v2574, 1.5
      %vm2831 = vcmp.lt.f32.partialorder %v2575, 1.5
      %vm2832 = vcmp.lt.f32.partialorder %v2576, 1.5
      %vm2833 = vcmp.lt.f32.partialorder %v2577, 1.5
      %vm2834 = vcmp.lt.f32.partialorder %v2578, 1.5
      %vm2835 = vcmp.lt.f32.partialorder %v2579, 1.5
      %vm2836 = vcmp.lt.f32.partialorder %v2580, 1.5
      %vm2837 = vcmp.lt.f32.partialorder %v2581, 1.5
      %vm2838 = vcmp.lt.f32.partialorder %v2582, 1.5
      %vm2839 = vcmp.lt.f32.partialorder %v2583, 1.5
      %vm2840 = vcmp.lt.f32.partialorder %v2584, 1.5
      %vm2841 = vcmp.lt.f32.partialorder %v2585, 1.5
      %vm2842 = vcmp.lt.f32.partialorder %v2586, 1.5
      %vm2843 = vcmp.lt.f32.partialorder %v2587, 1.5
      %vm2844 = vcmp.lt.f32.partialorder %v2588, 1.5
      %vm2845 = vcmp.lt.f32.partialorder %v2589, 1.5
      %vm2846 = vcmp.lt.f32.partialorder %v2590, 1.5
      %vm2847 = vcmp.lt.f32.partialorder %v2591, 1.5
      %vm2848 = vcmp.lt.f32.partialorder %v2592, 1.5
      %vm2849 = vcmp.lt.f32.partialorder %v2593, 1.5
      %vm2850 = vcmp.lt.f32.partialorder %v2594, 1.5
      %vm2851 = vcmp.lt.f32.partialorder %v2595, 1.5
      %vm2852 = vcmp.lt.f32.partialorder %v2596, 1.5
      %vm2853 = vcmp.lt.f32.partialorder %v2597, 1.5
      %vm2854 = vcmp.lt.f32.partialorder %v2598, 1.5
      %vm2855 = vcmp.lt.f32.partialorder %v2599, 1.5
      %vm2856 = vcmp.lt.f32.partialorder %v2600, 1.5
      %vm2857 = vcmp.lt.f32.partialorder %v2601, 1.5
      %v2858 = vsub.f32 1.5, %v2538
      %v2859 = vsub.f32 1.5, %v2539
      %v2860 = vsub.f32 1.5, %v2540
      %v2861 = vsub.f32 1.5, %v2541
      %v2862 = vsub.f32 1.5, %v2542
      %v2863 = vsub.f32 1.5, %v2543
      %v2864 = vsub.f32 1.5, %v2544
      %v2865 = vsub.f32 1.5, %v2545
      %v2866 = vsub.f32 1.5, %v2546
      %v2867 = vsub.f32 1.5, %v2547
      %v2868 = vsub.f32 1.5, %v2548
      %v2869 = vsub.f32 1.5, %v2549
      %v2870 = vsub.f32 1.5, %v2550
      %v2871 = vsub.f32 1.5, %v2551
      %v2872 = vsub.f32 1.5, %v2552
      %v2873 = vsub.f32 1.5, %v2553
      %v2874 = vsub.f32 1.5, %v2554
      %v2875 = vsub.f32 1.5, %v2555
      %v2876 = vsub.f32 1.5, %v2556
      %v2877 = vsub.f32 1.5, %v2557
      %v2878 = vsub.f32 1.5, %v2558
      %v2879 = vsub.f32 1.5, %v2559
      %v2880 = vsub.f32 1.5, %v2560
      %v2881 = vsub.f32 1.5, %v2561
      %v2882 = vsub.f32 1.5, %v2562
      %v2883 = vsub.f32 1.5, %v2563
      %v2884 = vsub.f32 1.5, %v2564
      %v2885 = vsub.f32 1.5, %v2565
      %v2886 = vsub.f32 1.5, %v2566
      %v2887 = vsub.f32 1.5, %v2567
      %v2888 = vsub.f32 1.5, %v2568
      %v2889 = vsub.f32 1.5, %v2569
      %v2890 = vsub.f32 1.5, %v2570
      %v2891 = vsub.f32 1.5, %v2571
      %v2892 = vsub.f32 1.5, %v2572
      %v2893 = vsub.f32 1.5, %v2573
      %v2894 = vsub.f32 1.5, %v2574
      %v2895 = vsub.f32 1.5, %v2575
      %v2896 = vsub.f32 1.5, %v2576
      %v2897 = vsub.f32 1.5, %v2577
      %v2898 = vsub.f32 1.5, %v2578
      %v2899 = vsub.f32 1.5, %v2579
      %v2900 = vsub.f32 1.5, %v2580
      %v2901 = vsub.f32 1.5, %v2581
      %v2902 = vsub.f32 1.5, %v2582
      %v2903 = vsub.f32 1.5, %v2583
      %v2904 = vsub.f32 1.5, %v2584
      %v2905 = vsub.f32 1.5, %v2585
      %v2906 = vsub.f32 1.5, %v2586
      %v2907 = vsub.f32 1.5, %v2587
      %v2908 = vsub.f32 1.5, %v2588
      %v2909 = vsub.f32 1.5, %v2589
      %v2910 = vsub.f32 1.5, %v2590
      %v2911 = vsub.f32 1.5, %v2591
      %v2912 = vsub.f32 1.5, %v2592
      %v2913 = vsub.f32 1.5, %v2593
      %v2914 = vsub.f32 1.5, %v2594
      %v2915 = vsub.f32 1.5, %v2595
      %v2916 = vsub.f32 1.5, %v2596
      %v2917 = vsub.f32 1.5, %v2597
      %v2918 = vsub.f32 1.5, %v2598
      %v2919 = vsub.f32 1.5, %v2599
      %v2920 = vsub.f32 1.5, %v2600
      %v2921 = vsub.f32 1.5, %v2601
      %v2922 = vmul.f32 %v2858, 0.5
      %v2923 = vmul.f32 %v2859, 0.5
      %v2924 = vmul.f32 %v2860, 0.5
      %v2925 = vmul.f32 %v2861, 0.5
      %v2926 = vmul.f32 %v2862, 0.5
      %v2927 = vmul.f32 %v2863, 0.5
      %v2928 = vmul.f32 %v2864, 0.5
      %v2929 = vmul.f32 %v2865, 0.5
      %v2930 = vmul.f32 %v2866, 0.5
      %v2931 = vmul.f32 %v2867, 0.5
      %v2932 = vmul.f32 %v2868, 0.5
      %v2933 = vmul.f32 %v2869, 0.5
      %v2934 = vmul.f32 %v2870, 0.5
      %v2935 = vmul.f32 %v2871, 0.5
      %v2936 = vmul.f32 %v2872, 0.5
      %v2937 = vmul.f32 %v2873, 0.5
      %v2938 = vmul.f32 %v2874, 0.5
      %v2939 = vmul.f32 %v2875, 0.5
      %v2940 = vmul.f32 %v2876, 0.5
      %v2941 = vmul.f32 %v2877, 0.5
      %v2942 = vmul.f32 %v2878, 0.5
      %v2943 = vmul.f32 %v2879, 0.5
      %v2944 = vmul.f32 %v2880, 0.5
      %v2945 = vmul.f32 %v2881, 0.5
      %v2946 = vmul.f32 %v2882, 0.5
      %v2947 = vmul.f32 %v2883, 0.5
      %v2948 = vmul.f32 %v2884, 0.5
      %v2949 = vmul.f32 %v2885, 0.5
      %v2950 = vmul.f32 %v2886, 0.5
      %v2951 = vmul.f32 %v2887, 0.5
      %v2952 = vmul.f32 %v2888, 0.5
      %v2953 = vmul.f32 %v2889, 0.5
      %v2954 = vmul.f32 %v2890, 0.5
      %v2955 = vmul.f32 %v2891, 0.5
      %v2956 = vmul.f32 %v2892, 0.5
      %v2957 = vmul.f32 %v2893, 0.5
      %v2958 = vmul.f32 %v2894, 0.5
      %v2959 = vmul.f32 %v2895, 0.5
      %v2960 = vmul.f32 %v2896, 0.5
      %v2961 = vmul.f32 %v2897, 0.5
      %v2962 = vmul.f32 %v2898, 0.5
      %v2963 = vmul.f32 %v2899, 0.5
      %v2964 = vmul.f32 %v2900, 0.5
      %v2965 = vmul.f32 %v2901, 0.5
      %v2966 = vmul.f32 %v2902, 0.5
      %v2967 = vmul.f32 %v2903, 0.5
      %v2968 = vmul.f32 %v2904, 0.5
      %v2969 = vmul.f32 %v2905, 0.5
      %v2970 = vmul.f32 %v2906, 0.5
      %v2971 = vmul.f32 %v2907, 0.5
      %v2972 = vmul.f32 %v2908, 0.5
      %v2973 = vmul.f32 %v2909, 0.5
      %v2974 = vmul.f32 %v2910, 0.5
      %v2975 = vmul.f32 %v2911, 0.5
      %v2976 = vmul.f32 %v2912, 0.5
      %v2977 = vmul.f32 %v2913, 0.5
      %v2978 = vmul.f32 %v2914, 0.5
      %v2979 = vmul.f32 %v2915, 0.5
      %v2980 = vmul.f32 %v2916, 0.5
      %v2981 = vmul.f32 %v2917, 0.5
      %v2982 = vmul.f32 %v2918, 0.5
      %v2983 = vmul.f32 %v2919, 0.5
      %v2984 = vmul.f32 %v2920, 0.5
      %v2985 = vmul.f32 %v2921, 0.5
      %v2986 = vmul.f32 %v2922, %v2858
      %v2987 = vmul.f32 %v2923, %v2859
      %v2988 = vmul.f32 %v2924, %v2860
      %v2989 = vmul.f32 %v2925, %v2861
      %v2990 = vmul.f32 %v2926, %v2862
      %v2991 = vmul.f32 %v2927, %v2863
      %v2992 = vmul.f32 %v2928, %v2864
      %v2993 = vmul.f32 %v2929, %v2865
      %v2994 = vmul.f32 %v2930, %v2866
      %v2995 = vmul.f32 %v2931, %v2867
      %v2996 = vmul.f32 %v2932, %v2868
      %v2997 = vmul.f32 %v2933, %v2869
      %v2998 = vmul.f32 %v2934, %v2870
      %v2999 = vmul.f32 %v2935, %v2871
      %v3000 = vmul.f32 %v2936, %v2872
      %v3001 = vmul.f32 %v2937, %v2873
      %v3002 = vmul.f32 %v2938, %v2874
      %v3003 = vmul.f32 %v2939, %v2875
      %v3004 = vmul.f32 %v2940, %v2876
      %v3005 = vmul.f32 %v2941, %v2877
      %v3006 = vmul.f32 %v2942, %v2878
      %v3007 = vmul.f32 %v2943, %v2879
      %v3008 = vmul.f32 %v2944, %v2880
      %v3009 = vmul.f32 %v2945, %v2881
      %v3010 = vmul.f32 %v2946, %v2882
      %v3011 = vmul.f32 %v2947, %v2883
      %v3012 = vmul.f32 %v2948, %v2884
      %v3013 = vmul.f32 %v2949, %v2885
      %v3014 = vmul.f32 %v2950, %v2886
      %v3015 = vmul.f32 %v2951, %v2887
      %v3016 = vmul.f32 %v2952, %v2888
      %v3017 = vmul.f32 %v2953, %v2889
      %v3018 = vmul.f32 %v2954, %v2890
      %v3019 = vmul.f32 %v2955, %v2891
      %v3020 = vmul.f32 %v2956, %v2892
      %v3021 = vmul.f32 %v2957, %v2893
      %v3022 = vmul.f32 %v2958, %v2894
      %v3023 = vmul.f32 %v2959, %v2895
      %v3024 = vmul.f32 %v2960, %v2896
      %v3025 = vmul.f32 %v2961, %v2897
      %v3026 = vmul.f32 %v2962, %v2898
      %v3027 = vmul.f32 %v2963, %v2899
      %v3028 = vmul.f32 %v2964, %v2900
      %v3029 = vmul.f32 %v2965, %v2901
      %v3030 = vmul.f32 %v2966, %v2902
      %v3031 = vmul.f32 %v2967, %v2903
      %v3032 = vmul.f32 %v2968, %v2904
      %v3033 = vmul.f32 %v2969, %v2905
      %v3034 = vmul.f32 %v2970, %v2906
      %v3035 = vmul.f32 %v2971, %v2907
      %v3036 = vmul.f32 %v2972, %v2908
      %v3037 = vmul.f32 %v2973, %v2909
      %v3038 = vmul.f32 %v2974, %v2910
      %v3039 = vmul.f32 %v2975, %v2911
      %v3040 = vmul.f32 %v2976, %v2912
      %v3041 = vmul.f32 %v2977, %v2913
      %v3042 = vmul.f32 %v2978, %v2914
      %v3043 = vmul.f32 %v2979, %v2915
      %v3044 = vmul.f32 %v2980, %v2916
      %v3045 = vmul.f32 %v2981, %v2917
      %v3046 = vmul.f32 %v2982, %v2918
      %v3047 = vmul.f32 %v2983, %v2919
      %v3048 = vmul.f32 %v2984, %v2920
      %v3049 = vmul.f32 %v2985, %v2921
      %v3050 = vsel %vm2794, %v2986, 0.0
      %v3051 = vsel %vm2795, %v2987, 0.0
      %v3052 = vsel %vm2796, %v2988, 0.0
      %v3053 = vsel %vm2797, %v2989, 0.0
      %v3054 = vsel %vm2798, %v2990, 0.0
      %v3055 = vsel %vm2799, %v2991, 0.0
      %v3056 = vsel %vm2800, %v2992, 0.0
      %v3057 = vsel %vm2801, %v2993, 0.0
      %v3058 = vsel %vm2802, %v2994, 0.0
      %v3059 = vsel %vm2803, %v2995, 0.0
      %v3060 = vsel %vm2804, %v2996, 0.0
      %v3061 = vsel %vm2805, %v2997, 0.0
      %v3062 = vsel %vm2806, %v2998, 0.0
      %v3063 = vsel %vm2807, %v2999, 0.0
      %v3064 = vsel %vm2808, %v3000, 0.0
      %v3065 = vsel %vm2809, %v3001, 0.0
      %v3066 = vsel %vm2810, %v3002, 0.0
      %v3067 = vsel %vm2811, %v3003, 0.0
      %v3068 = vsel %vm2812, %v3004, 0.0
      %v3069 = vsel %vm2813, %v3005, 0.0
      %v3070 = vsel %vm2814, %v3006, 0.0
      %v3071 = vsel %vm2815, %v3007, 0.0
      %v3072 = vsel %vm2816, %v3008, 0.0
      %v3073 = vsel %vm2817, %v3009, 0.0
      %v3074 = vsel %vm2818, %v3010, 0.0
      %v3075 = vsel %vm2819, %v3011, 0.0
      %v3076 = vsel %vm2820, %v3012, 0.0
      %v3077 = vsel %vm2821, %v3013, 0.0
      %v3078 = vsel %vm2822, %v3014, 0.0
      %v3079 = vsel %vm2823, %v3015, 0.0
      %v3080 = vsel %vm2824, %v3016, 0.0
      %v3081 = vsel %vm2825, %v3017, 0.0
      %v3082 = vsel %vm2826, %v3018, 0.0
      %v3083 = vsel %vm2827, %v3019, 0.0
      %v3084 = vsel %vm2828, %v3020, 0.0
      %v3085 = vsel %vm2829, %v3021, 0.0
      %v3086 = vsel %vm2830, %v3022, 0.0
      %v3087 = vsel %vm2831, %v3023, 0.0
      %v3088 = vsel %vm2832, %v3024, 0.0
      %v3089 = vsel %vm2833, %v3025, 0.0
      %v3090 = vsel %vm2834, %v3026, 0.0
      %v3091 = vsel %vm2835, %v3027, 0.0
      %v3092 = vsel %vm2836, %v3028, 0.0
      %v3093 = vsel %vm2837, %v3029, 0.0
      %v3094 = vsel %vm2838, %v3030, 0.0
      %v3095 = vsel %vm2839, %v3031, 0.0
      %v3096 = vsel %vm2840, %v3032, 0.0
      %v3097 = vsel %vm2841, %v3033, 0.0
      %v3098 = vsel %vm2842, %v3034, 0.0
      %v3099 = vsel %vm2843, %v3035, 0.0
      %v3100 = vsel %vm2844, %v3036, 0.0
      %v3101 = vsel %vm2845, %v3037, 0.0
      %v3102 = vsel %vm2846, %v3038, 0.0
      %v3103 = vsel %vm2847, %v3039, 0.0
      %v3104 = vsel %vm2848, %v3040, 0.0
      %v3105 = vsel %vm2849, %v3041, 0.0
      %v3106 = vsel %vm2850, %v3042, 0.0
      %v3107 = vsel %vm2851, %v3043, 0.0
      %v3108 = vsel %vm2852, %v3044, 0.0
      %v3109 = vsel %vm2853, %v3045, 0.0
      %v3110 = vsel %vm2854, %v3046, 0.0
      %v3111 = vsel %vm2855, %v3047, 0.0
      %v3112 = vsel %vm2856, %v3048, 0.0
      %v3113 = vsel %vm2857, %v3049, 0.0
      %v3114 = vsel %vm2602, %v2730, %v3050
      %v3115 = vsel %vm2603, %v2731, %v3051
      %v3116 = vsel %vm2604, %v2732, %v3052
      %v3117 = vsel %vm2605, %v2733, %v3053
      %v3118 = vsel %vm2606, %v2734, %v3054
      %v3119 = vsel %vm2607, %v2735, %v3055
      %v3120 = vsel %vm2608, %v2736, %v3056
      %v3121 = vsel %vm2609, %v2737, %v3057
      %v3122 = vsel %vm2610, %v2738, %v3058
      %v3123 = vsel %vm2611, %v2739, %v3059
      %v3124 = vsel %vm2612, %v2740, %v3060
      %v3125 = vsel %vm2613, %v2741, %v3061
      %v3126 = vsel %vm2614, %v2742, %v3062
      %v3127 = vsel %vm2615, %v2743, %v3063
      %v3128 = vsel %vm2616, %v2744, %v3064
      %v3129 = vsel %vm2617, %v2745, %v3065
      %v3130 = vsel %vm2618, %v2746, %v3066
      %v3131 = vsel %vm2619, %v2747, %v3067
      %v3132 = vsel %vm2620, %v2748, %v3068
      %v3133 = vsel %vm2621, %v2749, %v3069
      %v3134 = vsel %vm2622, %v2750, %v3070
      %v3135 = vsel %vm2623, %v2751, %v3071
      %v3136 = vsel %vm2624, %v2752, %v3072
      %v3137 = vsel %vm2625, %v2753, %v3073
      %v3138 = vsel %vm2626, %v2754, %v3074
      %v3139 = vsel %vm2627, %v2755, %v3075
      %v3140 = vsel %vm2628, %v2756, %v3076
      %v3141 = vsel %vm2629, %v2757, %v3077
      %v3142 = vsel %vm2630, %v2758, %v3078
      %v3143 = vsel %vm2631, %v2759, %v3079
      %v3144 = vsel %vm2632, %v2760, %v3080
      %v3145 = vsel %vm2633, %v2761, %v3081
      %v3146 = vsel %vm2634, %v2762, %v3082
      %v3147 = vsel %vm2635, %v2763, %v3083
      %v3148 = vsel %vm2636, %v2764, %v3084
      %v3149 = vsel %vm2637, %v2765, %v3085
      %v3150 = vsel %vm2638, %v2766, %v3086
      %v3151 = vsel %vm2639, %v2767, %v3087
      %v3152 = vsel %vm2640, %v2768, %v3088
      %v3153 = vsel %vm2641, %v2769, %v3089
      %v3154 = vsel %vm2642, %v2770, %v3090
      %v3155 = vsel %vm2643, %v2771, %v3091
      %v3156 = vsel %vm2644, %v2772, %v3092
      %v3157 = vsel %vm2645, %v2773, %v3093
      %v3158 = vsel %vm2646, %v2774, %v3094
      %v3159 = vsel %vm2647, %v2775, %v3095
      %v3160 = vsel %vm2648, %v2776, %v3096
      %v3161 = vsel %vm2649, %v2777, %v3097
      %v3162 = vsel %vm2650, %v2778, %v3098
      %v3163 = vsel %vm2651, %v2779, %v3099
      %v3164 = vsel %vm2652, %v2780, %v3100
      %v3165 = vsel %vm2653, %v2781, %v3101
      %v3166 = vsel %vm2654, %v2782, %v3102
      %v3167 = vsel %vm2655, %v2783, %v3103
      %v3168 = vsel %vm2656, %v2784, %v3104
      %v3169 = vsel %vm2657, %v2785, %v3105
      %v3170 = vsel %vm2658, %v2786, %v3106
      %v3171 = vsel %vm2659, %v2787, %v3107
      %v3172 = vsel %vm2660, %v2788, %v3108
      %v3173 = vsel %vm2661, %v2789, %v3109
      %v3174 = vsel %vm2662, %v2790, %v3110
      %v3175 = vsel %vm2663, %v2791, %v3111
      %v3176 = vsel %vm2664, %v2792, %v3112
      %v3177 = vsel %vm2665, %v2793, %v3113
      %v3178 = vld [vmem:[%s2 + $0x1] sm:$0x1]
      %3179 = vset.pattern.permute.xlu0 2
      %3180 = vperm.xlu0 %3179, %v302
      %v3181 = vpop.permute.xlu0 %3180
      %3183 = vset.pattern.permute.xlu0 2
      %3184 = vperm.xlu0 %3183, %v303
      %v3185 = vpop.permute.xlu0 %3184
      %3187 = vset.pattern.permute.xlu0 2
      %3188 = vperm.xlu0 %3187, %v304
      %v3189 = vpop.permute.xlu0 %3188
      %3191 = vset.pattern.permute.xlu0 2
      %3192 = vperm.xlu0 %3191, %v305
      %v3193 = vpop.permute.xlu0 %3192
      %3195 = vset.pattern.permute.xlu0 2
      %3196 = vperm.xlu0 %3195, %v306
      %v3197 = vpop.permute.xlu0 %3196
      %3199 = vset.pattern.permute.xlu0 2
      %3200 = vperm.xlu0 %3199, %v307
      %v3201 = vpop.permute.xlu0 %3200
      %3203 = vset.pattern.permute.xlu0 2
      %3204 = vperm.xlu0 %3203, %v308
      %v3205 = vpop.permute.xlu0 %3204
      %3207 = vset.pattern.permute.xlu0 2
      %3208 = vperm.xlu0 %3207, %v309
      %v3209 = vpop.permute.xlu0 %3208
      %3211 = vset.pattern.permute.xlu0 2
      %3212 = vperm.xlu0 %3211, %v310
      %v3213 = vpop.permute.xlu0 %3212
      %3215 = vset.pattern.permute.xlu0 2
      %3216 = vperm.xlu0 %3215, %v311
      %v3217 = vpop.permute.xlu0 %3216
      %3219 = vset.pattern.permute.xlu0 2
      %3220 = vperm.xlu0 %3219, %v312
      %v3221 = vpop.permute.xlu0 %3220
      %3223 = vset.pattern.permute.xlu0 2
      %3224 = vperm.xlu0 %3223, %v313
      %v3225 = vpop.permute.xlu0 %3224
      %3227 = vset.pattern.permute.xlu0 2
      %3228 = vperm.xlu0 %3227, %v314
      %v3229 = vpop.permute.xlu0 %3228
      %3231 = vset.pattern.permute.xlu0 2
      %3232 = vperm.xlu0 %3231, %v315
      %v3233 = vpop.permute.xlu0 %3232
      %3235 = vset.pattern.permute.xlu0 2
      %3236 = vperm.xlu0 %3235, %v316
      %v3237 = vpop.permute.xlu0 %3236
      %3239 = vset.pattern.permute.xlu0 2
      %3240 = vperm.xlu0 %3239, %v317
      %v3241 = vpop.permute.xlu0 %3240
      %3243 = vset.pattern.permute.xlu0 2
      %3244 = vperm.xlu0 %3243, %v318
      %v3245 = vpop.permute.xlu0 %3244
      %3247 = vset.pattern.permute.xlu0 2
      %3248 = vperm.xlu0 %3247, %v319
      %v3249 = vpop.permute.xlu0 %3248
      %3251 = vset.pattern.permute.xlu0 2
      %3252 = vperm.xlu0 %3251, %v320
      %v3253 = vpop.permute.xlu0 %3252
      %3255 = vset.pattern.permute.xlu0 2
      %3256 = vperm.xlu0 %3255, %v321
      %v3257 = vpop.permute.xlu0 %3256
      %3259 = vset.pattern.permute.xlu0 2
      %3260 = vperm.xlu0 %3259, %v322
      %v3261 = vpop.permute.xlu0 %3260
      %3263 = vset.pattern.permute.xlu0 2
      %3264 = vperm.xlu0 %3263, %v323
      %v3265 = vpop.permute.xlu0 %3264
      %3267 = vset.pattern.permute.xlu0 2
      %3268 = vperm.xlu0 %3267, %v324
      %v3269 = vpop.permute.xlu0 %3268
      %3271 = vset.pattern.permute.xlu0 2
      %3272 = vperm.xlu0 %3271, %v325
      %v3273 = vpop.permute.xlu0 %3272
      %3275 = vset.pattern.permute.xlu0 2
      %3276 = vperm.xlu0 %3275, %v326
      %v3277 = vpop.permute.xlu0 %3276
      %3279 = vset.pattern.permute.xlu0 2
      %3280 = vperm.xlu0 %3279, %v327
      %v3281 = vpop.permute.xlu0 %3280
      %3283 = vset.pattern.permute.xlu0 2
      %3284 = vperm.xlu0 %3283, %v328
      %v3285 = vpop.permute.xlu0 %3284
      %3287 = vset.pattern.permute.xlu0 2
      %3288 = vperm.xlu0 %3287, %v329
      %v3289 = vpop.permute.xlu0 %3288
      %3291 = vset.pattern.permute.xlu0 2
      %3292 = vperm.xlu0 %3291, %v330
      %v3293 = vpop.permute.xlu0 %3292
      %3295 = vset.pattern.permute.xlu0 2
      %3296 = vperm.xlu0 %3295, %v331
      %v3297 = vpop.permute.xlu0 %3296
      %3299 = vset.pattern.permute.xlu0 2
      %3300 = vperm.xlu0 %3299, %v332
      %v3301 = vpop.permute.xlu0 %3300
      %3303 = vset.pattern.permute.xlu0 2
      %3304 = vperm.xlu0 %3303, %v333
      %v3305 = vpop.permute.xlu0 %3304
      %3307 = vset.pattern.permute.xlu0 2
      %3308 = vperm.xlu0 %3307, %v334
      %v3309 = vpop.permute.xlu0 %3308
      %3311 = vset.pattern.permute.xlu0 2
      %3312 = vperm.xlu0 %3311, %v335
      %v3313 = vpop.permute.xlu0 %3312
      %3315 = vset.pattern.permute.xlu0 2
      %3316 = vperm.xlu0 %3315, %v336
      %v3317 = vpop.permute.xlu0 %3316
      %3319 = vset.pattern.permute.xlu0 2
      %3320 = vperm.xlu0 %3319, %v337
      %v3321 = vpop.permute.xlu0 %3320
      %3323 = vset.pattern.permute.xlu0 2
      %3324 = vperm.xlu0 %3323, %v338
      %v3325 = vpop.permute.xlu0 %3324
      %3327 = vset.pattern.permute.xlu0 2
      %3328 = vperm.xlu0 %3327, %v339
      %v3329 = vpop.permute.xlu0 %3328
      %3331 = vset.pattern.permute.xlu0 2
      %3332 = vperm.xlu0 %3331, %v340
      %v3333 = vpop.permute.xlu0 %3332
      %3335 = vset.pattern.permute.xlu0 2
      %3336 = vperm.xlu0 %3335, %v341
      %v3337 = vpop.permute.xlu0 %3336
      %3339 = vset.pattern.permute.xlu0 2
      %3340 = vperm.xlu0 %3339, %v342
      %v3341 = vpop.permute.xlu0 %3340
      %3343 = vset.pattern.permute.xlu0 2
      %3344 = vperm.xlu0 %3343, %v343
      %v3345 = vpop.permute.xlu0 %3344
      %3347 = vset.pattern.permute.xlu0 2
      %3348 = vperm.xlu0 %3347, %v344
      %v3349 = vpop.permute.xlu0 %3348
      %3351 = vset.pattern.permute.xlu0 2
      %3352 = vperm.xlu0 %3351, %v345
      %v3353 = vpop.permute.xlu0 %3352
      %3355 = vset.pattern.permute.xlu0 2
      %3356 = vperm.xlu0 %3355, %v346
      %v3357 = vpop.permute.xlu0 %3356
      %3359 = vset.pattern.permute.xlu0 2
      %3360 = vperm.xlu0 %3359, %v347
      %v3361 = vpop.permute.xlu0 %3360
      %3363 = vset.pattern.permute.xlu0 2
      %3364 = vperm.xlu0 %3363, %v348
      %v3365 = vpop.permute.xlu0 %3364
      %3367 = vset.pattern.permute.xlu0 2
      %3368 = vperm.xlu0 %3367, %v349
      %v3369 = vpop.permute.xlu0 %3368
      %3371 = vset.pattern.permute.xlu0 2
      %3372 = vperm.xlu0 %3371, %v350
      %v3373 = vpop.permute.xlu0 %3372
      %3375 = vset.pattern.permute.xlu0 2
      %3376 = vperm.xlu0 %3375, %v351
      %v3377 = vpop.permute.xlu0 %3376
      %3379 = vset.pattern.permute.xlu0 2
      %3380 = vperm.xlu0 %3379, %v352
      %v3381 = vpop.permute.xlu0 %3380
      %3383 = vset.pattern.permute.xlu0 2
      %3384 = vperm.xlu0 %3383, %v353
      %v3385 = vpop.permute.xlu0 %3384
      %3387 = vset.pattern.permute.xlu0 2
      %3388 = vperm.xlu0 %3387, %v354
      %v3389 = vpop.permute.xlu0 %3388
      %3391 = vset.pattern.permute.xlu0 2
      %3392 = vperm.xlu0 %3391, %v355
      %v3393 = vpop.permute.xlu0 %3392
      %3395 = vset.pattern.permute.xlu0 2
      %3396 = vperm.xlu0 %3395, %v356
      %v3397 = vpop.permute.xlu0 %3396
      %3399 = vset.pattern.permute.xlu0 2
      %3400 = vperm.xlu0 %3399, %v357
      %v3401 = vpop.permute.xlu0 %3400
      %3403 = vset.pattern.permute.xlu0 2
      %3404 = vperm.xlu0 %3403, %v358
      %v3405 = vpop.permute.xlu0 %3404
      %3407 = vset.pattern.permute.xlu0 2
      %3408 = vperm.xlu0 %3407, %v359
      %v3409 = vpop.permute.xlu0 %3408
      %3411 = vset.pattern.permute.xlu0 2
      %3412 = vperm.xlu0 %3411, %v360
      %v3413 = vpop.permute.xlu0 %3412
      %3415 = vset.pattern.permute.xlu0 2
      %3416 = vperm.xlu0 %3415, %v361
      %v3417 = vpop.permute.xlu0 %3416
      %3419 = vset.pattern.permute.xlu0 2
      %3420 = vperm.xlu0 %3419, %v362
      %v3421 = vpop.permute.xlu0 %3420
      %3423 = vset.pattern.permute.xlu0 2
      %3424 = vperm.xlu0 %3423, %v363
      %v3425 = vpop.permute.xlu0 %3424
      %3427 = vset.pattern.permute.xlu0 2
      %3428 = vperm.xlu0 %3427, %v364
      %v3429 = vpop.permute.xlu0 %3428
      %3431 = vset.pattern.permute.xlu0 2
      %3432 = vperm.xlu0 %3431, %v365
      %v3433 = vpop.permute.xlu0 %3432
      %v3435 = vperm.slane %v3178, 0
      %v3436 = vsub.f32 %v3181, %v3435
      %v3437 = vsub.f32 %v3185, %v3435
      %v3438 = vsub.f32 %v3189, %v3435
      %v3439 = vsub.f32 %v3193, %v3435
      %v3440 = vsub.f32 %v3197, %v3435
      %v3441 = vsub.f32 %v3201, %v3435
      %v3442 = vsub.f32 %v3205, %v3435
      %v3443 = vsub.f32 %v3209, %v3435
      %v3444 = vsub.f32 %v3213, %v3435
      %v3445 = vsub.f32 %v3217, %v3435
      %v3446 = vsub.f32 %v3221, %v3435
      %v3447 = vsub.f32 %v3225, %v3435
      %v3448 = vsub.f32 %v3229, %v3435
      %v3449 = vsub.f32 %v3233, %v3435
      %v3450 = vsub.f32 %v3237, %v3435
      %v3451 = vsub.f32 %v3241, %v3435
      %v3452 = vsub.f32 %v3245, %v3435
      %v3453 = vsub.f32 %v3249, %v3435
      %v3454 = vsub.f32 %v3253, %v3435
      %v3455 = vsub.f32 %v3257, %v3435
      %v3456 = vsub.f32 %v3261, %v3435
      %v3457 = vsub.f32 %v3265, %v3435
      %v3458 = vsub.f32 %v3269, %v3435
      %v3459 = vsub.f32 %v3273, %v3435
      %v3460 = vsub.f32 %v3277, %v3435
      %v3461 = vsub.f32 %v3281, %v3435
      %v3462 = vsub.f32 %v3285, %v3435
      %v3463 = vsub.f32 %v3289, %v3435
      %v3464 = vsub.f32 %v3293, %v3435
      %v3465 = vsub.f32 %v3297, %v3435
      %v3466 = vsub.f32 %v3301, %v3435
      %v3467 = vsub.f32 %v3305, %v3435
      %v3468 = vsub.f32 %v3309, %v3435
      %v3469 = vsub.f32 %v3313, %v3435
      %v3470 = vsub.f32 %v3317, %v3435
      %v3471 = vsub.f32 %v3321, %v3435
      %v3472 = vsub.f32 %v3325, %v3435
      %v3473 = vsub.f32 %v3329, %v3435
      %v3474 = vsub.f32 %v3333, %v3435
      %v3475 = vsub.f32 %v3337, %v3435
      %v3476 = vsub.f32 %v3341, %v3435
      %v3477 = vsub.f32 %v3345, %v3435
      %v3478 = vsub.f32 %v3349, %v3435
      %v3479 = vsub.f32 %v3353, %v3435
      %v3480 = vsub.f32 %v3357, %v3435
      %v3481 = vsub.f32 %v3361, %v3435
      %v3482 = vsub.f32 %v3365, %v3435
      %v3483 = vsub.f32 %v3369, %v3435
      %v3484 = vsub.f32 %v3373, %v3435
      %v3485 = vsub.f32 %v3377, %v3435
      %v3486 = vsub.f32 %v3381, %v3435
      %v3487 = vsub.f32 %v3385, %v3435
      %v3488 = vsub.f32 %v3389, %v3435
      %v3489 = vsub.f32 %v3393, %v3435
      %v3490 = vsub.f32 %v3397, %v3435
      %v3491 = vsub.f32 %v3401, %v3435
      %v3492 = vsub.f32 %v3405, %v3435
      %v3493 = vsub.f32 %v3409, %v3435
      %v3494 = vsub.f32 %v3413, %v3435
      %v3495 = vsub.f32 %v3417, %v3435
      %v3496 = vsub.f32 %v3421, %v3435
      %v3497 = vsub.f32 %v3425, %v3435
      %v3498 = vsub.f32 %v3429, %v3435
      %v3499 = vsub.f32 %v3433, %v3435
      %v3500 = vand.u32 2147483647, %v3436
      %v3501 = vand.u32 2147483647, %v3437
      %v3502 = vand.u32 2147483647, %v3438
      %v3503 = vand.u32 2147483647, %v3439
      %v3504 = vand.u32 2147483647, %v3440
      %v3505 = vand.u32 2147483647, %v3441
      %v3506 = vand.u32 2147483647, %v3442
      %v3507 = vand.u32 2147483647, %v3443
      %v3508 = vand.u32 2147483647, %v3444
      %v3509 = vand.u32 2147483647, %v3445
      %v3510 = vand.u32 2147483647, %v3446
      %v3511 = vand.u32 2147483647, %v3447
      %v3512 = vand.u32 2147483647, %v3448
      %v3513 = vand.u32 2147483647, %v3449
      %v3514 = vand.u32 2147483647, %v3450
      %v3515 = vand.u32 2147483647, %v3451
      %v3516 = vand.u32 2147483647, %v3452
      %v3517 = vand.u32 2147483647, %v3453
      %v3518 = vand.u32 2147483647, %v3454
      %v3519 = vand.u32 2147483647, %v3455
      %v3520 = vand.u32 2147483647, %v3456
      %v3521 = vand.u32 2147483647, %v3457
      %v3522 = vand.u32 2147483647, %v3458
      %v3523 = vand.u32 2147483647, %v3459
      %v3524 = vand.u32 2147483647, %v3460
      %v3525 = vand.u32 2147483647, %v3461
      %v3526 = vand.u32 2147483647, %v3462
      %v3527 = vand.u32 2147483647, %v3463
      %v3528 = vand.u32 2147483647, %v3464
      %v3529 = vand.u32 2147483647, %v3465
      %v3530 = vand.u32 2147483647, %v3466
      %v3531 = vand.u32 2147483647, %v3467
      %v3532 = vand.u32 2147483647, %v3468
      %v3533 = vand.u32 2147483647, %v3469
      %v3534 = vand.u32 2147483647, %v3470
      %v3535 = vand.u32 2147483647, %v3471
      %v3536 = vand.u32 2147483647, %v3472
      %v3537 = vand.u32 2147483647, %v3473
      %v3538 = vand.u32 2147483647, %v3474
      %v3539 = vand.u32 2147483647, %v3475
      %v3540 = vand.u32 2147483647, %v3476
      %v3541 = vand.u32 2147483647, %v3477
      %v3542 = vand.u32 2147483647, %v3478
      %v3543 = vand.u32 2147483647, %v3479
      %v3544 = vand.u32 2147483647, %v3480
      %v3545 = vand.u32 2147483647, %v3481
      %v3546 = vand.u32 2147483647, %v3482
      %v3547 = vand.u32 2147483647, %v3483
      %v3548 = vand.u32 2147483647, %v3484
      %v3549 = vand.u32 2147483647, %v3485
      %v3550 = vand.u32 2147483647, %v3486
      %v3551 = vand.u32 2147483647, %v3487
      %v3552 = vand.u32 2147483647, %v3488
      %v3553 = vand.u32 2147483647, %v3489
      %v3554 = vand.u32 2147483647, %v3490
      %v3555 = vand.u32 2147483647, %v3491
      %v3556 = vand.u32 2147483647, %v3492
      %v3557 = vand.u32 2147483647, %v3493
      %v3558 = vand.u32 2147483647, %v3494
      %v3559 = vand.u32 2147483647, %v3495
      %v3560 = vand.u32 2147483647, %v3496
      %v3561 = vand.u32 2147483647, %v3497
      %v3562 = vand.u32 2147483647, %v3498
      %v3563 = vand.u32 2147483647, %v3499
      %vm3564 = vcmp.lt.f32.partialorder %v3500, 0.5
      %vm3565 = vcmp.lt.f32.partialorder %v3501, 0.5
      %vm3566 = vcmp.lt.f32.partialorder %v3502, 0.5
      %vm3567 = vcmp.lt.f32.partialorder %v3503, 0.5
      %vm3568 = vcmp.lt.f32.partialorder %v3504, 0.5
      %vm3569 = vcmp.lt.f32.partialorder %v3505, 0.5
      %vm3570 = vcmp.lt.f32.partialorder %v3506, 0.5
      %vm3571 = vcmp.lt.f32.partialorder %v3507, 0.5
      %vm3572 = vcmp.lt.f32.partialorder %v3508, 0.5
      %vm3573 = vcmp.lt.f32.partialorder %v3509, 0.5
      %vm3574 = vcmp.lt.f32.partialorder %v3510, 0.5
      %vm3575 = vcmp.lt.f32.partialorder %v3511, 0.5
      %vm3576 = vcmp.lt.f32.partialorder %v3512, 0.5
      %vm3577 = vcmp.lt.f32.partialorder %v3513, 0.5
      %vm3578 = vcmp.lt.f32.partialorder %v3514, 0.5
      %vm3579 = vcmp.lt.f32.partialorder %v3515, 0.5
      %vm3580 = vcmp.lt.f32.partialorder %v3516, 0.5
      %vm3581 = vcmp.lt.f32.partialorder %v3517, 0.5
      %vm3582 = vcmp.lt.f32.partialorder %v3518, 0.5
      %vm3583 = vcmp.lt.f32.partialorder %v3519, 0.5
      %vm3584 = vcmp.lt.f32.partialorder %v3520, 0.5
      %vm3585 = vcmp.lt.f32.partialorder %v3521, 0.5
      %vm3586 = vcmp.lt.f32.partialorder %v3522, 0.5
      %vm3587 = vcmp.lt.f32.partialorder %v3523, 0.5
      %vm3588 = vcmp.lt.f32.partialorder %v3524, 0.5
      %vm3589 = vcmp.lt.f32.partialorder %v3525, 0.5
      %vm3590 = vcmp.lt.f32.partialorder %v3526, 0.5
      %vm3591 = vcmp.lt.f32.partialorder %v3527, 0.5
      %vm3592 = vcmp.lt.f32.partialorder %v3528, 0.5
      %vm3593 = vcmp.lt.f32.partialorder %v3529, 0.5
      %vm3594 = vcmp.lt.f32.partialorder %v3530, 0.5
      %vm3595 = vcmp.lt.f32.partialorder %v3531, 0.5
      %vm3596 = vcmp.lt.f32.partialorder %v3532, 0.5
      %vm3597 = vcmp.lt.f32.partialorder %v3533, 0.5
      %vm3598 = vcmp.lt.f32.partialorder %v3534, 0.5
      %vm3599 = vcmp.lt.f32.partialorder %v3535, 0.5
      %vm3600 = vcmp.lt.f32.partialorder %v3536, 0.5
      %vm3601 = vcmp.lt.f32.partialorder %v3537, 0.5
      %vm3602 = vcmp.lt.f32.partialorder %v3538, 0.5
      %vm3603 = vcmp.lt.f32.partialorder %v3539, 0.5
      %vm3604 = vcmp.lt.f32.partialorder %v3540, 0.5
      %vm3605 = vcmp.lt.f32.partialorder %v3541, 0.5
      %vm3606 = vcmp.lt.f32.partialorder %v3542, 0.5
      %vm3607 = vcmp.lt.f32.partialorder %v3543, 0.5
      %vm3608 = vcmp.lt.f32.partialorder %v3544, 0.5
      %vm3609 = vcmp.lt.f32.partialorder %v3545, 0.5
      %vm3610 = vcmp.lt.f32.partialorder %v3546, 0.5
      %vm3611 = vcmp.lt.f32.partialorder %v3547, 0.5
      %vm3612 = vcmp.lt.f32.partialorder %v3548, 0.5
      %vm3613 = vcmp.lt.f32.partialorder %v3549, 0.5
      %vm3614 = vcmp.lt.f32.partialorder %v3550, 0.5
      %vm3615 = vcmp.lt.f32.partialorder %v3551, 0.5
      %vm3616 = vcmp.lt.f32.partialorder %v3552, 0.5
      %vm3617 = vcmp.lt.f32.partialorder %v3553, 0.5
      %vm3618 = vcmp.lt.f32.partialorder %v3554, 0.5
      %vm3619 = vcmp.lt.f32.partialorder %v3555, 0.5
      %vm3620 = vcmp.lt.f32.partialorder %v3556, 0.5
      %vm3621 = vcmp.lt.f32.partialorder %v3557, 0.5
      %vm3622 = vcmp.lt.f32.partialorder %v3558, 0.5
      %vm3623 = vcmp.lt.f32.partialorder %v3559, 0.5
      %vm3624 = vcmp.lt.f32.partialorder %v3560, 0.5
      %vm3625 = vcmp.lt.f32.partialorder %v3561, 0.5
      %vm3626 = vcmp.lt.f32.partialorder %v3562, 0.5
      %vm3627 = vcmp.lt.f32.partialorder %v3563, 0.5
      %v3628 = vmul.f32 %v3436, %v3436
      %v3629 = vmul.f32 %v3437, %v3437
      %v3630 = vmul.f32 %v3438, %v3438
      %v3631 = vmul.f32 %v3439, %v3439
      %v3632 = vmul.f32 %v3440, %v3440
      %v3633 = vmul.f32 %v3441, %v3441
      %v3634 = vmul.f32 %v3442, %v3442
      %v3635 = vmul.f32 %v3443, %v3443
      %v3636 = vmul.f32 %v3444, %v3444
      %v3637 = vmul.f32 %v3445, %v3445
      %v3638 = vmul.f32 %v3446, %v3446
      %v3639 = vmul.f32 %v3447, %v3447
      %v3640 = vmul.f32 %v3448, %v3448
      %v3641 = vmul.f32 %v3449, %v3449
      %v3642 = vmul.f32 %v3450, %v3450
      %v3643 = vmul.f32 %v3451, %v3451
      %v3644 = vmul.f32 %v3452, %v3452
      %v3645 = vmul.f32 %v3453, %v3453
      %v3646 = vmul.f32 %v3454, %v3454
      %v3647 = vmul.f32 %v3455, %v3455
      %v3648 = vmul.f32 %v3456, %v3456
      %v3649 = vmul.f32 %v3457, %v3457
      %v3650 = vmul.f32 %v3458, %v3458
      %v3651 = vmul.f32 %v3459, %v3459
      %v3652 = vmul.f32 %v3460, %v3460
      %v3653 = vmul.f32 %v3461, %v3461
      %v3654 = vmul.f32 %v3462, %v3462
      %v3655 = vmul.f32 %v3463, %v3463
      %v3656 = vmul.f32 %v3464, %v3464
      %v3657 = vmul.f32 %v3465, %v3465
      %v3658 = vmul.f32 %v3466, %v3466
      %v3659 = vmul.f32 %v3467, %v3467
      %v3660 = vmul.f32 %v3468, %v3468
      %v3661 = vmul.f32 %v3469, %v3469
      %v3662 = vmul.f32 %v3470, %v3470
      %v3663 = vmul.f32 %v3471, %v3471
      %v3664 = vmul.f32 %v3472, %v3472
      %v3665 = vmul.f32 %v3473, %v3473
      %v3666 = vmul.f32 %v3474, %v3474
      %v3667 = vmul.f32 %v3475, %v3475
      %v3668 = vmul.f32 %v3476, %v3476
      %v3669 = vmul.f32 %v3477, %v3477
      %v3670 = vmul.f32 %v3478, %v3478
      %v3671 = vmul.f32 %v3479, %v3479
      %v3672 = vmul.f32 %v3480, %v3480
      %v3673 = vmul.f32 %v3481, %v3481
      %v3674 = vmul.f32 %v3482, %v3482
      %v3675 = vmul.f32 %v3483, %v3483
      %v3676 = vmul.f32 %v3484, %v3484
      %v3677 = vmul.f32 %v3485, %v3485
      %v3678 = vmul.f32 %v3486, %v3486
      %v3679 = vmul.f32 %v3487, %v3487
      %v3680 = vmul.f32 %v3488, %v3488
      %v3681 = vmul.f32 %v3489, %v3489
      %v3682 = vmul.f32 %v3490, %v3490
      %v3683 = vmul.f32 %v3491, %v3491
      %v3684 = vmul.f32 %v3492, %v3492
      %v3685 = vmul.f32 %v3493, %v3493
      %v3686 = vmul.f32 %v3494, %v3494
      %v3687 = vmul.f32 %v3495, %v3495
      %v3688 = vmul.f32 %v3496, %v3496
      %v3689 = vmul.f32 %v3497, %v3497
      %v3690 = vmul.f32 %v3498, %v3498
      %v3691 = vmul.f32 %v3499, %v3499
      %v3692 = vsub.f32 0.75, %v3628
      %v3693 = vsub.f32 0.75, %v3629
      %v3694 = vsub.f32 0.75, %v3630
      %v3695 = vsub.f32 0.75, %v3631
      %v3696 = vsub.f32 0.75, %v3632
      %v3697 = vsub.f32 0.75, %v3633
      %v3698 = vsub.f32 0.75, %v3634
      %v3699 = vsub.f32 0.75, %v3635
      %v3700 = vsub.f32 0.75, %v3636
      %v3701 = vsub.f32 0.75, %v3637
      %v3702 = vsub.f32 0.75, %v3638
      %v3703 = vsub.f32 0.75, %v3639
      %v3704 = vsub.f32 0.75, %v3640
      %v3705 = vsub.f32 0.75, %v3641
      %v3706 = vsub.f32 0.75, %v3642
      %v3707 = vsub.f32 0.75, %v3643
      %v3708 = vsub.f32 0.75, %v3644
      %v3709 = vsub.f32 0.75, %v3645
      %v3710 = vsub.f32 0.75, %v3646
      %v3711 = vsub.f32 0.75, %v3647
      %v3712 = vsub.f32 0.75, %v3648
      %v3713 = vsub.f32 0.75, %v3649
      %v3714 = vsub.f32 0.75, %v3650
      %v3715 = vsub.f32 0.75, %v3651
      %v3716 = vsub.f32 0.75, %v3652
      %v3717 = vsub.f32 0.75, %v3653
      %v3718 = vsub.f32 0.75, %v3654
      %v3719 = vsub.f32 0.75, %v3655
      %v3720 = vsub.f32 0.75, %v3656
      %v3721 = vsub.f32 0.75, %v3657
      %v3722 = vsub.f32 0.75, %v3658
      %v3723 = vsub.f32 0.75, %v3659
      %v3724 = vsub.f32 0.75, %v3660
      %v3725 = vsub.f32 0.75, %v3661
      %v3726 = vsub.f32 0.75, %v3662
      %v3727 = vsub.f32 0.75, %v3663
      %v3728 = vsub.f32 0.75, %v3664
      %v3729 = vsub.f32 0.75, %v3665
      %v3730 = vsub.f32 0.75, %v3666
      %v3731 = vsub.f32 0.75, %v3667
      %v3732 = vsub.f32 0.75, %v3668
      %v3733 = vsub.f32 0.75, %v3669
      %v3734 = vsub.f32 0.75, %v3670
      %v3735 = vsub.f32 0.75, %v3671
      %v3736 = vsub.f32 0.75, %v3672
      %v3737 = vsub.f32 0.75, %v3673
      %v3738 = vsub.f32 0.75, %v3674
      %v3739 = vsub.f32 0.75, %v3675
      %v3740 = vsub.f32 0.75, %v3676
      %v3741 = vsub.f32 0.75, %v3677
      %v3742 = vsub.f32 0.75, %v3678
      %v3743 = vsub.f32 0.75, %v3679
      %v3744 = vsub.f32 0.75, %v3680
      %v3745 = vsub.f32 0.75, %v3681
      %v3746 = vsub.f32 0.75, %v3682
      %v3747 = vsub.f32 0.75, %v3683
      %v3748 = vsub.f32 0.75, %v3684
      %v3749 = vsub.f32 0.75, %v3685
      %v3750 = vsub.f32 0.75, %v3686
      %v3751 = vsub.f32 0.75, %v3687
      %v3752 = vsub.f32 0.75, %v3688
      %v3753 = vsub.f32 0.75, %v3689
      %v3754 = vsub.f32 0.75, %v3690
      %v3755 = vsub.f32 0.75, %v3691
      %vm3756 = vcmp.lt.f32.partialorder %v3500, 1.5
      %vm3757 = vcmp.lt.f32.partialorder %v3501, 1.5
      %vm3758 = vcmp.lt.f32.partialorder %v3502, 1.5
      %vm3759 = vcmp.lt.f32.partialorder %v3503, 1.5
      %vm3760 = vcmp.lt.f32.partialorder %v3504, 1.5
      %vm3761 = vcmp.lt.f32.partialorder %v3505, 1.5
      %vm3762 = vcmp.lt.f32.partialorder %v3506, 1.5
      %vm3763 = vcmp.lt.f32.partialorder %v3507, 1.5
      %vm3764 = vcmp.lt.f32.partialorder %v3508, 1.5
      %vm3765 = vcmp.lt.f32.partialorder %v3509, 1.5
      %vm3766 = vcmp.lt.f32.partialorder %v3510, 1.5
      %vm3767 = vcmp.lt.f32.partialorder %v3511, 1.5
      %vm3768 = vcmp.lt.f32.partialorder %v3512, 1.5
      %vm3769 = vcmp.lt.f32.partialorder %v3513, 1.5
      %vm3770 = vcmp.lt.f32.partialorder %v3514, 1.5
      %vm3771 = vcmp.lt.f32.partialorder %v3515, 1.5
      %vm3772 = vcmp.lt.f32.partialorder %v3516, 1.5
      %vm3773 = vcmp.lt.f32.partialorder %v3517, 1.5
      %vm3774 = vcmp.lt.f32.partialorder %v3518, 1.5
      %vm3775 = vcmp.lt.f32.partialorder %v3519, 1.5
      %vm3776 = vcmp.lt.f32.partialorder %v3520, 1.5
      %vm3777 = vcmp.lt.f32.partialorder %v3521, 1.5
      %vm3778 = vcmp.lt.f32.partialorder %v3522, 1.5
      %vm3779 = vcmp.lt.f32.partialorder %v3523, 1.5
      %vm3780 = vcmp.lt.f32.partialorder %v3524, 1.5
      %vm3781 = vcmp.lt.f32.partialorder %v3525, 1.5
      %vm3782 = vcmp.lt.f32.partialorder %v3526, 1.5
      %vm3783 = vcmp.lt.f32.partialorder %v3527, 1.5
      %vm3784 = vcmp.lt.f32.partialorder %v3528, 1.5
      %vm3785 = vcmp.lt.f32.partialorder %v3529, 1.5
      %vm3786 = vcmp.lt.f32.partialorder %v3530, 1.5
      %vm3787 = vcmp.lt.f32.partialorder %v3531, 1.5
      %vm3788 = vcmp.lt.f32.partialorder %v3532, 1.5
      %vm3789 = vcmp.lt.f32.partialorder %v3533, 1.5
      %vm3790 = vcmp.lt.f32.partialorder %v3534, 1.5
      %vm3791 = vcmp.lt.f32.partialorder %v3535, 1.5
      %vm3792 = vcmp.lt.f32.partialorder %v3536, 1.5
      %vm3793 = vcmp.lt.f32.partialorder %v3537, 1.5
      %vm3794 = vcmp.lt.f32.partialorder %v3538, 1.5
      %vm3795 = vcmp.lt.f32.partialorder %v3539, 1.5
      %vm3796 = vcmp.lt.f32.partialorder %v3540, 1.5
      %vm3797 = vcmp.lt.f32.partialorder %v3541, 1.5
      %vm3798 = vcmp.lt.f32.partialorder %v3542, 1.5
      %vm3799 = vcmp.lt.f32.partialorder %v3543, 1.5
      %vm3800 = vcmp.lt.f32.partialorder %v3544, 1.5
      %vm3801 = vcmp.lt.f32.partialorder %v3545, 1.5
      %vm3802 = vcmp.lt.f32.partialorder %v3546, 1.5
      %vm3803 = vcmp.lt.f32.partialorder %v3547, 1.5
      %vm3804 = vcmp.lt.f32.partialorder %v3548, 1.5
      %vm3805 = vcmp.lt.f32.partialorder %v3549, 1.5
      %vm3806 = vcmp.lt.f32.partialorder %v3550, 1.5
      %vm3807 = vcmp.lt.f32.partialorder %v3551, 1.5
      %vm3808 = vcmp.lt.f32.partialorder %v3552, 1.5
      %vm3809 = vcmp.lt.f32.partialorder %v3553, 1.5
      %vm3810 = vcmp.lt.f32.partialorder %v3554, 1.5
      %vm3811 = vcmp.lt.f32.partialorder %v3555, 1.5
      %vm3812 = vcmp.lt.f32.partialorder %v3556, 1.5
      %vm3813 = vcmp.lt.f32.partialorder %v3557, 1.5
      %vm3814 = vcmp.lt.f32.partialorder %v3558, 1.5
      %vm3815 = vcmp.lt.f32.partialorder %v3559, 1.5
      %vm3816 = vcmp.lt.f32.partialorder %v3560, 1.5
      %vm3817 = vcmp.lt.f32.partialorder %v3561, 1.5
      %vm3818 = vcmp.lt.f32.partialorder %v3562, 1.5
      %vm3819 = vcmp.lt.f32.partialorder %v3563, 1.5
      %v3820 = vsub.f32 1.5, %v3500
      %v3821 = vsub.f32 1.5, %v3501
      %v3822 = vsub.f32 1.5, %v3502
      %v3823 = vsub.f32 1.5, %v3503
      %v3824 = vsub.f32 1.5, %v3504
      %v3825 = vsub.f32 1.5, %v3505
      %v3826 = vsub.f32 1.5, %v3506
      %v3827 = vsub.f32 1.5, %v3507
      %v3828 = vsub.f32 1.5, %v3508
      %v3829 = vsub.f32 1.5, %v3509
      %v3830 = vsub.f32 1.5, %v3510
      %v3831 = vsub.f32 1.5, %v3511
      %v3832 = vsub.f32 1.5, %v3512
      %v3833 = vsub.f32 1.5, %v3513
      %v3834 = vsub.f32 1.5, %v3514
      %v3835 = vsub.f32 1.5, %v3515
      %v3836 = vsub.f32 1.5, %v3516
      %v3837 = vsub.f32 1.5, %v3517
      %v3838 = vsub.f32 1.5, %v3518
      %v3839 = vsub.f32 1.5, %v3519
      %v3840 = vsub.f32 1.5, %v3520
      %v3841 = vsub.f32 1.5, %v3521
      %v3842 = vsub.f32 1.5, %v3522
      %v3843 = vsub.f32 1.5, %v3523
      %v3844 = vsub.f32 1.5, %v3524
      %v3845 = vsub.f32 1.5, %v3525
      %v3846 = vsub.f32 1.5, %v3526
      %v3847 = vsub.f32 1.5, %v3527
      %v3848 = vsub.f32 1.5, %v3528
      %v3849 = vsub.f32 1.5, %v3529
      %v3850 = vsub.f32 1.5, %v3530
      %v3851 = vsub.f32 1.5, %v3531
      %v3852 = vsub.f32 1.5, %v3532
      %v3853 = vsub.f32 1.5, %v3533
      %v3854 = vsub.f32 1.5, %v3534
      %v3855 = vsub.f32 1.5, %v3535
      %v3856 = vsub.f32 1.5, %v3536
      %v3857 = vsub.f32 1.5, %v3537
      %v3858 = vsub.f32 1.5, %v3538
      %v3859 = vsub.f32 1.5, %v3539
      %v3860 = vsub.f32 1.5, %v3540
      %v3861 = vsub.f32 1.5, %v3541
      %v3862 = vsub.f32 1.5, %v3542
      %v3863 = vsub.f32 1.5, %v3543
      %v3864 = vsub.f32 1.5, %v3544
      %v3865 = vsub.f32 1.5, %v3545
      %v3866 = vsub.f32 1.5, %v3546
      %v3867 = vsub.f32 1.5, %v3547
      %v3868 = vsub.f32 1.5, %v3548
      %v3869 = vsub.f32 1.5, %v3549
      %v3870 = vsub.f32 1.5, %v3550
      %v3871 = vsub.f32 1.5, %v3551
      %v3872 = vsub.f32 1.5, %v3552
      %v3873 = vsub.f32 1.5, %v3553
      %v3874 = vsub.f32 1.5, %v3554
      %v3875 = vsub.f32 1.5, %v3555
      %v3876 = vsub.f32 1.5, %v3556
      %v3877 = vsub.f32 1.5, %v3557
      %v3878 = vsub.f32 1.5, %v3558
      %v3879 = vsub.f32 1.5, %v3559
      %v3880 = vsub.f32 1.5, %v3560
      %v3881 = vsub.f32 1.5, %v3561
      %v3882 = vsub.f32 1.5, %v3562
      %v3883 = vsub.f32 1.5, %v3563
      %v3884 = vmul.f32 %v3820, 0.5
      %v3885 = vmul.f32 %v3821, 0.5
      %v3886 = vmul.f32 %v3822, 0.5
      %v3887 = vmul.f32 %v3823, 0.5
      %v3888 = vmul.f32 %v3824, 0.5
      %v3889 = vmul.f32 %v3825, 0.5
      %v3890 = vmul.f32 %v3826, 0.5
      %v3891 = vmul.f32 %v3827, 0.5
      %v3892 = vmul.f32 %v3828, 0.5
      %v3893 = vmul.f32 %v3829, 0.5
      %v3894 = vmul.f32 %v3830, 0.5
      %v3895 = vmul.f32 %v3831, 0.5
      %v3896 = vmul.f32 %v3832, 0.5
      %v3897 = vmul.f32 %v3833, 0.5
      %v3898 = vmul.f32 %v3834, 0.5
      %v3899 = vmul.f32 %v3835, 0.5
      %v3900 = vmul.f32 %v3836, 0.5
      %v3901 = vmul.f32 %v3837, 0.5
      %v3902 = vmul.f32 %v3838, 0.5
      %v3903 = vmul.f32 %v3839, 0.5
      %v3904 = vmul.f32 %v3840, 0.5
      %v3905 = vmul.f32 %v3841, 0.5
      %v3906 = vmul.f32 %v3842, 0.5
      %v3907 = vmul.f32 %v3843, 0.5
      %v3908 = vmul.f32 %v3844, 0.5
      %v3909 = vmul.f32 %v3845, 0.5
      %v3910 = vmul.f32 %v3846, 0.5
      %v3911 = vmul.f32 %v3847, 0.5
      %v3912 = vmul.f32 %v3848, 0.5
      %v3913 = vmul.f32 %v3849, 0.5
      %v3914 = vmul.f32 %v3850, 0.5
      %v3915 = vmul.f32 %v3851, 0.5
      %v3916 = vmul.f32 %v3852, 0.5
      %v3917 = vmul.f32 %v3853, 0.5
      %v3918 = vmul.f32 %v3854, 0.5
      %v3919 = vmul.f32 %v3855, 0.5
      %v3920 = vmul.f32 %v3856, 0.5
      %v3921 = vmul.f32 %v3857, 0.5
      %v3922 = vmul.f32 %v3858, 0.5
      %v3923 = vmul.f32 %v3859, 0.5
      %v3924 = vmul.f32 %v3860, 0.5
      %v3925 = vmul.f32 %v3861, 0.5
      %v3926 = vmul.f32 %v3862, 0.5
      %v3927 = vmul.f32 %v3863, 0.5
      %v3928 = vmul.f32 %v3864, 0.5
      %v3929 = vmul.f32 %v3865, 0.5
      %v3930 = vmul.f32 %v3866, 0.5
      %v3931 = vmul.f32 %v3867, 0.5
      %v3932 = vmul.f32 %v3868, 0.5
      %v3933 = vmul.f32 %v3869, 0.5
      %v3934 = vmul.f32 %v3870, 0.5
      %v3935 = vmul.f32 %v3871, 0.5
      %v3936 = vmul.f32 %v3872, 0.5
      %v3937 = vmul.f32 %v3873, 0.5
      %v3938 = vmul.f32 %v3874, 0.5
      %v3939 = vmul.f32 %v3875, 0.5
      %v3940 = vmul.f32 %v3876, 0.5
      %v3941 = vmul.f32 %v3877, 0.5
      %v3942 = vmul.f32 %v3878, 0.5
      %v3943 = vmul.f32 %v3879, 0.5
      %v3944 = vmul.f32 %v3880, 0.5
      %v3945 = vmul.f32 %v3881, 0.5
      %v3946 = vmul.f32 %v3882, 0.5
      %v3947 = vmul.f32 %v3883, 0.5
      %v3948 = vmul.f32 %v3884, %v3820
      %v3949 = vmul.f32 %v3885, %v3821
      %v3950 = vmul.f32 %v3886, %v3822
      %v3951 = vmul.f32 %v3887, %v3823
      %v3952 = vmul.f32 %v3888, %v3824
      %v3953 = vmul.f32 %v3889, %v3825
      %v3954 = vmul.f32 %v3890, %v3826
      %v3955 = vmul.f32 %v3891, %v3827
      %v3956 = vmul.f32 %v3892, %v3828
      %v3957 = vmul.f32 %v3893, %v3829
      %v3958 = vmul.f32 %v3894, %v3830
      %v3959 = vmul.f32 %v3895, %v3831
      %v3960 = vmul.f32 %v3896, %v3832
      %v3961 = vmul.f32 %v3897, %v3833
      %v3962 = vmul.f32 %v3898, %v3834
      %v3963 = vmul.f32 %v3899, %v3835
      %v3964 = vmul.f32 %v3900, %v3836
      %v3965 = vmul.f32 %v3901, %v3837
      %v3966 = vmul.f32 %v3902, %v3838
      %v3967 = vmul.f32 %v3903, %v3839
      %v3968 = vmul.f32 %v3904, %v3840
      %v3969 = vmul.f32 %v3905, %v3841
      %v3970 = vmul.f32 %v3906, %v3842
      %v3971 = vmul.f32 %v3907, %v3843
      %v3972 = vmul.f32 %v3908, %v3844
      %v3973 = vmul.f32 %v3909, %v3845
      %v3974 = vmul.f32 %v3910, %v3846
      %v3975 = vmul.f32 %v3911, %v3847
      %v3976 = vmul.f32 %v3912, %v3848
      %v3977 = vmul.f32 %v3913, %v3849
      %v3978 = vmul.f32 %v3914, %v3850
      %v3979 = vmul.f32 %v3915, %v3851
      %v3980 = vmul.f32 %v3916, %v3852
      %v3981 = vmul.f32 %v3917, %v3853
      %v3982 = vmul.f32 %v3918, %v3854
      %v3983 = vmul.f32 %v3919, %v3855
      %v3984 = vmul.f32 %v3920, %v3856
      %v3985 = vmul.f32 %v3921, %v3857
      %v3986 = vmul.f32 %v3922, %v3858
      %v3987 = vmul.f32 %v3923, %v3859
      %v3988 = vmul.f32 %v3924, %v3860
      %v3989 = vmul.f32 %v3925, %v3861
      %v3990 = vmul.f32 %v3926, %v3862
      %v3991 = vmul.f32 %v3927, %v3863
      %v3992 = vmul.f32 %v3928, %v3864
      %v3993 = vmul.f32 %v3929, %v3865
      %v3994 = vmul.f32 %v3930, %v3866
      %v3995 = vmul.f32 %v3931, %v3867
      %v3996 = vmul.f32 %v3932, %v3868
      %v3997 = vmul.f32 %v3933, %v3869
      %v3998 = vmul.f32 %v3934, %v3870
      %v3999 = vmul.f32 %v3935, %v3871
      %v4000 = vmul.f32 %v3936, %v3872
      %v4001 = vmul.f32 %v3937, %v3873
      %v4002 = vmul.f32 %v3938, %v3874
      %v4003 = vmul.f32 %v3939, %v3875
      %v4004 = vmul.f32 %v3940, %v3876
      %v4005 = vmul.f32 %v3941, %v3877
      %v4006 = vmul.f32 %v3942, %v3878
      %v4007 = vmul.f32 %v3943, %v3879
      %v4008 = vmul.f32 %v3944, %v3880
      %v4009 = vmul.f32 %v3945, %v3881
      %v4010 = vmul.f32 %v3946, %v3882
      %v4011 = vmul.f32 %v3947, %v3883
      %v4012 = vsel %vm3756, %v3948, 0.0
      %v4013 = vsel %vm3757, %v3949, 0.0
      %v4014 = vsel %vm3758, %v3950, 0.0
      %v4015 = vsel %vm3759, %v3951, 0.0
      %v4016 = vsel %vm3760, %v3952, 0.0
      %v4017 = vsel %vm3761, %v3953, 0.0
      %v4018 = vsel %vm3762, %v3954, 0.0
      %v4019 = vsel %vm3763, %v3955, 0.0
      %v4020 = vsel %vm3764, %v3956, 0.0
      %v4021 = vsel %vm3765, %v3957, 0.0
      %v4022 = vsel %vm3766, %v3958, 0.0
      %v4023 = vsel %vm3767, %v3959, 0.0
      %v4024 = vsel %vm3768, %v3960, 0.0
      %v4025 = vsel %vm3769, %v3961, 0.0
      %v4026 = vsel %vm3770, %v3962, 0.0
      %v4027 = vsel %vm3771, %v3963, 0.0
      %v4028 = vsel %vm3772, %v3964, 0.0
      %v4029 = vsel %vm3773, %v3965, 0.0
      %v4030 = vsel %vm3774, %v3966, 0.0
      %v4031 = vsel %vm3775, %v3967, 0.0
      %v4032 = vsel %vm3776, %v3968, 0.0
      %v4033 = vsel %vm3777, %v3969, 0.0
      %v4034 = vsel %vm3778, %v3970, 0.0
      %v4035 = vsel %vm3779, %v3971, 0.0
      %v4036 = vsel %vm3780, %v3972, 0.0
      %v4037 = vsel %vm3781, %v3973, 0.0
      %v4038 = vsel %vm3782, %v3974, 0.0
      %v4039 = vsel %vm3783, %v3975, 0.0
      %v4040 = vsel %vm3784, %v3976, 0.0
      %v4041 = vsel %vm3785, %v3977, 0.0
      %v4042 = vsel %vm3786, %v3978, 0.0
      %v4043 = vsel %vm3787, %v3979, 0.0
      %v4044 = vsel %vm3788, %v3980, 0.0
      %v4045 = vsel %vm3789, %v3981, 0.0
      %v4046 = vsel %vm3790, %v3982, 0.0
      %v4047 = vsel %vm3791, %v3983, 0.0
      %v4048 = vsel %vm3792, %v3984, 0.0
      %v4049 = vsel %vm3793, %v3985, 0.0
      %v4050 = vsel %vm3794, %v3986, 0.0
      %v4051 = vsel %vm3795, %v3987, 0.0
      %v4052 = vsel %vm3796, %v3988, 0.0
      %v4053 = vsel %vm3797, %v3989, 0.0
      %v4054 = vsel %vm3798, %v3990, 0.0
      %v4055 = vsel %vm3799, %v3991, 0.0
      %v4056 = vsel %vm3800, %v3992, 0.0
      %v4057 = vsel %vm3801, %v3993, 0.0
      %v4058 = vsel %vm3802, %v3994, 0.0
      %v4059 = vsel %vm3803, %v3995, 0.0
      %v4060 = vsel %vm3804, %v3996, 0.0
      %v4061 = vsel %vm3805, %v3997, 0.0
      %v4062 = vsel %vm3806, %v3998, 0.0
      %v4063 = vsel %vm3807, %v3999, 0.0
      %v4064 = vsel %vm3808, %v4000, 0.0
      %v4065 = vsel %vm3809, %v4001, 0.0
      %v4066 = vsel %vm3810, %v4002, 0.0
      %v4067 = vsel %vm3811, %v4003, 0.0
      %v4068 = vsel %vm3812, %v4004, 0.0
      %v4069 = vsel %vm3813, %v4005, 0.0
      %v4070 = vsel %vm3814, %v4006, 0.0
      %v4071 = vsel %vm3815, %v4007, 0.0
      %v4072 = vsel %vm3816, %v4008, 0.0
      %v4073 = vsel %vm3817, %v4009, 0.0
      %v4074 = vsel %vm3818, %v4010, 0.0
      %v4075 = vsel %vm3819, %v4011, 0.0
      %v4076 = vsel %vm3564, %v3692, %v4012
      %v4077 = vsel %vm3565, %v3693, %v4013
      %v4078 = vsel %vm3566, %v3694, %v4014
      %v4079 = vsel %vm3567, %v3695, %v4015
      %v4080 = vsel %vm3568, %v3696, %v4016
      %v4081 = vsel %vm3569, %v3697, %v4017
      %v4082 = vsel %vm3570, %v3698, %v4018
      %v4083 = vsel %vm3571, %v3699, %v4019
      %v4084 = vsel %vm3572, %v3700, %v4020
      %v4085 = vsel %vm3573, %v3701, %v4021
      %v4086 = vsel %vm3574, %v3702, %v4022
      %v4087 = vsel %vm3575, %v3703, %v4023
      %v4088 = vsel %vm3576, %v3704, %v4024
      %v4089 = vsel %vm3577, %v3705, %v4025
      %v4090 = vsel %vm3578, %v3706, %v4026
      %v4091 = vsel %vm3579, %v3707, %v4027
      %v4092 = vsel %vm3580, %v3708, %v4028
      %v4093 = vsel %vm3581, %v3709, %v4029
      %v4094 = vsel %vm3582, %v3710, %v4030
      %v4095 = vsel %vm3583, %v3711, %v4031
      %v4096 = vsel %vm3584, %v3712, %v4032
      %v4097 = vsel %vm3585, %v3713, %v4033
      %v4098 = vsel %vm3586, %v3714, %v4034
      %v4099 = vsel %vm3587, %v3715, %v4035
      %v4100 = vsel %vm3588, %v3716, %v4036
      %v4101 = vsel %vm3589, %v3717, %v4037
      %v4102 = vsel %vm3590, %v3718, %v4038
      %v4103 = vsel %vm3591, %v3719, %v4039
      %v4104 = vsel %vm3592, %v3720, %v4040
      %v4105 = vsel %vm3593, %v3721, %v4041
      %v4106 = vsel %vm3594, %v3722, %v4042
      %v4107 = vsel %vm3595, %v3723, %v4043
      %v4108 = vsel %vm3596, %v3724, %v4044
      %v4109 = vsel %vm3597, %v3725, %v4045
      %v4110 = vsel %vm3598, %v3726, %v4046
      %v4111 = vsel %vm3599, %v3727, %v4047
      %v4112 = vsel %vm3600, %v3728, %v4048
      %v4113 = vsel %vm3601, %v3729, %v4049
      %v4114 = vsel %vm3602, %v3730, %v4050
      %v4115 = vsel %vm3603, %v3731, %v4051
      %v4116 = vsel %vm3604, %v3732, %v4052
      %v4117 = vsel %vm3605, %v3733, %v4053
      %v4118 = vsel %vm3606, %v3734, %v4054
      %v4119 = vsel %vm3607, %v3735, %v4055
      %v4120 = vsel %vm3608, %v3736, %v4056
      %v4121 = vsel %vm3609, %v3737, %v4057
      %v4122 = vsel %vm3610, %v3738, %v4058
      %v4123 = vsel %vm3611, %v3739, %v4059
      %v4124 = vsel %vm3612, %v3740, %v4060
      %v4125 = vsel %vm3613, %v3741, %v4061
      %v4126 = vsel %vm3614, %v3742, %v4062
      %v4127 = vsel %vm3615, %v3743, %v4063
      %v4128 = vsel %vm3616, %v3744, %v4064
      %v4129 = vsel %vm3617, %v3745, %v4065
      %v4130 = vsel %vm3618, %v3746, %v4066
      %v4131 = vsel %vm3619, %v3747, %v4067
      %v4132 = vsel %vm3620, %v3748, %v4068
      %v4133 = vsel %vm3621, %v3749, %v4069
      %v4134 = vsel %vm3622, %v3750, %v4070
      %v4135 = vsel %vm3623, %v3751, %v4071
      %v4136 = vsel %vm3624, %v3752, %v4072
      %v4137 = vsel %vm3625, %v3753, %v4073
      %v4138 = vsel %vm3626, %v3754, %v4074
      %v4139 = vsel %vm3627, %v3755, %v4075
      %v4140 = vmul.f32 %v3114, %v4076
      %v4141 = vmul.f32 %v3115, %v4077
      %v4142 = vmul.f32 %v3116, %v4078
      %v4143 = vmul.f32 %v3117, %v4079
      %v4144 = vmul.f32 %v3118, %v4080
      %v4145 = vmul.f32 %v3119, %v4081
      %v4146 = vmul.f32 %v3120, %v4082
      %v4147 = vmul.f32 %v3121, %v4083
      %v4148 = vmul.f32 %v3122, %v4084
      %v4149 = vmul.f32 %v3123, %v4085
      %v4150 = vmul.f32 %v3124, %v4086
      %v4151 = vmul.f32 %v3125, %v4087
      %v4152 = vmul.f32 %v3126, %v4088
      %v4153 = vmul.f32 %v3127, %v4089
      %v4154 = vmul.f32 %v3128, %v4090
      %v4155 = vmul.f32 %v3129, %v4091
      %v4156 = vmul.f32 %v3130, %v4092
      %v4157 = vmul.f32 %v3131, %v4093
      %v4158 = vmul.f32 %v3132, %v4094
      %v4159 = vmul.f32 %v3133, %v4095
      %v4160 = vmul.f32 %v3134, %v4096
      %v4161 = vmul.f32 %v3135, %v4097
      %v4162 = vmul.f32 %v3136, %v4098
      %v4163 = vmul.f32 %v3137, %v4099
      %v4164 = vmul.f32 %v3138, %v4100
      %v4165 = vmul.f32 %v3139, %v4101
      %v4166 = vmul.f32 %v3140, %v4102
      %v4167 = vmul.f32 %v3141, %v4103
      %v4168 = vmul.f32 %v3142, %v4104
      %v4169 = vmul.f32 %v3143, %v4105
      %v4170 = vmul.f32 %v3144, %v4106
      %v4171 = vmul.f32 %v3145, %v4107
      %v4172 = vmul.f32 %v3146, %v4108
      %v4173 = vmul.f32 %v3147, %v4109
      %v4174 = vmul.f32 %v3148, %v4110
      %v4175 = vmul.f32 %v3149, %v4111
      %v4176 = vmul.f32 %v3150, %v4112
      %v4177 = vmul.f32 %v3151, %v4113
      %v4178 = vmul.f32 %v3152, %v4114
      %v4179 = vmul.f32 %v3153, %v4115
      %v4180 = vmul.f32 %v3154, %v4116
      %v4181 = vmul.f32 %v3155, %v4117
      %v4182 = vmul.f32 %v3156, %v4118
      %v4183 = vmul.f32 %v3157, %v4119
      %v4184 = vmul.f32 %v3158, %v4120
      %v4185 = vmul.f32 %v3159, %v4121
      %v4186 = vmul.f32 %v3160, %v4122
      %v4187 = vmul.f32 %v3161, %v4123
      %v4188 = vmul.f32 %v3162, %v4124
      %v4189 = vmul.f32 %v3163, %v4125
      %v4190 = vmul.f32 %v3164, %v4126
      %v4191 = vmul.f32 %v3165, %v4127
      %v4192 = vmul.f32 %v3166, %v4128
      %v4193 = vmul.f32 %v3167, %v4129
      %v4194 = vmul.f32 %v3168, %v4130
      %v4195 = vmul.f32 %v3169, %v4131
      %v4196 = vmul.f32 %v3170, %v4132
      %v4197 = vmul.f32 %v3171, %v4133
      %v4198 = vmul.f32 %v3172, %v4134
      %v4199 = vmul.f32 %v3173, %v4135
      %v4200 = vmul.f32 %v3174, %v4136
      %v4201 = vmul.f32 %v3175, %v4137
      %v4202 = vmul.f32 %v3176, %v4138
      %v4203 = vmul.f32 %v3177, %v4139
      %v4204 = vmul.f32 %v1607, %v4140
      %v4205 = vmul.f32 %v1610, %v4141
      %v4206 = vmul.f32 %v1613, %v4142
      %v4207 = vmul.f32 %v1616, %v4143
      %v4208 = vmul.f32 %v1619, %v4144
      %v4209 = vmul.f32 %v1622, %v4145
      %v4210 = vmul.f32 %v1625, %v4146
      %v4211 = vmul.f32 %v1628, %v4147
      %v4212 = vmul.f32 %v1631, %v4148
      %v4213 = vmul.f32 %v1634, %v4149
      %v4214 = vmul.f32 %v1637, %v4150
      %v4215 = vmul.f32 %v1640, %v4151
      %v4216 = vmul.f32 %v1643, %v4152
      %v4217 = vmul.f32 %v1646, %v4153
      %v4218 = vmul.f32 %v1649, %v4154
      %v4219 = vmul.f32 %v1652, %v4155
      %v4220 = vmul.f32 %v1655, %v4156
      %v4221 = vmul.f32 %v1658, %v4157
      %v4222 = vmul.f32 %v1661, %v4158
      %v4223 = vmul.f32 %v1664, %v4159
      %v4224 = vmul.f32 %v1667, %v4160
      %v4225 = vmul.f32 %v1670, %v4161
      %v4226 = vmul.f32 %v1673, %v4162
      %v4227 = vmul.f32 %v1676, %v4163
      %v4228 = vmul.f32 %v1679, %v4164
      %v4229 = vmul.f32 %v1682, %v4165
      %v4230 = vmul.f32 %v1685, %v4166
      %v4231 = vmul.f32 %v1688, %v4167
      %v4232 = vmul.f32 %v1691, %v4168
      %v4233 = vmul.f32 %v1694, %v4169
      %v4234 = vmul.f32 %v1697, %v4170
      %v4235 = vmul.f32 %v1700, %v4171
      %v4236 = vmul.f32 %v1703, %v4172
      %v4237 = vmul.f32 %v1706, %v4173
      %v4238 = vmul.f32 %v1709, %v4174
      %v4239 = vmul.f32 %v1712, %v4175
      %v4240 = vmul.f32 %v1715, %v4176
      %v4241 = vmul.f32 %v1718, %v4177
      %v4242 = vmul.f32 %v1721, %v4178
      %v4243 = vmul.f32 %v1724, %v4179
      %v4244 = vmul.f32 %v1727, %v4180
      %v4245 = vmul.f32 %v1730, %v4181
      %v4246 = vmul.f32 %v1733, %v4182
      %v4247 = vmul.f32 %v1736, %v4183
      %v4248 = vmul.f32 %v1739, %v4184
      %v4249 = vmul.f32 %v1742, %v4185
      %v4250 = vmul.f32 %v1745, %v4186
      %v4251 = vmul.f32 %v1748, %v4187
      %v4252 = vmul.f32 %v1751, %v4188
      %v4253 = vmul.f32 %v1754, %v4189
      %v4254 = vmul.f32 %v1757, %v4190
      %v4255 = vmul.f32 %v1760, %v4191
      %v4256 = vmul.f32 %v1763, %v4192
      %v4257 = vmul.f32 %v1766, %v4193
      %v4258 = vmul.f32 %v1769, %v4194
      %v4259 = vmul.f32 %v1772, %v4195
      %v4260 = vmul.f32 %v1775, %v4196
      %v4261 = vmul.f32 %v1778, %v4197
      %v4262 = vmul.f32 %v1781, %v4198
      %v4263 = vmul.f32 %v1784, %v4199
      %v4264 = vmul.f32 %v1787, %v4200
      %v4265 = vmul.f32 %v1790, %v4201
      %v4266 = vmul.f32 %v1793, %v4202
      %v4267 = vmul.f32 %v1796, %v4203
      %4268 = vadd.xlane.f32.xlu0 %v4204
      %v4269 = vpop.xlane.xlu0 %4268
      %4270 = vadd.xlane.f32.xlu0 %v4205
      %v4271 = vpop.xlane.xlu0 %4270
      %4272 = vadd.xlane.f32.xlu0 %v4206
      %v4273 = vpop.xlane.xlu0 %4272
      %4274 = vadd.xlane.f32.xlu0 %v4207
      %v4275 = vpop.xlane.xlu0 %4274
      %4276 = vadd.xlane.f32.xlu0 %v4208
      %v4277 = vpop.xlane.xlu0 %4276
      %4278 = vadd.xlane.f32.xlu0 %v4209
      %v4279 = vpop.xlane.xlu0 %4278
      %4280 = vadd.xlane.f32.xlu0 %v4210
      %v4281 = vpop.xlane.xlu0 %4280
      %4282 = vadd.xlane.f32.xlu0 %v4211
      %v4283 = vpop.xlane.xlu0 %4282
      %4284 = vadd.xlane.f32.xlu0 %v4212
      %v4285 = vpop.xlane.xlu0 %4284
      %4286 = vadd.xlane.f32.xlu0 %v4213
      %v4287 = vpop.xlane.xlu0 %4286
      %4288 = vadd.xlane.f32.xlu0 %v4214
      %v4289 = vpop.xlane.xlu0 %4288
      %4290 = vadd.xlane.f32.xlu0 %v4215
      %v4291 = vpop.xlane.xlu0 %4290
      %4292 = vadd.xlane.f32.xlu0 %v4216
      %v4293 = vpop.xlane.xlu0 %4292
      %4294 = vadd.xlane.f32.xlu0 %v4217
      %v4295 = vpop.xlane.xlu0 %4294
      %4296 = vadd.xlane.f32.xlu0 %v4218
      %v4297 = vpop.xlane.xlu0 %4296
      %4298 = vadd.xlane.f32.xlu0 %v4219
      %v4299 = vpop.xlane.xlu0 %4298
      %4300 = vadd.xlane.f32.xlu0 %v4220
      %v4301 = vpop.xlane.xlu0 %4300
      %4302 = vadd.xlane.f32.xlu0 %v4221
      %v4303 = vpop.xlane.xlu0 %4302
      %4304 = vadd.xlane.f32.xlu0 %v4222
      %v4305 = vpop.xlane.xlu0 %4304
      %4306 = vadd.xlane.f32.xlu0 %v4223
      %v4307 = vpop.xlane.xlu0 %4306
      %4308 = vadd.xlane.f32.xlu0 %v4224
      %v4309 = vpop.xlane.xlu0 %4308
      %4310 = vadd.xlane.f32.xlu0 %v4225
      %v4311 = vpop.xlane.xlu0 %4310
      %4312 = vadd.xlane.f32.xlu0 %v4226
      %v4313 = vpop.xlane.xlu0 %4312
      %4314 = vadd.xlane.f32.xlu0 %v4227
      %v4315 = vpop.xlane.xlu0 %4314
      %4316 = vadd.xlane.f32.xlu0 %v4228
      %v4317 = vpop.xlane.xlu0 %4316
      %4318 = vadd.xlane.f32.xlu0 %v4229
      %v4319 = vpop.xlane.xlu0 %4318
      %4320 = vadd.xlane.f32.xlu0 %v4230
      %v4321 = vpop.xlane.xlu0 %4320
      %4322 = vadd.xlane.f32.xlu0 %v4231
      %v4323 = vpop.xlane.xlu0 %4322
      %4324 = vadd.xlane.f32.xlu0 %v4232
      %v4325 = vpop.xlane.xlu0 %4324
      %4326 = vadd.xlane.f32.xlu0 %v4233
      %v4327 = vpop.xlane.xlu0 %4326
      %4328 = vadd.xlane.f32.xlu0 %v4234
      %v4329 = vpop.xlane.xlu0 %4328
      %4330 = vadd.xlane.f32.xlu0 %v4235
      %v4331 = vpop.xlane.xlu0 %4330
      %4332 = vadd.xlane.f32.xlu0 %v4236
      %v4333 = vpop.xlane.xlu0 %4332
      %4334 = vadd.xlane.f32.xlu0 %v4237
      %v4335 = vpop.xlane.xlu0 %4334
      %4336 = vadd.xlane.f32.xlu0 %v4238
      %v4337 = vpop.xlane.xlu0 %4336
      %4338 = vadd.xlane.f32.xlu0 %v4239
      %v4339 = vpop.xlane.xlu0 %4338
      %4340 = vadd.xlane.f32.xlu0 %v4240
      %v4341 = vpop.xlane.xlu0 %4340
      %4342 = vadd.xlane.f32.xlu0 %v4241
      %v4343 = vpop.xlane.xlu0 %4342
      %4344 = vadd.xlane.f32.xlu0 %v4242
      %v4345 = vpop.xlane.xlu0 %4344
      %4346 = vadd.xlane.f32.xlu0 %v4243
      %v4347 = vpop.xlane.xlu0 %4346
      %4348 = vadd.xlane.f32.xlu0 %v4244
      %v4349 = vpop.xlane.xlu0 %4348
      %4350 = vadd.xlane.f32.xlu0 %v4245
      %v4351 = vpop.xlane.xlu0 %4350
      %4352 = vadd.xlane.f32.xlu0 %v4246
      %v4353 = vpop.xlane.xlu0 %4352
      %4354 = vadd.xlane.f32.xlu0 %v4247
      %v4355 = vpop.xlane.xlu0 %4354
      %4356 = vadd.xlane.f32.xlu0 %v4248
      %v4357 = vpop.xlane.xlu0 %4356
      %4358 = vadd.xlane.f32.xlu0 %v4249
      %v4359 = vpop.xlane.xlu0 %4358
      %4360 = vadd.xlane.f32.xlu0 %v4250
      %v4361 = vpop.xlane.xlu0 %4360
      %4362 = vadd.xlane.f32.xlu0 %v4251
      %v4363 = vpop.xlane.xlu0 %4362
      %4364 = vadd.xlane.f32.xlu0 %v4252
      %v4365 = vpop.xlane.xlu0 %4364
      %4366 = vadd.xlane.f32.xlu0 %v4253
      %v4367 = vpop.xlane.xlu0 %4366
      %4368 = vadd.xlane.f32.xlu0 %v4254
      %v4369 = vpop.xlane.xlu0 %4368
      %4370 = vadd.xlane.f32.xlu0 %v4255
      %v4371 = vpop.xlane.xlu0 %4370
      %4372 = vadd.xlane.f32.xlu0 %v4256
      %v4373 = vpop.xlane.xlu0 %4372
      %4374 = vadd.xlane.f32.xlu0 %v4257
      %v4375 = vpop.xlane.xlu0 %4374
      %4376 = vadd.xlane.f32.xlu0 %v4258
      %v4377 = vpop.xlane.xlu0 %4376
      %4378 = vadd.xlane.f32.xlu0 %v4259
      %v4379 = vpop.xlane.xlu0 %4378
      %4380 = vadd.xlane.f32.xlu0 %v4260
      %v4381 = vpop.xlane.xlu0 %4380
      %4382 = vadd.xlane.f32.xlu0 %v4261
      %v4383 = vpop.xlane.xlu0 %4382
      %4384 = vadd.xlane.f32.xlu0 %v4262
      %v4385 = vpop.xlane.xlu0 %4384
      %4386 = vadd.xlane.f32.xlu0 %v4263
      %v4387 = vpop.xlane.xlu0 %4386
      %4388 = vadd.xlane.f32.xlu0 %v4264
      %v4389 = vpop.xlane.xlu0 %4388
      %4390 = vadd.xlane.f32.xlu0 %v4265
      %v4391 = vpop.xlane.xlu0 %4390
      %4392 = vadd.xlane.f32.xlu0 %v4266
      %v4393 = vpop.xlane.xlu0 %4392
      %4394 = vadd.xlane.f32.xlu0 %v4267
      %v4395 = vpop.xlane.xlu0 %4394
      %v4396 = vmul.f32 %v1816, %v4140
      %v4397 = vmul.f32 %v1819, %v4141
      %v4398 = vmul.f32 %v1822, %v4142
      %v4399 = vmul.f32 %v1825, %v4143
      %v4400 = vmul.f32 %v1828, %v4144
      %v4401 = vmul.f32 %v1831, %v4145
      %v4402 = vmul.f32 %v1834, %v4146
      %v4403 = vmul.f32 %v1837, %v4147
      %v4404 = vmul.f32 %v1840, %v4148
      %v4405 = vmul.f32 %v1843, %v4149
      %v4406 = vmul.f32 %v1846, %v4150
      %v4407 = vmul.f32 %v1849, %v4151
      %v4408 = vmul.f32 %v1852, %v4152
      %v4409 = vmul.f32 %v1855, %v4153
      %v4410 = vmul.f32 %v1858, %v4154
      %v4411 = vmul.f32 %v1861, %v4155
      %v4412 = vmul.f32 %v1864, %v4156
      %v4413 = vmul.f32 %v1867, %v4157
      %v4414 = vmul.f32 %v1870, %v4158
      %v4415 = vmul.f32 %v1873, %v4159
      %v4416 = vmul.f32 %v1876, %v4160
      %v4417 = vmul.f32 %v1879, %v4161
      %v4418 = vmul.f32 %v1882, %v4162
      %v4419 = vmul.f32 %v1885, %v4163
      %v4420 = vmul.f32 %v1888, %v4164
      %v4421 = vmul.f32 %v1891, %v4165
      %v4422 = vmul.f32 %v1894, %v4166
      %v4423 = vmul.f32 %v1897, %v4167
      %v4424 = vmul.f32 %v1900, %v4168
      %v4425 = vmul.f32 %v1903, %v4169
      %v4426 = vmul.f32 %v1906, %v4170
      %v4427 = vmul.f32 %v1909, %v4171
      %v4428 = vmul.f32 %v1912, %v4172
      %v4429 = vmul.f32 %v1915, %v4173
      %v4430 = vmul.f32 %v1918, %v4174
      %v4431 = vmul.f32 %v1921, %v4175
      %v4432 = vmul.f32 %v1924, %v4176
      %v4433 = vmul.f32 %v1927, %v4177
      %v4434 = vmul.f32 %v1930, %v4178
      %v4435 = vmul.f32 %v1933, %v4179
      %v4436 = vmul.f32 %v1936, %v4180
      %v4437 = vmul.f32 %v1939, %v4181
      %v4438 = vmul.f32 %v1942, %v4182
      %v4439 = vmul.f32 %v1945, %v4183
      %v4440 = vmul.f32 %v1948, %v4184
      %v4441 = vmul.f32 %v1951, %v4185
      %v4442 = vmul.f32 %v1954, %v4186
      %v4443 = vmul.f32 %v1957, %v4187
      %v4444 = vmul.f32 %v1960, %v4188
      %v4445 = vmul.f32 %v1963, %v4189
      %v4446 = vmul.f32 %v1966, %v4190
      %v4447 = vmul.f32 %v1969, %v4191
      %v4448 = vmul.f32 %v1972, %v4192
      %v4449 = vmul.f32 %v1975, %v4193
      %v4450 = vmul.f32 %v1978, %v4194
      %v4451 = vmul.f32 %v1981, %v4195
      %v4452 = vmul.f32 %v1984, %v4196
      %v4453 = vmul.f32 %v1987, %v4197
      %v4454 = vmul.f32 %v1990, %v4198
      %v4455 = vmul.f32 %v1993, %v4199
      %v4456 = vmul.f32 %v1996, %v4200
      %v4457 = vmul.f32 %v1999, %v4201
      %v4458 = vmul.f32 %v2002, %v4202
      %v4459 = vmul.f32 %v2005, %v4203
      %4460 = vadd.xlane.f32.xlu0 %v4396
      %v4461 = vpop.xlane.xlu0 %4460
      %4462 = vadd.xlane.f32.xlu0 %v4397
      %v4463 = vpop.xlane.xlu0 %4462
      %4464 = vadd.xlane.f32.xlu0 %v4398
      %v4465 = vpop.xlane.xlu0 %4464
      %4466 = vadd.xlane.f32.xlu0 %v4399
      %v4467 = vpop.xlane.xlu0 %4466
      %4468 = vadd.xlane.f32.xlu0 %v4400
      %v4469 = vpop.xlane.xlu0 %4468
      %4470 = vadd.xlane.f32.xlu0 %v4401
      %v4471 = vpop.xlane.xlu0 %4470
      %4472 = vadd.xlane.f32.xlu0 %v4402
      %v4473 = vpop.xlane.xlu0 %4472
      %4474 = vadd.xlane.f32.xlu0 %v4403
      %v4475 = vpop.xlane.xlu0 %4474
      %4476 = vadd.xlane.f32.xlu0 %v4404
      %v4477 = vpop.xlane.xlu0 %4476
      %4478 = vadd.xlane.f32.xlu0 %v4405
      %v4479 = vpop.xlane.xlu0 %4478
      %4480 = vadd.xlane.f32.xlu0 %v4406
      %v4481 = vpop.xlane.xlu0 %4480
      %4482 = vadd.xlane.f32.xlu0 %v4407
      %v4483 = vpop.xlane.xlu0 %4482
      %4484 = vadd.xlane.f32.xlu0 %v4408
      %v4485 = vpop.xlane.xlu0 %4484
      %4486 = vadd.xlane.f32.xlu0 %v4409
      %v4487 = vpop.xlane.xlu0 %4486
      %4488 = vadd.xlane.f32.xlu0 %v4410
      %v4489 = vpop.xlane.xlu0 %4488
      %4490 = vadd.xlane.f32.xlu0 %v4411
      %v4491 = vpop.xlane.xlu0 %4490
      %4492 = vadd.xlane.f32.xlu0 %v4412
      %v4493 = vpop.xlane.xlu0 %4492
      %4494 = vadd.xlane.f32.xlu0 %v4413
      %v4495 = vpop.xlane.xlu0 %4494
      %4496 = vadd.xlane.f32.xlu0 %v4414
      %v4497 = vpop.xlane.xlu0 %4496
      %4498 = vadd.xlane.f32.xlu0 %v4415
      %v4499 = vpop.xlane.xlu0 %4498
      %4500 = vadd.xlane.f32.xlu0 %v4416
      %v4501 = vpop.xlane.xlu0 %4500
      %4502 = vadd.xlane.f32.xlu0 %v4417
      %v4503 = vpop.xlane.xlu0 %4502
      %4504 = vadd.xlane.f32.xlu0 %v4418
      %v4505 = vpop.xlane.xlu0 %4504
      %4506 = vadd.xlane.f32.xlu0 %v4419
      %v4507 = vpop.xlane.xlu0 %4506
      %4508 = vadd.xlane.f32.xlu0 %v4420
      %v4509 = vpop.xlane.xlu0 %4508
      %4510 = vadd.xlane.f32.xlu0 %v4421
      %v4511 = vpop.xlane.xlu0 %4510
      %4512 = vadd.xlane.f32.xlu0 %v4422
      %v4513 = vpop.xlane.xlu0 %4512
      %4514 = vadd.xlane.f32.xlu0 %v4423
      %v4515 = vpop.xlane.xlu0 %4514
      %4516 = vadd.xlane.f32.xlu0 %v4424
      %v4517 = vpop.xlane.xlu0 %4516
      %4518 = vadd.xlane.f32.xlu0 %v4425
      %v4519 = vpop.xlane.xlu0 %4518
      %4520 = vadd.xlane.f32.xlu0 %v4426
      %v4521 = vpop.xlane.xlu0 %4520
      %4522 = vadd.xlane.f32.xlu0 %v4427
      %v4523 = vpop.xlane.xlu0 %4522
      %4524 = vadd.xlane.f32.xlu0 %v4428
      %v4525 = vpop.xlane.xlu0 %4524
      %4526 = vadd.xlane.f32.xlu0 %v4429
      %v4527 = vpop.xlane.xlu0 %4526
      %4528 = vadd.xlane.f32.xlu0 %v4430
      %v4529 = vpop.xlane.xlu0 %4528
      %4530 = vadd.xlane.f32.xlu0 %v4431
      %v4531 = vpop.xlane.xlu0 %4530
      %4532 = vadd.xlane.f32.xlu0 %v4432
      %v4533 = vpop.xlane.xlu0 %4532
      %4534 = vadd.xlane.f32.xlu0 %v4433
      %v4535 = vpop.xlane.xlu0 %4534
      %4536 = vadd.xlane.f32.xlu0 %v4434
      %v4537 = vpop.xlane.xlu0 %4536
      %4538 = vadd.xlane.f32.xlu0 %v4435
      %v4539 = vpop.xlane.xlu0 %4538
      %4540 = vadd.xlane.f32.xlu0 %v4436
      %v4541 = vpop.xlane.xlu0 %4540
      %4542 = vadd.xlane.f32.xlu0 %v4437
      %v4543 = vpop.xlane.xlu0 %4542
      %4544 = vadd.xlane.f32.xlu0 %v4438
      %v4545 = vpop.xlane.xlu0 %4544
      %4546 = vadd.xlane.f32.xlu0 %v4439
      %v4547 = vpop.xlane.xlu0 %4546
      %4548 = vadd.xlane.f32.xlu0 %v4440
      %v4549 = vpop.xlane.xlu0 %4548
      %4550 = vadd.xlane.f32.xlu0 %v4441
      %v4551 = vpop.xlane.xlu0 %4550
      %4552 = vadd.xlane.f32.xlu0 %v4442
      %v4553 = vpop.xlane.xlu0 %4552
      %4554 = vadd.xlane.f32.xlu0 %v4443
      %v4555 = vpop.xlane.xlu0 %4554
      %4556 = vadd.xlane.f32.xlu0 %v4444
      %v4557 = vpop.xlane.xlu0 %4556
      %4558 = vadd.xlane.f32.xlu0 %v4445
      %v4559 = vpop.xlane.xlu0 %4558
      %4560 = vadd.xlane.f32.xlu0 %v4446
      %v4561 = vpop.xlane.xlu0 %4560
      %4562 = vadd.xlane.f32.xlu0 %v4447
      %v4563 = vpop.xlane.xlu0 %4562
      %4564 = vadd.xlane.f32.xlu0 %v4448
      %v4565 = vpop.xlane.xlu0 %4564
      %4566 = vadd.xlane.f32.xlu0 %v4449
      %v4567 = vpop.xlane.xlu0 %4566
      %4568 = vadd.xlane.f32.xlu0 %v4450
      %v4569 = vpop.xlane.xlu0 %4568
      %4570 = vadd.xlane.f32.xlu0 %v4451
      %v4571 = vpop.xlane.xlu0 %4570
      %4572 = vadd.xlane.f32.xlu0 %v4452
      %v4573 = vpop.xlane.xlu0 %4572
      %4574 = vadd.xlane.f32.xlu0 %v4453
      %v4575 = vpop.xlane.xlu0 %4574
      %4576 = vadd.xlane.f32.xlu0 %v4454
      %v4577 = vpop.xlane.xlu0 %4576
      %4578 = vadd.xlane.f32.xlu0 %v4455
      %v4579 = vpop.xlane.xlu0 %4578
      %4580 = vadd.xlane.f32.xlu0 %v4456
      %v4581 = vpop.xlane.xlu0 %4580
      %4582 = vadd.xlane.f32.xlu0 %v4457
      %v4583 = vpop.xlane.xlu0 %4582
      %4584 = vadd.xlane.f32.xlu0 %v4458
      %v4585 = vpop.xlane.xlu0 %4584
      %4586 = vadd.xlane.f32.xlu0 %v4459
      %v4587 = vpop.xlane.xlu0 %4586
      %v4588 = vmul.f32 %v2025, %v4140
      %v4589 = vmul.f32 %v2028, %v4141
      %v4590 = vmul.f32 %v2031, %v4142
      %v4591 = vmul.f32 %v2034, %v4143
      %v4592 = vmul.f32 %v2037, %v4144
      %v4593 = vmul.f32 %v2040, %v4145
      %v4594 = vmul.f32 %v2043, %v4146
      %v4595 = vmul.f32 %v2046, %v4147
      %v4596 = vmul.f32 %v2049, %v4148
      %v4597 = vmul.f32 %v2052, %v4149
      %v4598 = vmul.f32 %v2055, %v4150
      %v4599 = vmul.f32 %v2058, %v4151
      %v4600 = vmul.f32 %v2061, %v4152
      %v4601 = vmul.f32 %v2064, %v4153
      %v4602 = vmul.f32 %v2067, %v4154
      %v4603 = vmul.f32 %v2070, %v4155
      %v4604 = vmul.f32 %v2073, %v4156
      %v4605 = vmul.f32 %v2076, %v4157
      %v4606 = vmul.f32 %v2079, %v4158
      %v4607 = vmul.f32 %v2082, %v4159
      %v4608 = vmul.f32 %v2085, %v4160
      %v4609 = vmul.f32 %v2088, %v4161
      %v4610 = vmul.f32 %v2091, %v4162
      %v4611 = vmul.f32 %v2094, %v4163
      %v4612 = vmul.f32 %v2097, %v4164
      %v4613 = vmul.f32 %v2100, %v4165
      %v4614 = vmul.f32 %v2103, %v4166
      %v4615 = vmul.f32 %v2106, %v4167
      %v4616 = vmul.f32 %v2109, %v4168
      %v4617 = vmul.f32 %v2112, %v4169
      %v4618 = vmul.f32 %v2115, %v4170
      %v4619 = vmul.f32 %v2118, %v4171
      %v4620 = vmul.f32 %v2121, %v4172
      %v4621 = vmul.f32 %v2124, %v4173
      %v4622 = vmul.f32 %v2127, %v4174
      %v4623 = vmul.f32 %v2130, %v4175
      %v4624 = vmul.f32 %v2133, %v4176
      %v4625 = vmul.f32 %v2136, %v4177
      %v4626 = vmul.f32 %v2139, %v4178
      %v4627 = vmul.f32 %v2142, %v4179
      %v4628 = vmul.f32 %v2145, %v4180
      %v4629 = vmul.f32 %v2148, %v4181
      %v4630 = vmul.f32 %v2151, %v4182
      %v4631 = vmul.f32 %v2154, %v4183
      %v4632 = vmul.f32 %v2157, %v4184
      %v4633 = vmul.f32 %v2160, %v4185
      %v4634 = vmul.f32 %v2163, %v4186
      %v4635 = vmul.f32 %v2166, %v4187
      %v4636 = vmul.f32 %v2169, %v4188
      %v4637 = vmul.f32 %v2172, %v4189
      %v4638 = vmul.f32 %v2175, %v4190
      %v4639 = vmul.f32 %v2178, %v4191
      %v4640 = vmul.f32 %v2181, %v4192
      %v4641 = vmul.f32 %v2184, %v4193
      %v4642 = vmul.f32 %v2187, %v4194
      %v4643 = vmul.f32 %v2190, %v4195
      %v4644 = vmul.f32 %v2193, %v4196
      %v4645 = vmul.f32 %v2196, %v4197
      %v4646 = vmul.f32 %v2199, %v4198
      %v4647 = vmul.f32 %v2202, %v4199
      %v4648 = vmul.f32 %v2205, %v4200
      %v4649 = vmul.f32 %v2208, %v4201
      %v4650 = vmul.f32 %v2211, %v4202
      %v4651 = vmul.f32 %v2214, %v4203
      %4652 = vadd.xlane.f32.xlu0 %v4588
      %v4653 = vpop.xlane.xlu0 %4652
      %4654 = vadd.xlane.f32.xlu0 %v4589
      %v4655 = vpop.xlane.xlu0 %4654
      %4656 = vadd.xlane.f32.xlu0 %v4590
      %v4657 = vpop.xlane.xlu0 %4656
      %4658 = vadd.xlane.f32.xlu0 %v4591
      %v4659 = vpop.xlane.xlu0 %4658
      %4660 = vadd.xlane.f32.xlu0 %v4592
      %v4661 = vpop.xlane.xlu0 %4660
      %4662 = vadd.xlane.f32.xlu0 %v4593
      %v4663 = vpop.xlane.xlu0 %4662
      %4664 = vadd.xlane.f32.xlu0 %v4594
      %v4665 = vpop.xlane.xlu0 %4664
      %4666 = vadd.xlane.f32.xlu0 %v4595
      %v4667 = vpop.xlane.xlu0 %4666
      %4668 = vadd.xlane.f32.xlu0 %v4596
      %v4669 = vpop.xlane.xlu0 %4668
      %4670 = vadd.xlane.f32.xlu0 %v4597
      %v4671 = vpop.xlane.xlu0 %4670
      %4672 = vadd.xlane.f32.xlu0 %v4598
      %v4673 = vpop.xlane.xlu0 %4672
      %4674 = vadd.xlane.f32.xlu0 %v4599
      %v4675 = vpop.xlane.xlu0 %4674
      %4676 = vadd.xlane.f32.xlu0 %v4600
      %v4677 = vpop.xlane.xlu0 %4676
      %4678 = vadd.xlane.f32.xlu0 %v4601
      %v4679 = vpop.xlane.xlu0 %4678
      %4680 = vadd.xlane.f32.xlu0 %v4602
      %v4681 = vpop.xlane.xlu0 %4680
      %4682 = vadd.xlane.f32.xlu0 %v4603
      %v4683 = vpop.xlane.xlu0 %4682
      %4684 = vadd.xlane.f32.xlu0 %v4604
      %v4685 = vpop.xlane.xlu0 %4684
      %4686 = vadd.xlane.f32.xlu0 %v4605
      %v4687 = vpop.xlane.xlu0 %4686
      %4688 = vadd.xlane.f32.xlu0 %v4606
      %v4689 = vpop.xlane.xlu0 %4688
      %4690 = vadd.xlane.f32.xlu0 %v4607
      %v4691 = vpop.xlane.xlu0 %4690
      %4692 = vadd.xlane.f32.xlu0 %v4608
      %v4693 = vpop.xlane.xlu0 %4692
      %4694 = vadd.xlane.f32.xlu0 %v4609
      %v4695 = vpop.xlane.xlu0 %4694
      %4696 = vadd.xlane.f32.xlu0 %v4610
      %v4697 = vpop.xlane.xlu0 %4696
      %4698 = vadd.xlane.f32.xlu0 %v4611
      %v4699 = vpop.xlane.xlu0 %4698
      %4700 = vadd.xlane.f32.xlu0 %v4612
      %v4701 = vpop.xlane.xlu0 %4700
      %4702 = vadd.xlane.f32.xlu0 %v4613
      %v4703 = vpop.xlane.xlu0 %4702
      %4704 = vadd.xlane.f32.xlu0 %v4614
      %v4705 = vpop.xlane.xlu0 %4704
      %4706 = vadd.xlane.f32.xlu0 %v4615
      %v4707 = vpop.xlane.xlu0 %4706
      %4708 = vadd.xlane.f32.xlu0 %v4616
      %v4709 = vpop.xlane.xlu0 %4708
      %4710 = vadd.xlane.f32.xlu0 %v4617
      %v4711 = vpop.xlane.xlu0 %4710
      %4712 = vadd.xlane.f32.xlu0 %v4618
      %v4713 = vpop.xlane.xlu0 %4712
      %4714 = vadd.xlane.f32.xlu0 %v4619
      %v4715 = vpop.xlane.xlu0 %4714
      %4716 = vadd.xlane.f32.xlu0 %v4620
      %v4717 = vpop.xlane.xlu0 %4716
      %4718 = vadd.xlane.f32.xlu0 %v4621
      %v4719 = vpop.xlane.xlu0 %4718
      %4720 = vadd.xlane.f32.xlu0 %v4622
      %v4721 = vpop.xlane.xlu0 %4720
      %4722 = vadd.xlane.f32.xlu0 %v4623
      %v4723 = vpop.xlane.xlu0 %4722
      %4724 = vadd.xlane.f32.xlu0 %v4624
      %v4725 = vpop.xlane.xlu0 %4724
      %4726 = vadd.xlane.f32.xlu0 %v4625
      %v4727 = vpop.xlane.xlu0 %4726
      %4728 = vadd.xlane.f32.xlu0 %v4626
      %v4729 = vpop.xlane.xlu0 %4728
      %4730 = vadd.xlane.f32.xlu0 %v4627
      %v4731 = vpop.xlane.xlu0 %4730
      %4732 = vadd.xlane.f32.xlu0 %v4628
      %v4733 = vpop.xlane.xlu0 %4732
      %4734 = vadd.xlane.f32.xlu0 %v4629
      %v4735 = vpop.xlane.xlu0 %4734
      %4736 = vadd.xlane.f32.xlu0 %v4630
      %v4737 = vpop.xlane.xlu0 %4736
      %4738 = vadd.xlane.f32.xlu0 %v4631
      %v4739 = vpop.xlane.xlu0 %4738
      %4740 = vadd.xlane.f32.xlu0 %v4632
      %v4741 = vpop.xlane.xlu0 %4740
      %4742 = vadd.xlane.f32.xlu0 %v4633
      %v4743 = vpop.xlane.xlu0 %4742
      %4744 = vadd.xlane.f32.xlu0 %v4634
      %v4745 = vpop.xlane.xlu0 %4744
      %4746 = vadd.xlane.f32.xlu0 %v4635
      %v4747 = vpop.xlane.xlu0 %4746
      %4748 = vadd.xlane.f32.xlu0 %v4636
      %v4749 = vpop.xlane.xlu0 %4748
      %4750 = vadd.xlane.f32.xlu0 %v4637
      %v4751 = vpop.xlane.xlu0 %4750
      %4752 = vadd.xlane.f32.xlu0 %v4638
      %v4753 = vpop.xlane.xlu0 %4752
      %4754 = vadd.xlane.f32.xlu0 %v4639
      %v4755 = vpop.xlane.xlu0 %4754
      %4756 = vadd.xlane.f32.xlu0 %v4640
      %v4757 = vpop.xlane.xlu0 %4756
      %4758 = vadd.xlane.f32.xlu0 %v4641
      %v4759 = vpop.xlane.xlu0 %4758
      %4760 = vadd.xlane.f32.xlu0 %v4642
      %v4761 = vpop.xlane.xlu0 %4760
      %4762 = vadd.xlane.f32.xlu0 %v4643
      %v4763 = vpop.xlane.xlu0 %4762
      %4764 = vadd.xlane.f32.xlu0 %v4644
      %v4765 = vpop.xlane.xlu0 %4764
      %4766 = vadd.xlane.f32.xlu0 %v4645
      %v4767 = vpop.xlane.xlu0 %4766
      %4768 = vadd.xlane.f32.xlu0 %v4646
      %v4769 = vpop.xlane.xlu0 %4768
      %4770 = vadd.xlane.f32.xlu0 %v4647
      %v4771 = vpop.xlane.xlu0 %4770
      %4772 = vadd.xlane.f32.xlu0 %v4648
      %v4773 = vpop.xlane.xlu0 %4772
      %4774 = vadd.xlane.f32.xlu0 %v4649
      %v4775 = vpop.xlane.xlu0 %4774
      %4776 = vadd.xlane.f32.xlu0 %v4650
      %v4777 = vpop.xlane.xlu0 %4776
      %4778 = vadd.xlane.f32.xlu0 %v4651
      %v4779 = vpop.xlane.xlu0 %4778
      %vm4780 = vcmask 7168
      %4781 = vst.msk [vmem:[%s172] sm:$0xff] %vm4780, %v4269
      %4782 = vst.msk [vmem:[%s172 + $0x8] sm:$0xff] %vm4780, %v4271
      %4783 = vst.msk [vmem:[%s172 + $0x10] sm:$0xff] %vm4780, %v4273
      %4784 = vst.msk [vmem:[%s172 + $0x18] sm:$0xff] %vm4780, %v4275
      %4785 = vst.msk [vmem:[%s172 + $0x20] sm:$0xff] %vm4780, %v4277
      %4786 = vst.msk [vmem:[%s172 + $0x28] sm:$0xff] %vm4780, %v4279
      %4787 = vst.msk [vmem:[%s172 + $0x30] sm:$0xff] %vm4780, %v4281
      %4788 = vst.msk [vmem:[%s172 + $0x38] sm:$0xff] %vm4780, %v4283
      %4789 = vst.msk [vmem:[%s172 + $0x40] sm:$0xff] %vm4780, %v4285
      %4790 = vst.msk [vmem:[%s172 + $0x48] sm:$0xff] %vm4780, %v4287
      %4791 = vst.msk [vmem:[%s172 + $0x50] sm:$0xff] %vm4780, %v4289
      %4792 = vst.msk [vmem:[%s172 + $0x58] sm:$0xff] %vm4780, %v4291
      %4793 = vst.msk [vmem:[%s172 + $0x60] sm:$0xff] %vm4780, %v4293
      %4794 = vst.msk [vmem:[%s172 + $0x68] sm:$0xff] %vm4780, %v4295
      %4795 = vst.msk [vmem:[%s172 + $0x70] sm:$0xff] %vm4780, %v4297
      %4796 = vst.msk [vmem:[%s172 + $0x78] sm:$0xff] %vm4780, %v4299
      %4797 = vst.msk [vmem:[%s172 + $0x80] sm:$0xff] %vm4780, %v4301
      %4798 = vst.msk [vmem:[%s172 + $0x88] sm:$0xff] %vm4780, %v4303
      %4799 = vst.msk [vmem:[%s172 + $0x90] sm:$0xff] %vm4780, %v4305
      %4800 = vst.msk [vmem:[%s172 + $0x98] sm:$0xff] %vm4780, %v4307
      %4801 = vst.msk [vmem:[%s172 + $0xa0] sm:$0xff] %vm4780, %v4309
      %4802 = vst.msk [vmem:[%s172 + $0xa8] sm:$0xff] %vm4780, %v4311
      %4803 = vst.msk [vmem:[%s172 + $0xb0] sm:$0xff] %vm4780, %v4313
      %4804 = vst.msk [vmem:[%s172 + $0xb8] sm:$0xff] %vm4780, %v4315
      %4805 = vst.msk [vmem:[%s172 + $0xc0] sm:$0xff] %vm4780, %v4317
      %4806 = vst.msk [vmem:[%s172 + $0xc8] sm:$0xff] %vm4780, %v4319
      %4807 = vst.msk [vmem:[%s172 + $0xd0] sm:$0xff] %vm4780, %v4321
      %4808 = vst.msk [vmem:[%s172 + $0xd8] sm:$0xff] %vm4780, %v4323
      %4809 = vst.msk [vmem:[%s172 + $0xe0] sm:$0xff] %vm4780, %v4325
      %4810 = vst.msk [vmem:[%s172 + $0xe8] sm:$0xff] %vm4780, %v4327
      %4811 = vst.msk [vmem:[%s172 + $0xf0] sm:$0xff] %vm4780, %v4329
      %4812 = vst.msk [vmem:[%s172 + $0xf8] sm:$0xff] %vm4780, %v4331
      %4813 = vst.msk [vmem:[%s172 + $0x100] sm:$0xff] %vm4780, %v4333
      %4814 = vst.msk [vmem:[%s172 + $0x108] sm:$0xff] %vm4780, %v4335
      %4815 = vst.msk [vmem:[%s172 + $0x110] sm:$0xff] %vm4780, %v4337
      %4816 = vst.msk [vmem:[%s172 + $0x118] sm:$0xff] %vm4780, %v4339
      %4817 = vst.msk [vmem:[%s172 + $0x120] sm:$0xff] %vm4780, %v4341
      %4818 = vst.msk [vmem:[%s172 + $0x128] sm:$0xff] %vm4780, %v4343
      %4819 = vst.msk [vmem:[%s172 + $0x130] sm:$0xff] %vm4780, %v4345
      %4820 = vst.msk [vmem:[%s172 + $0x138] sm:$0xff] %vm4780, %v4347
      %4821 = vst.msk [vmem:[%s172 + $0x140] sm:$0xff] %vm4780, %v4349
      %4822 = vst.msk [vmem:[%s172 + $0x148] sm:$0xff] %vm4780, %v4351
      %4823 = vst.msk [vmem:[%s172 + $0x150] sm:$0xff] %vm4780, %v4353
      %4824 = vst.msk [vmem:[%s172 + $0x158] sm:$0xff] %vm4780, %v4355
      %4825 = vst.msk [vmem:[%s172 + $0x160] sm:$0xff] %vm4780, %v4357
      %4826 = vst.msk [vmem:[%s172 + $0x168] sm:$0xff] %vm4780, %v4359
      %4827 = vst.msk [vmem:[%s172 + $0x170] sm:$0xff] %vm4780, %v4361
      %4828 = vst.msk [vmem:[%s172 + $0x178] sm:$0xff] %vm4780, %v4363
      %4829 = vst.msk [vmem:[%s172 + $0x180] sm:$0xff] %vm4780, %v4365
      %4830 = vst.msk [vmem:[%s172 + $0x188] sm:$0xff] %vm4780, %v4367
      %4831 = vst.msk [vmem:[%s172 + $0x190] sm:$0xff] %vm4780, %v4369
      %4832 = vst.msk [vmem:[%s172 + $0x198] sm:$0xff] %vm4780, %v4371
      %4833 = vst.msk [vmem:[%s172 + $0x1a0] sm:$0xff] %vm4780, %v4373
      %4834 = vst.msk [vmem:[%s172 + $0x1a8] sm:$0xff] %vm4780, %v4375
      %4835 = vst.msk [vmem:[%s172 + $0x1b0] sm:$0xff] %vm4780, %v4377
      %4836 = vst.msk [vmem:[%s172 + $0x1b8] sm:$0xff] %vm4780, %v4379
      %4837 = vst.msk [vmem:[%s172 + $0x1c0] sm:$0xff] %vm4780, %v4381
      %4838 = vst.msk [vmem:[%s172 + $0x1c8] sm:$0xff] %vm4780, %v4383
      %4839 = vst.msk [vmem:[%s172 + $0x1d0] sm:$0xff] %vm4780, %v4385
      %4840 = vst.msk [vmem:[%s172 + $0x1d8] sm:$0xff] %vm4780, %v4387
      %4841 = vst.msk [vmem:[%s172 + $0x1e0] sm:$0xff] %vm4780, %v4389
      %4842 = vst.msk [vmem:[%s172 + $0x1e8] sm:$0xff] %vm4780, %v4391
      %4843 = vst.msk [vmem:[%s172 + $0x1f0] sm:$0xff] %vm4780, %v4393
      %4844 = vst.msk [vmem:[%s172 + $0x1f8] sm:$0xff] %vm4780, %v4395
      %vm4845 = vcmask 15368
      %4846 = vst.msk [vmem:[%s172] sm:$0xff] %vm4845, %v4461
      %4847 = vst.msk [vmem:[%s172 + $0x8] sm:$0xff] %vm4845, %v4463
      %4848 = vst.msk [vmem:[%s172 + $0x10] sm:$0xff] %vm4845, %v4465
      %4849 = vst.msk [vmem:[%s172 + $0x18] sm:$0xff] %vm4845, %v4467
      %4850 = vst.msk [vmem:[%s172 + $0x20] sm:$0xff] %vm4845, %v4469
      %4851 = vst.msk [vmem:[%s172 + $0x28] sm:$0xff] %vm4845, %v4471
      %4852 = vst.msk [vmem:[%s172 + $0x30] sm:$0xff] %vm4845, %v4473
      %4853 = vst.msk [vmem:[%s172 + $0x38] sm:$0xff] %vm4845, %v4475
      %4854 = vst.msk [vmem:[%s172 + $0x40] sm:$0xff] %vm4845, %v4477
      %4855 = vst.msk [vmem:[%s172 + $0x48] sm:$0xff] %vm4845, %v4479
      %4856 = vst.msk [vmem:[%s172 + $0x50] sm:$0xff] %vm4845, %v4481
      %4857 = vst.msk [vmem:[%s172 + $0x58] sm:$0xff] %vm4845, %v4483
      %4858 = vst.msk [vmem:[%s172 + $0x60] sm:$0xff] %vm4845, %v4485
      %4859 = vst.msk [vmem:[%s172 + $0x68] sm:$0xff] %vm4845, %v4487
      %4860 = vst.msk [vmem:[%s172 + $0x70] sm:$0xff] %vm4845, %v4489
      %4861 = vst.msk [vmem:[%s172 + $0x78] sm:$0xff] %vm4845, %v4491
      %4862 = vst.msk [vmem:[%s172 + $0x80] sm:$0xff] %vm4845, %v4493
      %4863 = vst.msk [vmem:[%s172 + $0x88] sm:$0xff] %vm4845, %v4495
      %4864 = vst.msk [vmem:[%s172 + $0x90] sm:$0xff] %vm4845, %v4497
      %4865 = vst.msk [vmem:[%s172 + $0x98] sm:$0xff] %vm4845, %v4499
      %4866 = vst.msk [vmem:[%s172 + $0xa0] sm:$0xff] %vm4845, %v4501
      %4867 = vst.msk [vmem:[%s172 + $0xa8] sm:$0xff] %vm4845, %v4503
      %4868 = vst.msk [vmem:[%s172 + $0xb0] sm:$0xff] %vm4845, %v4505
      %4869 = vst.msk [vmem:[%s172 + $0xb8] sm:$0xff] %vm4845, %v4507
      %4870 = vst.msk [vmem:[%s172 + $0xc0] sm:$0xff] %vm4845, %v4509
      %4871 = vst.msk [vmem:[%s172 + $0xc8] sm:$0xff] %vm4845, %v4511
      %4872 = vst.msk [vmem:[%s172 + $0xd0] sm:$0xff] %vm4845, %v4513
      %4873 = vst.msk [vmem:[%s172 + $0xd8] sm:$0xff] %vm4845, %v4515
      %4874 = vst.msk [vmem:[%s172 + $0xe0] sm:$0xff] %vm4845, %v4517
      %4875 = vst.msk [vmem:[%s172 + $0xe8] sm:$0xff] %vm4845, %v4519
      %4876 = vst.msk [vmem:[%s172 + $0xf0] sm:$0xff] %vm4845, %v4521
      %4877 = vst.msk [vmem:[%s172 + $0xf8] sm:$0xff] %vm4845, %v4523
      %4878 = vst.msk [vmem:[%s172 + $0x100] sm:$0xff] %vm4845, %v4525
      %4879 = vst.msk [vmem:[%s172 + $0x108] sm:$0xff] %vm4845, %v4527
      %4880 = vst.msk [vmem:[%s172 + $0x110] sm:$0xff] %vm4845, %v4529
      %4881 = vst.msk [vmem:[%s172 + $0x118] sm:$0xff] %vm4845, %v4531
      %4882 = vst.msk [vmem:[%s172 + $0x120] sm:$0xff] %vm4845, %v4533
      %4883 = vst.msk [vmem:[%s172 + $0x128] sm:$0xff] %vm4845, %v4535
      %4884 = vst.msk [vmem:[%s172 + $0x130] sm:$0xff] %vm4845, %v4537
      %4885 = vst.msk [vmem:[%s172 + $0x138] sm:$0xff] %vm4845, %v4539
      %4886 = vst.msk [vmem:[%s172 + $0x140] sm:$0xff] %vm4845, %v4541
      %4887 = vst.msk [vmem:[%s172 + $0x148] sm:$0xff] %vm4845, %v4543
      %4888 = vst.msk [vmem:[%s172 + $0x150] sm:$0xff] %vm4845, %v4545
      %4889 = vst.msk [vmem:[%s172 + $0x158] sm:$0xff] %vm4845, %v4547
      %4890 = vst.msk [vmem:[%s172 + $0x160] sm:$0xff] %vm4845, %v4549
      %4891 = vst.msk [vmem:[%s172 + $0x168] sm:$0xff] %vm4845, %v4551
      %4892 = vst.msk [vmem:[%s172 + $0x170] sm:$0xff] %vm4845, %v4553
      %4893 = vst.msk [vmem:[%s172 + $0x178] sm:$0xff] %vm4845, %v4555
      %4894 = vst.msk [vmem:[%s172 + $0x180] sm:$0xff] %vm4845, %v4557
      %4895 = vst.msk [vmem:[%s172 + $0x188] sm:$0xff] %vm4845, %v4559
      %4896 = vst.msk [vmem:[%s172 + $0x190] sm:$0xff] %vm4845, %v4561
      %4897 = vst.msk [vmem:[%s172 + $0x198] sm:$0xff] %vm4845, %v4563
      %4898 = vst.msk [vmem:[%s172 + $0x1a0] sm:$0xff] %vm4845, %v4565
      %4899 = vst.msk [vmem:[%s172 + $0x1a8] sm:$0xff] %vm4845, %v4567
      %4900 = vst.msk [vmem:[%s172 + $0x1b0] sm:$0xff] %vm4845, %v4569
      %4901 = vst.msk [vmem:[%s172 + $0x1b8] sm:$0xff] %vm4845, %v4571
      %4902 = vst.msk [vmem:[%s172 + $0x1c0] sm:$0xff] %vm4845, %v4573
      %4903 = vst.msk [vmem:[%s172 + $0x1c8] sm:$0xff] %vm4845, %v4575
      %4904 = vst.msk [vmem:[%s172 + $0x1d0] sm:$0xff] %vm4845, %v4577
      %4905 = vst.msk [vmem:[%s172 + $0x1d8] sm:$0xff] %vm4845, %v4579
      %4906 = vst.msk [vmem:[%s172 + $0x1e0] sm:$0xff] %vm4845, %v4581
      %4907 = vst.msk [vmem:[%s172 + $0x1e8] sm:$0xff] %vm4845, %v4583
      %4908 = vst.msk [vmem:[%s172 + $0x1f0] sm:$0xff] %vm4845, %v4585
      %4909 = vst.msk [vmem:[%s172 + $0x1f8] sm:$0xff] %vm4845, %v4587
      %vm4910 = vcmask 23568
      %4911 = vst.msk [vmem:[%s172] sm:$0xff] %vm4910, %v4653
      %4912 = vst.msk [vmem:[%s172 + $0x8] sm:$0xff] %vm4910, %v4655
      %4913 = vst.msk [vmem:[%s172 + $0x10] sm:$0xff] %vm4910, %v4657
      %4914 = vst.msk [vmem:[%s172 + $0x18] sm:$0xff] %vm4910, %v4659
      %4915 = vst.msk [vmem:[%s172 + $0x20] sm:$0xff] %vm4910, %v4661
      %4916 = vst.msk [vmem:[%s172 + $0x28] sm:$0xff] %vm4910, %v4663
      %4917 = vst.msk [vmem:[%s172 + $0x30] sm:$0xff] %vm4910, %v4665
      %4918 = vst.msk [vmem:[%s172 + $0x38] sm:$0xff] %vm4910, %v4667
      %4919 = vst.msk [vmem:[%s172 + $0x40] sm:$0xff] %vm4910, %v4669
      %4920 = vst.msk [vmem:[%s172 + $0x48] sm:$0xff] %vm4910, %v4671
      %4921 = vst.msk [vmem:[%s172 + $0x50] sm:$0xff] %vm4910, %v4673
      %4922 = vst.msk [vmem:[%s172 + $0x58] sm:$0xff] %vm4910, %v4675
      %4923 = vst.msk [vmem:[%s172 + $0x60] sm:$0xff] %vm4910, %v4677
      %4924 = vst.msk [vmem:[%s172 + $0x68] sm:$0xff] %vm4910, %v4679
      %4925 = vst.msk [vmem:[%s172 + $0x70] sm:$0xff] %vm4910, %v4681
      %4926 = vst.msk [vmem:[%s172 + $0x78] sm:$0xff] %vm4910, %v4683
      %4927 = vst.msk [vmem:[%s172 + $0x80] sm:$0xff] %vm4910, %v4685
      %4928 = vst.msk [vmem:[%s172 + $0x88] sm:$0xff] %vm4910, %v4687
      %4929 = vst.msk [vmem:[%s172 + $0x90] sm:$0xff] %vm4910, %v4689
      %4930 = vst.msk [vmem:[%s172 + $0x98] sm:$0xff] %vm4910, %v4691
      %4931 = vst.msk [vmem:[%s172 + $0xa0] sm:$0xff] %vm4910, %v4693
      %4932 = vst.msk [vmem:[%s172 + $0xa8] sm:$0xff] %vm4910, %v4695
      %4933 = vst.msk [vmem:[%s172 + $0xb0] sm:$0xff] %vm4910, %v4697
      %4934 = vst.msk [vmem:[%s172 + $0xb8] sm:$0xff] %vm4910, %v4699
      %4935 = vst.msk [vmem:[%s172 + $0xc0] sm:$0xff] %vm4910, %v4701
      %4936 = vst.msk [vmem:[%s172 + $0xc8] sm:$0xff] %vm4910, %v4703
      %4937 = vst.msk [vmem:[%s172 + $0xd0] sm:$0xff] %vm4910, %v4705
      %4938 = vst.msk [vmem:[%s172 + $0xd8] sm:$0xff] %vm4910, %v4707
      %4939 = vst.msk [vmem:[%s172 + $0xe0] sm:$0xff] %vm4910, %v4709
      %4940 = vst.msk [vmem:[%s172 + $0xe8] sm:$0xff] %vm4910, %v4711
      %4941 = vst.msk [vmem:[%s172 + $0xf0] sm:$0xff] %vm4910, %v4713
      %4942 = vst.msk [vmem:[%s172 + $0xf8] sm:$0xff] %vm4910, %v4715
      %4943 = vst.msk [vmem:[%s172 + $0x100] sm:$0xff] %vm4910, %v4717
      %4944 = vst.msk [vmem:[%s172 + $0x108] sm:$0xff] %vm4910, %v4719
      %4945 = vst.msk [vmem:[%s172 + $0x110] sm:$0xff] %vm4910, %v4721
      %4946 = vst.msk [vmem:[%s172 + $0x118] sm:$0xff] %vm4910, %v4723
      %4947 = vst.msk [vmem:[%s172 + $0x120] sm:$0xff] %vm4910, %v4725
      %4948 = vst.msk [vmem:[%s172 + $0x128] sm:$0xff] %vm4910, %v4727
      %4949 = vst.msk [vmem:[%s172 + $0x130] sm:$0xff] %vm4910, %v4729
      %4950 = vst.msk [vmem:[%s172 + $0x138] sm:$0xff] %vm4910, %v4731
      %4951 = vst.msk [vmem:[%s172 + $0x140] sm:$0xff] %vm4910, %v4733
      %4952 = vst.msk [vmem:[%s172 + $0x148] sm:$0xff] %vm4910, %v4735
      %4953 = vst.msk [vmem:[%s172 + $0x150] sm:$0xff] %vm4910, %v4737
      %4954 = vst.msk [vmem:[%s172 + $0x158] sm:$0xff] %vm4910, %v4739
      %4955 = vst.msk [vmem:[%s172 + $0x160] sm:$0xff] %vm4910, %v4741
      %4956 = vst.msk [vmem:[%s172 + $0x168] sm:$0xff] %vm4910, %v4743
      %4957 = vst.msk [vmem:[%s172 + $0x170] sm:$0xff] %vm4910, %v4745
      %4958 = vst.msk [vmem:[%s172 + $0x178] sm:$0xff] %vm4910, %v4747
      %4959 = vst.msk [vmem:[%s172 + $0x180] sm:$0xff] %vm4910, %v4749
      %4960 = vst.msk [vmem:[%s172 + $0x188] sm:$0xff] %vm4910, %v4751
      %4961 = vst.msk [vmem:[%s172 + $0x190] sm:$0xff] %vm4910, %v4753
      %4962 = vst.msk [vmem:[%s172 + $0x198] sm:$0xff] %vm4910, %v4755
      %4963 = vst.msk [vmem:[%s172 + $0x1a0] sm:$0xff] %vm4910, %v4757
      %4964 = vst.msk [vmem:[%s172 + $0x1a8] sm:$0xff] %vm4910, %v4759
      %4965 = vst.msk [vmem:[%s172 + $0x1b0] sm:$0xff] %vm4910, %v4761
      %4966 = vst.msk [vmem:[%s172 + $0x1b8] sm:$0xff] %vm4910, %v4763
      %4967 = vst.msk [vmem:[%s172 + $0x1c0] sm:$0xff] %vm4910, %v4765
      %4968 = vst.msk [vmem:[%s172 + $0x1c8] sm:$0xff] %vm4910, %v4767
      %4969 = vst.msk [vmem:[%s172 + $0x1d0] sm:$0xff] %vm4910, %v4769
      %4970 = vst.msk [vmem:[%s172 + $0x1d8] sm:$0xff] %vm4910, %v4771
      %4971 = vst.msk [vmem:[%s172 + $0x1e0] sm:$0xff] %vm4910, %v4773
      %4972 = vst.msk [vmem:[%s172 + $0x1e8] sm:$0xff] %vm4910, %v4775
      %4973 = vst.msk [vmem:[%s172 + $0x1f0] sm:$0xff] %vm4910, %v4777
      %4974 = vst.msk [vmem:[%s172 + $0x1f8] sm:$0xff] %vm4910, %v4779
      %s4975 = smul.u32 64, %s14
      %p4976 = scmp.lt.s32.totalorder %s4975, 255
      %s4977 = scalar_select %p4976, %s4975, 255
      %s4978 = smul.addr %s4977, 8
      %s4979 = scalar_lea.vmem %s3, %s4978
      // Predicated region
      $region33: #{g2p.1} parent=31 // pred_check
        %p4980 = pneg %p100
      $region34: #{g2p.1} parent=31 // pred_check_branch
        %4982 = sbr.rel (%p4980) target = $region36
      $region35: #{g2p.1} parent=31 // pred_region
        %s4983 = smul.u32 64, %s14
      $region36: #{g2p.1} parent=31 // pred_fallthru
        _
    $region32: #{g2p.1} parent=5 // pred_fallthru
      _
    %p4984 = scmp.le.s32.totalorder 2, %s9
    // Predicated region
    $region37: #{g2p.1} parent=5 // pred_check
      %p4985 = pneg %p4984
    $region38: #{g2p.1} parent=5 // pred_check_branch
      %4987 = sbr.rel (%p4985) target = $region40
    $region39: #{g2p.1} parent=5 // pred_region
      %s4988 = ssub.s32 %s9, 2
      // Predicated region
      $region41: #{g2p.1} parent=39 // pred_check
        %p4989 = pneg %p106
      $region42: #{g2p.1} parent=39 // pred_check_branch
        %4991 = sbr.rel (%p4989) target = $region44
      $region43: #{g2p.1} parent=39 // pred_region
        %s4992 = smul.u32 64, %s15
        %p4993 = scmp.lt.s32.totalorder %s4992, 255
        %s4994 = scalar_select %p4993, %s4992, 255
        %s4995 = smul.addr %s4994, 8
        %s4996 = scalar_lea.vmem %s3, %s4995
      $region44: #{g2p.1} parent=39 // pred_fallthru
        _
    $region40: #{g2p.1} parent=5 // pred_fallthru
      _
  $region6: #{g2p.1} parent=0 // loop_footer
    %s13 = sadd.s32 1, %s9
  $region7: #{g2p.1} parent=0 // loop_footer_branch
    %8 = sbr.rel target = $region3
  $region8: #{g2p.1} parent=0 // loop_exit
    _

</llo_original>
